<compile_context>
chip_gen: v5e
topology: v5e:2x2
jax: 0.10.0
libtpu: 0.0.40
codegen_flags: <defaults>
</compile_context>

<pallas_src>
import functools

import jax
import jax.numpy as jnp
from jax.experimental import pallas as pl
from jax.experimental.pallas import tpu as pltpu


def _round_up(x, m):
    return ((x + m - 1) // m) * m


def _pad2d(a, rows, cols):
    r, c = a.shape
    if r == rows and c == cols:
        return a                       # no-op: avoid an extra full HBM pass
    return jnp.pad(a, ((0, rows - r), (0, cols - c)))


def _vmem_capacity_bytes():
    """Per-core VMEM capacity; conservative 64 MiB fallback (v7x per-TC)."""
    try:
        info = pltpu.get_tpu_info()
        cap = getattr(info, "vmem_capacity_bytes", None)
        if cap:
            return int(cap)
    except Exception:
        pass
    return 64 * 1024 * 1024


def _vmem_budget_and_limit():
    cap = _vmem_capacity_bytes()
    budget = max(24 << 20, cap - (16 << 20))   # working-set budget for tile sizing
    limit = max(32 << 20, cap - (8 << 20))     # Mosaic scoped-VMEM limit
    return budget, limit


def _pick_row_tile(n, f_pad, h_pad, vmem_budget, *, max_tm=512, min_grid=4):
    """Largest power-of-two row tile (>=32, int8-friendly) whose working set fits
    the VMEM budget, capped so the row grid has at least `min_grid` tiles."""
    grid_cap = max(32, _round_up(-(-n // min_grid), 32))
    tm = 32
    for cand in (512, 256, 128, 64, 32):
        if cand > max_tm or (cand > grid_cap and cand > 32):
            continue
        n_pad = _round_up(n, max(cand, 128))
        need = (
            2 * cand * n_pad * 1          # double-buffered int8 adjacency row tile
            + 2 * cand * 128 * 4          # double-buffered inv-degree tile (lane-padded)
            + 2 * cand * h_pad * 4        # double-buffered output tile (f32 worst case)
            + n_pad * f_pad * 2           # resident X (bf16, single-buffered)
            + 2 * f_pad * h_pad * 2       # resident W_self + W_neigh (bf16)
            + 8 * h_pad * 4               # resident bias
            + cand * (f_pad + h_pad) * 4  # in-kernel f32 temporaries
        )
        if need <= vmem_budget:
            tm = cand
            break
    n_pad = _round_up(n, max(tm, 128))
    return tm, n_pad


def _sage_layer_kernel(adj_ref, x_ref, invdeg_ref, ws_ref, wn_ref, b_ref, o_ref,
                       *, tm, apply_relu):
    """One SAGEConv('mean') layer for one tile of output rows.

    adj_ref   : (TM, N_pad)    int8  row tile of the binary adjacency (streamed)
    x_ref     : (N_pad, F_pad) bf16  all node features (VMEM-resident, 1 buffer)
    invdeg_ref: (TM, 1)        f32   exact inverse in-degree of this row tile
    ws_ref    : (F_pad, H_pad) bf16  self weights (resident, 1 buffer)
    wn_ref    : (F_pad, H_pad) bf16  neighbor weights (resident, 1 buffer)
    b_ref     : (1, H_pad)     f32   bias (resident, 1 buffer)
    o_ref     : (TM, H_pad)          output rows
    """
    i = pl.program_id(0)
    row0 = pl.multiple_of(i * tm, tm)

    # Self-term rows sliced from the resident X (no duplicate pipelined stream).
    x_self = x_ref[pl.ds(row0, tm), :]                              # (TM, F) bf16

    # Sum of in-neighbor features on the MXU: int8 0/1 -> bf16 upcast (VPU), f32 acc.
    adj = adj_ref[...].astype(jnp.bfloat16)
    h_sum = jnp.dot(adj, x_ref[...], preferred_element_type=jnp.float32)
    # Exact mean: scale rows by f32 1/in_degree after the aggregation dot.
    h_neigh = (h_sum * invdeg_ref[...]).astype(jnp.bfloat16)        # (TM, F) bf16

    # Two MXU dots added (no concat-materialized (TM, 2F) intermediate).
    out = jnp.dot(x_self, ws_ref[...], preferred_element_type=jnp.float32)
    out = out + jnp.dot(h_neigh, wn_ref[...], preferred_element_type=jnp.float32)
    out = out + b_ref[...]
    if apply_relu:
        out = jnp.maximum(out, 0.0)
    o_ref[...] = out.astype(o_ref.dtype)


def sage_layer(adj_pad, x_pad, invdeg_pad, w_self, w_neigh, b_pad,
               *, tm, apply_relu, out_dtype, vmem_limit):
    """Row-tiled pallas_call for one SAGEConv('mean') layer on padded operands."""
    n_pad = adj_pad.shape[0]
    f_pad = x_pad.shape[1]
    h_pad = w_self.shape[1]
    grid = (n_pad // tm,)
    return pl.pallas_call(
        functools.partial(_sage_layer_kernel, tm=tm, apply_relu=apply_relu),
        out_shape=jax.ShapeDtypeStruct((n_pad, h_pad), out_dtype),
        grid_spec=pltpu.PrefetchScalarGridSpec(
            num_scalar_prefetch=0,
            grid=grid,
            in_specs=[
                # Streamed int8 adjacency row tile (dominant HBM traffic).
                # TODO(synk): sweep pipeline_mode=pl.Buffered(3) here if xprof shows
                # exposed DMA between grid steps at max tm.
                pl.BlockSpec((tm, n_pad), lambda i: (i, 0)),
                # Resident operands: constant block index -> single buffer.
                pl.BlockSpec((n_pad, f_pad), lambda i: (0, 0),
                             pipeline_mode=pl.Buffered(1)),
                # Small exact inv-degree tile for this row block.
                pl.BlockSpec((tm, 1), lambda i: (i, 0)),
                pl.BlockSpec((f_pad, h_pad), lambda i: (0, 0),
                             pipeline_mode=pl.Buffered(1)),
                pl.BlockSpec((f_pad, h_pad), lambda i: (0, 0),
                             pipeline_mode=pl.Buffered(1)),
                pl.BlockSpec((1, h_pad), lambda i: (0, 0),
                             pipeline_mode=pl.Buffered(1)),
            ],
            out_specs=pl.BlockSpec((tm, h_pad), lambda i: (i, 0)),
        ),
        compiler_params=pltpu.CompilerParams(
            dimension_semantics=("parallel",),   # shard row tiles across TCs (v7x)
            vmem_limit_bytes=vmem_limit,         # generation-aware (64 vs 128 MiB)
        ),
    )(adj_pad, x_pad, invdeg_pad, w_self, w_neigh, b_pad)


def sage_forward(adj, inv_deg, x, params):
    """SAGE.forward: conv1 -> ReLU -> conv2 using int8 adjacency + exact inv-degree."""
    n, in_f = x.shape
    hid = params["w_self1"].shape[1]
    out_f = params["w_self2"].shape[1]

    f_pad = _round_up(in_f, 128)
    hid_pad = _round_up(hid, 128)
    out_pad = _round_up(out_f, 128)

    vmem_budget, vmem_limit = _vmem_budget_and_limit()
    tm, n_pad = _pick_row_tile(n, max(f_pad, hid_pad), max(hid_pad, out_pad),
                               vmem_budget)

    # Pad once; adjacency stays int8 end-to-end (no f32->bf16 pre-pass over N^2).
    adj_pad = _pad2d(adj, n_pad, n_pad)                       # int8 (no-op if aligned)
    invdeg_pad = _pad2d(inv_deg, n_pad, 1).astype(jnp.float32)
    x_pad = _pad2d(x, n_pad, f_pad).astype(jnp.bfloat16)

    w_s1 = _pad2d(params["w_self1"], f_pad, hid_pad).astype(jnp.bfloat16)
    w_n1 = _pad2d(params["w_neigh1"], f_pad, hid_pad).astype(jnp.bfloat16)
    b1 = _pad2d(params["b1"].reshape(1, -1), 1, hid_pad).astype(jnp.float32)
    w_s2 = _pad2d(params["w_self2"], hid_pad, out_pad).astype(jnp.bfloat16)
    w_n2 = _pad2d(params["w_neigh2"], hid_pad, out_pad).astype(jnp.bfloat16)
    b2 = _pad2d(params["b2"].reshape(1, -1), 1, out_pad).astype(jnp.float32)

    # NOTE: padded rows n..n_pad of the layer-1 output equal relu(b1); they never
    # contaminate valid rows because A's padded columns are zero, and the final
    # slice drops them.  Preserve this invariant if padding/layer-2 logic changes.
    h = sage_layer(adj_pad, x_pad, invdeg_pad, w_s1, w_n1, b1,
                   tm=tm, apply_relu=True, out_dtype=jnp.bfloat16,
                   vmem_limit=vmem_limit)
    out = sage_layer(adj_pad, h, invdeg_pad, w_s2, w_n2, b2,
                     tm=tm, apply_relu=False, out_dtype=jnp.float32,
                     vmem_limit=vmem_limit)
    return out[:n, :out_f]


def _ref_forward(adj, inv_deg, x, params):
    """Pure-JAX f32 reference for a sanity check."""
    a_mean = adj.astype(jnp.float32) * inv_deg
    h = x @ params["w_self1"] + (a_mean @ x) @ params["w_neigh1"] + params["b1"]
    h = jnp.maximum(h, 0.0)
    return h @ params["w_self2"] + (a_mean @ h) @ params["w_neigh2"] + params["b2"]


def init_params(key, in_feats, hid_feats, out_feats):
    ks = jax.random.split(key, 6)

    def lin(k, fan_in, fan_out):
        bound = 1.0 / jnp.sqrt(jnp.float32(fan_in))
        return jax.random.uniform(k, (fan_in, fan_out), jnp.float32, -bound, bound)

    def bias(k, fan_in, fan_out):
        bound = 1.0 / jnp.sqrt(jnp.float32(fan_in))
        return jax.random.uniform(k, (fan_out,), jnp.float32, -bound, bound)

    return {
        "w_self1": lin(ks[0], in_feats, hid_feats),
        "w_neigh1": lin(ks[1], in_feats, hid_feats),
        "b1": bias(ks[2], in_feats, hid_feats),
        "w_self2": lin(ks[3], hid_feats, out_feats),
        "w_neigh2": lin(ks[4], hid_feats, out_feats),
        "b2": bias(ks[5], hid_feats, out_feats),
    }


def make_graph(key, n_nodes):
    """Deterministic random directed graph.

    Returns (adj, inv_deg):
      adj     : (N, N) int8, adj[i, j] = 1 iff edge j -> i (in-neighbors of i in row i)
      inv_deg : (N, 1) f32 exact 1 / in_degree (0 for isolated nodes)
    """
    adj_b = jax.random.bernoulli(key, 0.3, (n_nodes, n_nodes))
    adj_b = jnp.logical_and(adj_b, ~jnp.eye(n_nodes, dtype=jnp.bool_))  # no self loops
    adj = adj_b.astype(jnp.int8)
    in_deg = adj.astype(jnp.float32).sum(axis=1, keepdims=True)
    inv_deg = jnp.where(in_deg > 0, 1.0 / jnp.maximum(in_deg, 1.0), 0.0)
    return adj, inv_deg


if __name__ == "__main__":
    N, IN_F, HID_F, OUT_F = 1024, 8, 32, 16

    key = jax.random.PRNGKey(0)
    k_graph, k_feat, k_param = jax.random.split(key, 3)

    adj, inv_deg = make_graph(k_graph, N)                   # (N, N) int8, (N, 1) f32
    x = jax.random.normal(k_feat, (N, IN_F), jnp.float32)   # (N, in_feats)
    params = init_params(k_param, IN_F, HID_F, OUT_F)

    out = jax.jit(sage_forward)(adj, inv_deg, x, params)
    out = jax.block_until_ready(out)

    ref = _ref_forward(adj, inv_deg, x, params)
    assert out.shape == (N, OUT_F)
    max_err = float(jnp.max(jnp.abs(out - ref)))
    assert jnp.allclose(out, ref, atol=5e-2, rtol=5e-2), f"max abs err {max_err}"

    print("KERNEL_OK")
</pallas_src>

<mosaic_0001>
module attributes {stable_mosaic.version = 11 : i64} {
  func.func @_sage_layer_kernel(%arg0: i32, %arg1: memref<256x1024xi8, #tpu.memory_space<vmem>>, %arg2: memref<1024x128xbf16, #tpu.memory_space<vmem>>, %arg3: memref<256x1xf32, #tpu.memory_space<vmem>>, %arg4: memref<128x128xbf16, #tpu.memory_space<vmem>>, %arg5: memref<128x128xbf16, #tpu.memory_space<vmem>>, %arg6: memref<1x128xf32, #tpu.memory_space<vmem>>, %arg7: memref<256x128xf32, #tpu.memory_space<vmem>>) attributes {dimension_semantics = [#tpu.dimension_semantics<parallel>], iteration_bounds = array<i64: 4>, scalar_prefetch = 0 : i64, scratch_operands = 0 : i64, tpu.core_type = #tpu.core_type<tc>, window_params = [{transform_indices = @transform_0, window_bounds = array<i64: 256, 1024>}, {pipeline_mode = #tpu.pipeline_mode<synchronous>, transform_indices = @transform_1, window_bounds = array<i64: 1024, 128>}, {transform_indices = @transform_2, window_bounds = array<i64: 256, 1>}, {pipeline_mode = #tpu.pipeline_mode<synchronous>, transform_indices = @transform_3, window_bounds = array<i64: 128, 128>}, {pipeline_mode = #tpu.pipeline_mode<synchronous>, transform_indices = @transform_4, window_bounds = array<i64: 128, 128>}, {pipeline_mode = #tpu.pipeline_mode<synchronous>, transform_indices = @transform_5, window_bounds = array<i64: 1, 128>}, {transform_indices = @transform_6, window_bounds = array<i64: 256, 128>}]} {
    %c256_i32 = arith.constant 256 : i32
    %0 = arith.muli %arg0, %c256_i32 : i32
    %1 = tpu.assume_multiple %0, 256 : i32
    %2 = arith.index_cast %1 : i32 to index
    %c0 = arith.constant 0 : index
    %3 = vector.load %arg2[%2, %c0] : memref<1024x128xbf16, #tpu.memory_space<vmem>>, vector<256x128xbf16>
    %c0_0 = arith.constant 0 : index
    %c0_1 = arith.constant 0 : index
    %4 = vector.load %arg1[%c0_0, %c0_1] : memref<256x1024xi8, #tpu.memory_space<vmem>>, vector<256x1024xi8>
    %5 = arith.sitofp %4 : vector<256x1024xi8> to vector<256x1024xbf16>
    %c0_2 = arith.constant 0 : index
    %c0_3 = arith.constant 0 : index
    %6 = vector.load %arg2[%c0_2, %c0_3] : memref<1024x128xbf16, #tpu.memory_space<vmem>>, vector<1024x128xbf16>
    %cst = arith.constant dense<0.000000e+00> : vector<256x128xf32>
    %7 = tpu.matmul %5, %6, %cst {dimension_numbers = #tpu.dot_dimension_numbers<[1], [0], [0], [1], [0, 0, 1, 1], [], []>} : vector<256x1024xbf16>, vector<1024x128xbf16>, vector<256x128xf32> -> vector<256x128xf32>
    %c0_4 = arith.constant 0 : index
    %c0_5 = arith.constant 0 : index
    %8 = vector.load %arg3[%c0_4, %c0_5] : memref<256x1xf32, #tpu.memory_space<vmem>>, vector<256x1xf32>
    %9 = vector.broadcast %8 : vector<256x1xf32> to vector<256x128xf32>
    %10 = arith.mulf %7, %9 : vector<256x128xf32>
    %11 = arith.truncf %10 : vector<256x128xf32> to vector<256x128xbf16>
    %c0_6 = arith.constant 0 : index
    %c0_7 = arith.constant 0 : index
    %12 = vector.load %arg4[%c0_6, %c0_7] : memref<128x128xbf16, #tpu.memory_space<vmem>>, vector<128x128xbf16>
    %cst_8 = arith.constant dense<0.000000e+00> : vector<256x128xf32>
    %13 = tpu.matmul %3, %12, %cst_8 {dimension_numbers = #tpu.dot_dimension_numbers<[1], [0], [0], [1], [0, 0, 1, 1], [], []>} : vector<256x128xbf16>, vector<128x128xbf16>, vector<256x128xf32> -> vector<256x128xf32>
    %c0_9 = arith.constant 0 : index
    %c0_10 = arith.constant 0 : index
    %14 = vector.load %arg5[%c0_9, %c0_10] : memref<128x128xbf16, #tpu.memory_space<vmem>>, vector<128x128xbf16>
    %cst_11 = arith.constant dense<0.000000e+00> : vector<256x128xf32>
    %15 = tpu.matmul %11, %14, %cst_11 {dimension_numbers = #tpu.dot_dimension_numbers<[1], [0], [0], [1], [0, 0, 1, 1], [], []>} : vector<256x128xbf16>, vector<128x128xbf16>, vector<256x128xf32> -> vector<256x128xf32>
    %16 = arith.addf %13, %15 : vector<256x128xf32>
    %c0_12 = arith.constant 0 : index
    %c0_13 = arith.constant 0 : index
    %17 = vector.load %arg6[%c0_12, %c0_13] : memref<1x128xf32, #tpu.memory_space<vmem>>, vector<1x128xf32>
    %18 = vector.broadcast %17 : vector<1x128xf32> to vector<256x128xf32>
    %19 = arith.addf %16, %18 : vector<256x128xf32>
    %c0_14 = arith.constant 0 : index
    %c0_15 = arith.constant 0 : index
    %20 = vector.load %arg7[%c0_14, %c0_15] : memref<256x128xf32, #tpu.memory_space<vmem>>, vector<256x128xf32>
    tpu.vector_store %arg7[%c0_14, %c0_15], %19 {strides = array<i32>} : memref<256x128xf32, #tpu.memory_space<vmem>>, vector<256x128xf32>,
    return
  }
  func.func @transform_0(%arg0: i32) -> (i32, i32) {
    %c0_i32 = arith.constant 0 : i32
    %c0_i32_0 = arith.constant 0 : i32
    return %arg0, %c0_i32 : i32, i32
  }
  func.func @transform_1(%arg0: i32) -> (i32, i32) {
    %c0_i32 = arith.constant 0 : i32
    %c0_i32_0 = arith.constant 0 : i32
    %c0_i32_1 = arith.constant 0 : i32
    return %c0_i32, %c0_i32_0 : i32, i32
  }
  func.func @transform_2(%arg0: i32) -> (i32, i32) {
    %c0_i32 = arith.constant 0 : i32
    %c0_i32_0 = arith.constant 0 : i32
    return %arg0, %c0_i32 : i32, i32
  }
  func.func @transform_3(%arg0: i32) -> (i32, i32) {
    %c0_i32 = arith.constant 0 : i32
    %c0_i32_0 = arith.constant 0 : i32
    %c0_i32_1 = arith.constant 0 : i32
    return %c0_i32, %c0_i32_0 : i32, i32
  }
  func.func @transform_4(%arg0: i32) -> (i32, i32) {
    %c0_i32 = arith.constant 0 : i32
    %c0_i32_0 = arith.constant 0 : i32
    %c0_i32_1 = arith.constant 0 : i32
    return %c0_i32, %c0_i32_0 : i32, i32
  }
  func.func @transform_5(%arg0: i32) -> (i32, i32) {
    %c0_i32 = arith.constant 0 : i32
    %c0_i32_0 = arith.constant 0 : i32
    %c0_i32_1 = arith.constant 0 : i32
    return %c0_i32, %c0_i32_0 : i32, i32
  }
  func.func @transform_6(%arg0: i32) -> (i32, i32) {
    %c0_i32 = arith.constant 0 : i32
    %c0_i32_0 = arith.constant 0 : i32
    return %arg0, %c0_i32 : i32, i32
  }
}

module attributes {stable_mosaic.version = 11 : i64} {
  func.func @_sage_layer_kernel(%arg0: i32, %arg1: memref<256x1024xi8, #tpu.memory_space<vmem>>, %arg2: memref<1024x128xbf16, #tpu.memory_space<vmem>>, %arg3: memref<256x1xf32, #tpu.memory_space<vmem>>, %arg4: memref<128x128xbf16, #tpu.memory_space<vmem>>, %arg5: memref<128x128xbf16, #tpu.memory_space<vmem>>, %arg6: memref<1x128xf32, #tpu.memory_space<vmem>>, %arg7: memref<256x128xbf16, #tpu.memory_space<vmem>>) attributes {dimension_semantics = [#tpu.dimension_semantics<parallel>], iteration_bounds = array<i64: 4>, scalar_prefetch = 0 : i64, scratch_operands = 0 : i64, tpu.core_type = #tpu.core_type<tc>, window_params = [{transform_indices = @transform_0, window_bounds = array<i64: 256, 1024>}, {pipeline_mode = #tpu.pipeline_mode<synchronous>, transform_indices = @transform_1, window_bounds = array<i64: 1024, 128>}, {transform_indices = @transform_2, window_bounds = array<i64: 256, 1>}, {pipeline_mode = #tpu.pipeline_mode<synchronous>, transform_indices = @transform_3, window_bounds = array<i64: 128, 128>}, {pipeline_mode = #tpu.pipeline_mode<synchronous>, transform_indices = @transform_4, window_bounds = array<i64: 128, 128>}, {pipeline_mode = #tpu.pipeline_mode<synchronous>, transform_indices = @transform_5, window_bounds = array<i64: 1, 128>}, {transform_indices = @transform_6, window_bounds = array<i64: 256, 128>}]} {
    %c256_i32 = arith.constant 256 : i32
    %0 = arith.muli %arg0, %c256_i32 : i32
    %1 = tpu.assume_multiple %0, 256 : i32
    %2 = arith.index_cast %1 : i32 to index
    %c0 = arith.constant 0 : index
    %3 = vector.load %arg2[%2, %c0] : memref<1024x128xbf16, #tpu.memory_space<vmem>>, vector<256x128xbf16>
    %c0_0 = arith.constant 0 : index
    %c0_1 = arith.constant 0 : index
    %4 = vector.load %arg1[%c0_0, %c0_1] : memref<256x1024xi8, #tpu.memory_space<vmem>>, vector<256x1024xi8>
    %5 = arith.sitofp %4 : vector<256x1024xi8> to vector<256x1024xbf16>
    %c0_2 = arith.constant 0 : index
    %c0_3 = arith.constant 0 : index
    %6 = vector.load %arg2[%c0_2, %c0_3] : memref<1024x128xbf16, #tpu.memory_space<vmem>>, vector<1024x128xbf16>
    %cst = arith.constant dense<0.000000e+00> : vector<256x128xf32>
    %7 = tpu.matmul %5, %6, %cst {dimension_numbers = #tpu.dot_dimension_numbers<[1], [0], [0], [1], [0, 0, 1, 1], [], []>} : vector<256x1024xbf16>, vector<1024x128xbf16>, vector<256x128xf32> -> vector<256x128xf32>
    %c0_4 = arith.constant 0 : index
    %c0_5 = arith.constant 0 : index
    %8 = vector.load %arg3[%c0_4, %c0_5] : memref<256x1xf32, #tpu.memory_space<vmem>>, vector<256x1xf32>
    %9 = vector.broadcast %8 : vector<256x1xf32> to vector<256x128xf32>
    %10 = arith.mulf %7, %9 : vector<256x128xf32>
    %11 = arith.truncf %10 : vector<256x128xf32> to vector<256x128xbf16>
    %c0_6 = arith.constant 0 : index
    %c0_7 = arith.constant 0 : index
    %12 = vector.load %arg4[%c0_6, %c0_7] : memref<128x128xbf16, #tpu.memory_space<vmem>>, vector<128x128xbf16>
    %cst_8 = arith.constant dense<0.000000e+00> : vector<256x128xf32>
    %13 = tpu.matmul %3, %12, %cst_8 {dimension_numbers = #tpu.dot_dimension_numbers<[1], [0], [0], [1], [0, 0, 1, 1], [], []>} : vector<256x128xbf16>, vector<128x128xbf16>, vector<256x128xf32> -> vector<256x128xf32>
    %c0_9 = arith.constant 0 : index
    %c0_10 = arith.constant 0 : index
    %14 = vector.load %arg5[%c0_9, %c0_10] : memref<128x128xbf16, #tpu.memory_space<vmem>>, vector<128x128xbf16>
    %cst_11 = arith.constant dense<0.000000e+00> : vector<256x128xf32>
    %15 = tpu.matmul %11, %14, %cst_11 {dimension_numbers = #tpu.dot_dimension_numbers<[1], [0], [0], [1], [0, 0, 1, 1], [], []>} : vector<256x128xbf16>, vector<128x128xbf16>, vector<256x128xf32> -> vector<256x128xf32>
    %16 = arith.addf %13, %15 : vector<256x128xf32>
    %c0_12 = arith.constant 0 : index
    %c0_13 = arith.constant 0 : index
    %17 = vector.load %arg6[%c0_12, %c0_13] : memref<1x128xf32, #tpu.memory_space<vmem>>, vector<1x128xf32>
    %18 = vector.broadcast %17 : vector<1x128xf32> to vector<256x128xf32>
    %19 = arith.addf %16, %18 : vector<256x128xf32>
    %cst_14 = arith.constant 0.000000e+00 : f32
    %20 = vector.broadcast %cst_14 : f32 to vector<256x128xf32>
    %21 = arith.maximumf %19, %20 : vector<256x128xf32>
    %22 = arith.truncf %21 : vector<256x128xf32> to vector<256x128xbf16>
    %c0_15 = arith.constant 0 : index
    %c0_16 = arith.constant 0 : index
    %23 = vector.load %arg7[%c0_15, %c0_16] : memref<256x128xbf16, #tpu.memory_space<vmem>>, vector<256x128xbf16>
    tpu.vector_store %arg7[%c0_15, %c0_16], %22 {strides = array<i32>} : memref<256x128xbf16, #tpu.memory_space<vmem>>, vector<256x128xbf16>,
    return
  }
  func.func @transform_0(%arg0: i32) -> (i32, i32) {
    %c0_i32 = arith.constant 0 : i32
    %c0_i32_0 = arith.constant 0 : i32
    return %arg0, %c0_i32 : i32, i32
  }
  func.func @transform_1(%arg0: i32) -> (i32, i32) {
    %c0_i32 = arith.constant 0 : i32
    %c0_i32_0 = arith.constant 0 : i32
    %c0_i32_1 = arith.constant 0 : i32
    return %c0_i32, %c0_i32_0 : i32, i32
  }
  func.func @transform_2(%arg0: i32) -> (i32, i32) {
    %c0_i32 = arith.constant 0 : i32
    %c0_i32_0 = arith.constant 0 : i32
    return %arg0, %c0_i32 : i32, i32
  }
  func.func @transform_3(%arg0: i32) -> (i32, i32) {
    %c0_i32 = arith.constant 0 : i32
    %c0_i32_0 = arith.constant 0 : i32
    %c0_i32_1 = arith.constant 0 : i32
    return %c0_i32, %c0_i32_0 : i32, i32
  }
  func.func @transform_4(%arg0: i32) -> (i32, i32) {
    %c0_i32 = arith.constant 0 : i32
    %c0_i32_0 = arith.constant 0 : i32
    %c0_i32_1 = arith.constant 0 : i32
    return %c0_i32, %c0_i32_0 : i32, i32
  }
  func.func @transform_5(%arg0: i32) -> (i32, i32) {
    %c0_i32 = arith.constant 0 : i32
    %c0_i32_0 = arith.constant 0 : i32
    %c0_i32_1 = arith.constant 0 : i32
    return %c0_i32, %c0_i32_0 : i32, i32
  }
  func.func @transform_6(%arg0: i32) -> (i32, i32) {
    %c0_i32 = arith.constant 0 : i32
    %c0_i32_0 = arith.constant 0 : i32
    return %arg0, %c0_i32 : i32, i32
  }
}

</mosaic_0001>

<llo_original>
// kernel: sage_forward.3
$region0: #{sage_forward.3}
  #allocation0 [shape = 'u32[]', space=smem, size = 0x4, offset = 0x4, fixed_abs, tag = 'smem constant byte address 0x4 - core index']
  #allocation1 [shape = 'u32[72,128]{1,0:T(1,128)}', space=vmem, size = 0x9000, scoped, tag = 'internal scratch']
  %s0 = inlined_call_operand.vmem [shape: s8[1024,1024], index: 0, kind: input, shape index: {}]
  %s1 = inlined_call_operand.vmem [shape: bf16[1024,128], index: 1, kind: input, shape index: {}]
  %s2 = inlined_call_operand.vmem [shape: f32[1024,1], index: 2, kind: input, shape index: {}]
  %s3 = inlined_call_operand.vmem [shape: bf16[128,128], index: 3, kind: input, shape index: {}]
  %s4 = inlined_call_operand.vmem [shape: bf16[128,128], index: 4, kind: input, shape index: {}]
  %s5 = inlined_call_operand.vmem [shape: f32[1,128], index: 5, kind: input, shape index: {}]
  %s6 = inlined_call_operand.vmem [shape: f32[1024,128], index: 6, kind: output, shape index: {}]
  %s7 = sld [smem:[#allocation0]]
  $region57: #{sage_forward.3} parent=0
    _
  %s9 = ssub.s32 1, %s7
  %s10 = scalar_select 0, %s9, %s7
  loop: start=0, step=1, limit=6
  $region2: #{sage_forward.3} parent=0 // loop_pre_header
    _
  $region3: #{sage_forward.3} parent=0 // loop_header
    %s12 = sphi 0, %s16
    %p13 = scmp.ge.s32.totalorder %s12, 6
    %s22 = sphi 0, %s24
    %s25 = sphi 0, %s22
    %s26 = sphi 0, %s25
    %s42 = sphi 0, %s26
    %s46 = sphi 0, %s46
    %s48 = sphi 0, %s46
    %s49 = sphi 0, %s48
    %s63 = sphi 0, %s49
    %s69 = sphi 0, %s71
    %s72 = sphi 0, %s69
    %s73 = sphi 0, %s72
    %s89 = sphi 0, %s73
    %s93 = sphi 0, %s93
    %s95 = sphi 0, %s93
    %s96 = sphi 0, %s95
    %s110 = sphi 0, %s96
    %s114 = sphi 0, %s114
    %s116 = sphi 0, %s114
    %s117 = sphi 0, %s116
    %s131 = sphi 0, %s117
    %s135 = sphi 0, %s135
    %s137 = sphi 0, %s135
    %s138 = sphi 0, %s137
    %s152 = sphi 0, %s138
    %s158 = sphi 0, %s160
    %s161 = sphi 0, %s158
    %s162 = sphi 0, %s161
    %s178 = sphi 0, %s162
  $region4: #{sage_forward.3} parent=0 // loop_header_branch
    %15 = sbr.rel (%p13) target = $region8
  $region5: #{sage_forward.3} parent=0 // loop_body
    %s17 = ssub.s32 %s12, 1
    %s18 = ssub.s32 %s12, 2
    %s19 = sadd.s32 %s12, 1
    %s20 = ssub.s32 %s12, %s19
    %p21 = scmp.eq.s32.totalorder %s20, 0
    %s23 = sadd.s32 %s22, 1
    %s24 = scalar_select %p21, %s22, %s23
    %p27 = pneg %p21
    %p28 = scmp.eq.s32.totalorder %s12, 3
    %p29 = por %p27, %p28
    %p30 = scmp.ne.s32.totalorder %s22, %s25
    %p31 = scmp.eq.s32.totalorder %s12, 0
    %p32 = por %p30, %p31
    %p33 = scmp.ne.s32.totalorder %s22, %s25
    %p34 = scmp.eq.s32.totalorder %s17, 3
    %p35 = por %p33, %p34
    %p36 = scmp.ne.s32.totalorder %s25, %s26
    %p37 = scmp.eq.s32.totalorder %s17, 0
    %p38 = por %p36, %p37
    %p39 = scmp.ne.s32.totalorder %s25, %s26
    %p40 = scmp.eq.s32.totalorder %s18, 3
    %p41 = por %p39, %p40
    %p43 = scmp.ne.s32.totalorder %s26, %s42
    %p44 = scmp.eq.s32.totalorder %s18, 0
    %p45 = por %p43, %p44
    %s47 = sadd.s32 %s46, 1
    %p50 = scmp.eq.s32.totalorder %s12, 3
    %p51 = scmp.ne.s32.totalorder %s46, %s48
    %p52 = scmp.eq.s32.totalorder %s12, 0
    %p53 = por %p51, %p52
    %p54 = scmp.ne.s32.totalorder %s46, %s48
    %p55 = scmp.eq.s32.totalorder %s17, 3
    %p56 = por %p54, %p55
    %p57 = scmp.ne.s32.totalorder %s48, %s49
    %p58 = scmp.eq.s32.totalorder %s17, 0
    %p59 = por %p57, %p58
    %p60 = scmp.ne.s32.totalorder %s48, %s49
    %p61 = scmp.eq.s32.totalorder %s18, 3
    %p62 = por %p60, %p61
    %p64 = scmp.ne.s32.totalorder %s49, %s63
    %p65 = scmp.eq.s32.totalorder %s18, 0
    %p66 = por %p64, %p65
    %s67 = ssub.s32 %s12, %s19
    %p68 = scmp.eq.s32.totalorder %s67, 0
    %s70 = sadd.s32 %s69, 1
    %s71 = scalar_select %p68, %s69, %s70
    %p74 = pneg %p68
    %p75 = scmp.eq.s32.totalorder %s12, 3
    %p76 = por %p74, %p75
    %p77 = scmp.ne.s32.totalorder %s69, %s72
    %p78 = scmp.eq.s32.totalorder %s12, 0
    %p79 = por %p77, %p78
    %p80 = scmp.ne.s32.totalorder %s69, %s72
    %p81 = scmp.eq.s32.totalorder %s17, 3
    %p82 = por %p80, %p81
    %p83 = scmp.ne.s32.totalorder %s72, %s73
    %p84 = scmp.eq.s32.totalorder %s17, 0
    %p85 = por %p83, %p84
    %p86 = scmp.ne.s32.totalorder %s72, %s73
    %p87 = scmp.eq.s32.totalorder %s18, 3
    %p88 = por %p86, %p87
    %p90 = scmp.ne.s32.totalorder %s73, %s89
    %p91 = scmp.eq.s32.totalorder %s18, 0
    %p92 = por %p90, %p91
    %s94 = sadd.s32 %s93, 1
    %p97 = scmp.eq.s32.totalorder %s12, 3
    %p98 = scmp.ne.s32.totalorder %s93, %s95
    %p99 = scmp.eq.s32.totalorder %s12, 0
    %p100 = por %p98, %p99
    %p101 = scmp.ne.s32.totalorder %s93, %s95
    %p102 = scmp.eq.s32.totalorder %s17, 3
    %p103 = por %p101, %p102
    %p104 = scmp.ne.s32.totalorder %s95, %s96
    %p105 = scmp.eq.s32.totalorder %s17, 0
    %p106 = por %p104, %p105
    %p107 = scmp.ne.s32.totalorder %s95, %s96
    %p108 = scmp.eq.s32.totalorder %s18, 3
    %p109 = por %p107, %p108
    %p111 = scmp.ne.s32.totalorder %s96, %s110
    %p112 = scmp.eq.s32.totalorder %s18, 0
    %p113 = por %p111, %p112
    %s115 = sadd.s32 %s114, 1
    %p118 = scmp.eq.s32.totalorder %s12, 3
    %p119 = scmp.ne.s32.totalorder %s114, %s116
    %p120 = scmp.eq.s32.totalorder %s12, 0
    %p121 = por %p119, %p120
    %p122 = scmp.ne.s32.totalorder %s114, %s116
    %p123 = scmp.eq.s32.totalorder %s17, 3
    %p124 = por %p122, %p123
    %p125 = scmp.ne.s32.totalorder %s116, %s117
    %p126 = scmp.eq.s32.totalorder %s17, 0
    %p127 = por %p125, %p126
    %p128 = scmp.ne.s32.totalorder %s116, %s117
    %p129 = scmp.eq.s32.totalorder %s18, 3
    %p130 = por %p128, %p129
    %p132 = scmp.ne.s32.totalorder %s117, %s131
    %p133 = scmp.eq.s32.totalorder %s18, 0
    %p134 = por %p132, %p133
    %s136 = sadd.s32 %s135, 1
    %p139 = scmp.eq.s32.totalorder %s12, 3
    %p140 = scmp.ne.s32.totalorder %s135, %s137
    %p141 = scmp.eq.s32.totalorder %s12, 0
    %p142 = por %p140, %p141
    %p143 = scmp.ne.s32.totalorder %s135, %s137
    %p144 = scmp.eq.s32.totalorder %s17, 3
    %p145 = por %p143, %p144
    %p146 = scmp.ne.s32.totalorder %s137, %s138
    %p147 = scmp.eq.s32.totalorder %s17, 0
    %p148 = por %p146, %p147
    %p149 = scmp.ne.s32.totalorder %s137, %s138
    %p150 = scmp.eq.s32.totalorder %s18, 3
    %p151 = por %p149, %p150
    %p153 = scmp.ne.s32.totalorder %s138, %s152
    %p154 = scmp.eq.s32.totalorder %s18, 0
    %p155 = por %p153, %p154
    %s156 = ssub.s32 %s12, %s19
    %p157 = scmp.eq.s32.totalorder %s156, 0
    %s159 = sadd.s32 %s158, 1
    %s160 = scalar_select %p157, %s158, %s159
    %p163 = pneg %p157
    %p164 = scmp.eq.s32.totalorder %s12, 3
    %p165 = por %p163, %p164
    %p166 = scmp.ne.s32.totalorder %s158, %s161
    %p167 = scmp.eq.s32.totalorder %s12, 0
    %p168 = por %p166, %p167
    %p169 = scmp.ne.s32.totalorder %s158, %s161
    %p170 = scmp.eq.s32.totalorder %s17, 3
    %p171 = por %p169, %p170
    %p172 = scmp.ne.s32.totalorder %s161, %s162
    %p173 = scmp.eq.s32.totalorder %s17, 0
    %p174 = por %p172, %p173
    %p175 = scmp.ne.s32.totalorder %s161, %s162
    %p176 = scmp.eq.s32.totalorder %s18, 3
    %p177 = por %p175, %p176
    %p179 = scmp.ne.s32.totalorder %s162, %s178
    %p180 = scmp.eq.s32.totalorder %s18, 0
    %p181 = por %p179, %p180
    %p182 = scmp.le.s32.totalorder 1, %s12
    %p183 = scmp.lt.s32.totalorder %s12, 5
    %p184 = pnand %p182, %p183
    %p185 = pneg %p184
    // Predicated region
    $region9: #{sage_forward.3} parent=5 // pred_check
      _
    $region10: #{sage_forward.3} parent=5 // pred_check_branch
      %187 = sbr.rel (%p184) target = $region12
    $region11: #{sage_forward.3} parent=5 // pred_region
      %s188 = ssub.s32 %s12, 1
      // Predicated region
      $region13: #{sage_forward.3} parent=11 // pred_check
        %p189 = pneg %p59
      $region14: #{sage_forward.3} parent=11 // pred_check_branch
        %191 = sbr.rel (%p189) target = $region16
      $region15: #{sage_forward.3} parent=11 // pred_region
        _
      $region16: #{sage_forward.3} parent=11 // pred_fallthru
        _
      // Predicated region
      $region17: #{sage_forward.3} parent=11 // pred_check
        %p192 = pneg %p106
      $region18: #{sage_forward.3} parent=11 // pred_check_branch
        %194 = sbr.rel (%p192) target = $region20
      $region19: #{sage_forward.3} parent=11 // pred_region
        _
      $region20: #{sage_forward.3} parent=11 // pred_fallthru
        _
      // Predicated region
      $region21: #{sage_forward.3} parent=11 // pred_check
        %p195 = pneg %p127
      $region22: #{sage_forward.3} parent=11 // pred_check_branch
        %197 = sbr.rel (%p195) target = $region24
      $region23: #{sage_forward.3} parent=11 // pred_region
        _
      $region24: #{sage_forward.3} parent=11 // pred_fallthru
        _
      // Predicated region
      $region25: #{sage_forward.3} parent=11 // pred_check
        %p198 = pneg %p148
      $region26: #{sage_forward.3} parent=11 // pred_check_branch
        %200 = sbr.rel (%p198) target = $region28
      $region27: #{sage_forward.3} parent=11 // pred_region
        _
      $region28: #{sage_forward.3} parent=11 // pred_fallthru
        _
    $region12: #{sage_forward.3} parent=5 // pred_fallthru
      _
    %p201 = scmp.lt.s32.totalorder %s12, 4
    // Predicated region
    $region29: #{sage_forward.3} parent=5 // pred_check
      %p202 = pneg %p201
    $region30: #{sage_forward.3} parent=5 // pred_check_branch
      %204 = sbr.rel (%p202) target = $region32
    $region31: #{sage_forward.3} parent=5 // pred_region
      // Predicated region
      $region33: #{sage_forward.3} parent=31 // pred_check
        %p205 = pneg %p32
      $region34: #{sage_forward.3} parent=31 // pred_check_branch
        %207 = sbr.rel (%p205) target = $region36
      $region35: #{sage_forward.3} parent=31 // pred_region
        %s208 = smul.u32 8, %s12
        %p209 = scmp.lt.s32.totalorder %s208, 31
        %s210 = scalar_select %p209, %s208, 31
        %s211 = smul.addr %s210, 8
        %s212 = smul.addr %s211, 8
        %s213 = scalar_lea.vmem %s0, %s212
        %s214 = smul.u32 8, %s12
      $region36: #{sage_forward.3} parent=31 // pred_fallthru
        _
      // Predicated region
      $region37: #{sage_forward.3} parent=31 // pred_check
        %p215 = pneg %p79
      $region38: #{sage_forward.3} parent=31 // pred_check_branch
        %217 = sbr.rel (%p215) target = $region40
      $region39: #{sage_forward.3} parent=31 // pred_region
        %s218 = smul.u32 32, %s12
        %p219 = scmp.lt.s32.totalorder %s218, 127
        %s220 = scalar_select %p219, %s218, 127
        %s221 = smul.addr %s220, 8
        %s222 = scalar_lea.vmem %s2, %s221
        %s223 = smul.u32 32, %s12
      $region40: #{sage_forward.3} parent=31 // pred_fallthru
        _
    $region32: #{sage_forward.3} parent=5 // pred_fallthru
      _
    %p224 = scmp.le.s32.totalorder 1, %s12
    %p225 = scmp.lt.s32.totalorder %s12, 5
    %p226 = pnand %p224, %p225
    %p227 = pneg %p226
    // Predicated region
    $region41: #{sage_forward.3} parent=5 // pred_check
      _
    $region42: #{sage_forward.3} parent=5 // pred_check_branch
      %229 = sbr.rel (%p226) target = $region44
    $region43: #{sage_forward.3} parent=5 // pred_region
      %s230 = ssub.s32 %s12, 1
      %s231 = smul.u32 8, %s17
      %p232 = scmp.lt.s32.totalorder %s231, 31
      %s233 = scalar_select %p232, %s231, 31
      %s234 = smul.addr %s233, 8
      %s235 = smul.addr %s234, 8
      %s236 = scalar_lea.vmem %s0, %s235
      %p237 = pneg %p38
      %p238 = pneg %p35
      %p239 = pneg %p59
      %p240 = pneg %p56
      %s241 = smul.u32 32, %s17
      %p242 = scmp.lt.s32.totalorder %s241, 127
      %s243 = scalar_select %p242, %s241, 127
      %s244 = smul.addr %s243, 8
      %s245 = scalar_lea.vmem %s2, %s244
      %p246 = pneg %p85
      %p247 = pneg %p82
      %p248 = pneg %p106
      %p249 = pneg %p103
      %p250 = pneg %p127
      %p251 = pneg %p124
      %p252 = pneg %p148
      %p253 = pneg %p145
      %p254 = pneg %p174
      %p255 = pneg %p171
      %s256 = smul.u32 32, %s17
      %p257 = scmp.lt.s32.totalorder %s256, 127
      %s258 = scalar_select %p257, %s256, 127
      %s259 = smul.addr %s258, 8
      %s260 = scalar_lea.vmem %s6, %s259
      %s261 = smul.u32 8, %s17
      %p262 = scmp.lt.s32.totalorder %s261, 31
      %s263 = scalar_select %p262, %s261, 31
      %s264 = smul.addr %s263, 8
      %s265 = smul.addr %s264, 8
      %s266 = scalar_lea.vmem %s0, %s265
      %s267 = smul.u32 8, %s17
      %s268 = smul.u32 32, %s17
      %p269 = scmp.lt.s32.totalorder %s268, 127
      %s270 = scalar_select %p269, %s268, 127
      %s271 = smul.addr %s270, 8
      %s272 = scalar_lea.vmem %s2, %s271
      %s273 = smul.u32 32, %s17
      %s274 = smul.u32 32, %s17
      %p275 = scmp.lt.s32.totalorder %s274, 127
      %s276 = scalar_select %p275, %s274, 127
      %s277 = smul.addr %s276, 8
      %s278 = scalar_lea.vmem %s6, %s277
      %s279 = smul.u32 32, %s17
      %s280 = smul.u32 %s17, 256
      %s281 = sshra.s32 %s280, 3
      %s282 = sand.u32 %s280, 7
      %s283 = smul.addr %s281, 4
      %s284 = scalar_lea.vmem %s1, %s283
      %v285 = vld [vmem:[%s284] sm:$0xf]
      %v286 = vld [vmem:[%s284 + $0x4] sm:$0xf]
      %v287 = vld [vmem:[%s284 + $0x8] sm:$0xf]
      %v288 = vld [vmem:[%s284 + $0xc] sm:$0xf]
      %v289 = vld [vmem:[%s284 + $0x10] sm:$0xf]
      %v290 = vld [vmem:[%s284 + $0x14] sm:$0xf]
      %v291 = vld [vmem:[%s284 + $0x18] sm:$0xf]
      %v292 = vld [vmem:[%s284 + $0x1c] sm:$0xf]
      %v293 = vld [vmem:[%s284 + $0x20] sm:$0xf]
      %v294 = vld [vmem:[%s284 + $0x24] sm:$0xf]
      %v295 = vld [vmem:[%s284 + $0x28] sm:$0xf]
      %v296 = vld [vmem:[%s284 + $0x2c] sm:$0xf]
      %v297 = vld [vmem:[%s284 + $0x30] sm:$0xf]
      %v298 = vld [vmem:[%s284 + $0x34] sm:$0xf]
      %v299 = vld [vmem:[%s284 + $0x38] sm:$0xf]
      %v300 = vld [vmem:[%s284 + $0x3c] sm:$0xf]
      %v301 = vld [vmem:[%s284 + $0x40] sm:$0xf]
      %v302 = vld [vmem:[%s284 + $0x44] sm:$0xf]
      %v303 = vld [vmem:[%s284 + $0x48] sm:$0xf]
      %v304 = vld [vmem:[%s284 + $0x4c] sm:$0xf]
      %v305 = vld [vmem:[%s284 + $0x50] sm:$0xf]
      %v306 = vld [vmem:[%s284 + $0x54] sm:$0xf]
      %v307 = vld [vmem:[%s284 + $0x58] sm:$0xf]
      %v308 = vld [vmem:[%s284 + $0x5c] sm:$0xf]
      %v309 = vld [vmem:[%s284 + $0x60] sm:$0xf]
      %v310 = vld [vmem:[%s284 + $0x64] sm:$0xf]
      %v311 = vld [vmem:[%s284 + $0x68] sm:$0xf]
      %v312 = vld [vmem:[%s284 + $0x6c] sm:$0xf]
      %v313 = vld [vmem:[%s284 + $0x70] sm:$0xf]
      %v314 = vld [vmem:[%s284 + $0x74] sm:$0xf]
      %v315 = vld [vmem:[%s284 + $0x78] sm:$0xf]
      %v316 = vld [vmem:[%s284 + $0x7c] sm:$0xf]
      %v317 = vld [vmem:[%s266] sm:$0xff]
      %v318 = vld [vmem:[%s266 + $0x8] sm:$0xff]
      %v319 = vld [vmem:[%s266 + $0x10] sm:$0xff]
      %v320 = vld [vmem:[%s266 + $0x18] sm:$0xff]
      %v321 = vld [vmem:[%s266 + $0x20] sm:$0xff]
      %v322 = vld [vmem:[%s266 + $0x28] sm:$0xff]
      %v323 = vld [vmem:[%s266 + $0x30] sm:$0xff]
      %v324 = vld [vmem:[%s266 + $0x38] sm:$0xff]
      %v325 = vld [vmem:[%s266 + $0x40] sm:$0xff]
      %v326 = vld [vmem:[%s266 + $0x48] sm:$0xff]
      %v327 = vld [vmem:[%s266 + $0x50] sm:$0xff]
      %v328 = vld [vmem:[%s266 + $0x58] sm:$0xff]
      %v329 = vld [vmem:[%s266 + $0x60] sm:$0xff]
      %v330 = vld [vmem:[%s266 + $0x68] sm:$0xff]
      %v331 = vld [vmem:[%s266 + $0x70] sm:$0xff]
      %v332 = vld [vmem:[%s266 + $0x78] sm:$0xff]
      %v333 = vld [vmem:[%s266 + $0x80] sm:$0xff]
      %v334 = vld [vmem:[%s266 + $0x88] sm:$0xff]
      %v335 = vld [vmem:[%s266 + $0x90] sm:$0xff]
      %v336 = vld [vmem:[%s266 + $0x98] sm:$0xff]
      %v337 = vld [vmem:[%s266 + $0xa0] sm:$0xff]
      %v338 = vld [vmem:[%s266 + $0xa8] sm:$0xff]
      %v339 = vld [vmem:[%s266 + $0xb0] sm:$0xff]
      %v340 = vld [vmem:[%s266 + $0xb8] sm:$0xff]
      %v341 = vld [vmem:[%s266 + $0xc0] sm:$0xff]
      %v342 = vld [vmem:[%s266 + $0xc8] sm:$0xff]
      %v343 = vld [vmem:[%s266 + $0xd0] sm:$0xff]
      %v344 = vld [vmem:[%s266 + $0xd8] sm:$0xff]
      %v345 = vld [vmem:[%s266 + $0xe0] sm:$0xff]
      %v346 = vld [vmem:[%s266 + $0xe8] sm:$0xff]
      %v347 = vld [vmem:[%s266 + $0xf0] sm:$0xff]
      %v348 = vld [vmem:[%s266 + $0xf8] sm:$0xff]
      %v349 = vld [vmem:[%s266 + $0x100] sm:$0xff]
      %v350 = vld [vmem:[%s266 + $0x108] sm:$0xff]
      %v351 = vld [vmem:[%s266 + $0x110] sm:$0xff]
      %v352 = vld [vmem:[%s266 + $0x118] sm:$0xff]
      %v353 = vld [vmem:[%s266 + $0x120] sm:$0xff]
      %v354 = vld [vmem:[%s266 + $0x128] sm:$0xff]
      %v355 = vld [vmem:[%s266 + $0x130] sm:$0xff]
      %v356 = vld [vmem:[%s266 + $0x138] sm:$0xff]
      %v357 = vld [vmem:[%s266 + $0x140] sm:$0xff]
      %v358 = vld [vmem:[%s266 + $0x148] sm:$0xff]
      %v359 = vld [vmem:[%s266 + $0x150] sm:$0xff]
      %v360 = vld [vmem:[%s266 + $0x158] sm:$0xff]
      %v361 = vld [vmem:[%s266 + $0x160] sm:$0xff]
      %v362 = vld [vmem:[%s266 + $0x168] sm:$0xff]
      %v363 = vld [vmem:[%s266 + $0x170] sm:$0xff]
      %v364 = vld [vmem:[%s266 + $0x178] sm:$0xff]
      %v365 = vld [vmem:[%s266 + $0x180] sm:$0xff]
      %v366 = vld [vmem:[%s266 + $0x188] sm:$0xff]
      %v367 = vld [vmem:[%s266 + $0x190] sm:$0xff]
      %v368 = vld [vmem:[%s266 + $0x198] sm:$0xff]
      %v369 = vld [vmem:[%s266 + $0x1a0] sm:$0xff]
      %v370 = vld [vmem:[%s266 + $0x1a8] sm:$0xff]
      %v371 = vld [vmem:[%s266 + $0x1b0] sm:$0xff]
      %v372 = vld [vmem:[%s266 + $0x1b8] sm:$0xff]
      %v373 = vld [vmem:[%s266 + $0x1c0] sm:$0xff]
      %v374 = vld [vmem:[%s266 + $0x1c8] sm:$0xff]
      %v375 = vld [vmem:[%s266 + $0x1d0] sm:$0xff]
      %v376 = vld [vmem:[%s266 + $0x1d8] sm:$0xff]
      %v377 = vld [vmem:[%s266 + $0x1e0] sm:$0xff]
      %v378 = vld [vmem:[%s266 + $0x1e8] sm:$0xff]
      %v379 = vld [vmem:[%s266 + $0x1f0] sm:$0xff]
      %v380 = vld [vmem:[%s266 + $0x1f8] sm:$0xff]
      %v381 = vunpack.c.0.s8 %v317
      %v382 = vunpack.c.0.s8 %v318
      %v383 = vunpack.c.0.s8 %v319
      %v384 = vunpack.c.0.s8 %v320
      %v385 = vunpack.c.0.s8 %v321
      %v386 = vunpack.c.0.s8 %v322
      %v387 = vunpack.c.0.s8 %v323
      %v388 = vunpack.c.0.s8 %v324
      %v389 = vunpack.c.1.s8 %v317
      %v390 = vunpack.c.1.s8 %v318
      %v391 = vunpack.c.1.s8 %v319
      %v392 = vunpack.c.1.s8 %v320
      %v393 = vunpack.c.1.s8 %v321
      %v394 = vunpack.c.1.s8 %v322
      %v395 = vunpack.c.1.s8 %v323
      %v396 = vunpack.c.1.s8 %v324
      %v397 = vunpack.c.2.s8 %v317
      %v398 = vunpack.c.2.s8 %v318
      %v399 = vunpack.c.2.s8 %v319
      %v400 = vunpack.c.2.s8 %v320
      %v401 = vunpack.c.2.s8 %v321
      %v402 = vunpack.c.2.s8 %v322
      %v403 = vunpack.c.2.s8 %v323
      %v404 = vunpack.c.2.s8 %v324
      %v405 = vunpack.c.3.s8 %v317
      %v406 = vunpack.c.3.s8 %v318
      %v407 = vunpack.c.3.s8 %v319
      %v408 = vunpack.c.3.s8 %v320
      %v409 = vunpack.c.3.s8 %v321
      %v410 = vunpack.c.3.s8 %v322
      %v411 = vunpack.c.3.s8 %v323
      %v412 = vunpack.c.3.s8 %v324
      %v413 = vunpack.c.0.s8 %v325
      %v414 = vunpack.c.0.s8 %v326
      %v415 = vunpack.c.0.s8 %v327
      %v416 = vunpack.c.0.s8 %v328
      %v417 = vunpack.c.0.s8 %v329
      %v418 = vunpack.c.0.s8 %v330
      %v419 = vunpack.c.0.s8 %v331
      %v420 = vunpack.c.0.s8 %v332
      %v421 = vunpack.c.1.s8 %v325
      %v422 = vunpack.c.1.s8 %v326
      %v423 = vunpack.c.1.s8 %v327
      %v424 = vunpack.c.1.s8 %v328
      %v425 = vunpack.c.1.s8 %v329
      %v426 = vunpack.c.1.s8 %v330
      %v427 = vunpack.c.1.s8 %v331
      %v428 = vunpack.c.1.s8 %v332
      %v429 = vunpack.c.2.s8 %v325
      %v430 = vunpack.c.2.s8 %v326
      %v431 = vunpack.c.2.s8 %v327
      %v432 = vunpack.c.2.s8 %v328
      %v433 = vunpack.c.2.s8 %v329
      %v434 = vunpack.c.2.s8 %v330
      %v435 = vunpack.c.2.s8 %v331
      %v436 = vunpack.c.2.s8 %v332
      %v437 = vunpack.c.3.s8 %v325
      %v438 = vunpack.c.3.s8 %v326
      %v439 = vunpack.c.3.s8 %v327
      %v440 = vunpack.c.3.s8 %v328
      %v441 = vunpack.c.3.s8 %v329
      %v442 = vunpack.c.3.s8 %v330
      %v443 = vunpack.c.3.s8 %v331
      %v444 = vunpack.c.3.s8 %v332
      %v445 = vunpack.c.0.s8 %v333
      %v446 = vunpack.c.0.s8 %v334
      %v447 = vunpack.c.0.s8 %v335
      %v448 = vunpack.c.0.s8 %v336
      %v449 = vunpack.c.0.s8 %v337
      %v450 = vunpack.c.0.s8 %v338
      %v451 = vunpack.c.0.s8 %v339
      %v452 = vunpack.c.0.s8 %v340
      %v453 = vunpack.c.1.s8 %v333
      %v454 = vunpack.c.1.s8 %v334
      %v455 = vunpack.c.1.s8 %v335
      %v456 = vunpack.c.1.s8 %v336
      %v457 = vunpack.c.1.s8 %v337
      %v458 = vunpack.c.1.s8 %v338
      %v459 = vunpack.c.1.s8 %v339
      %v460 = vunpack.c.1.s8 %v340
      %v461 = vunpack.c.2.s8 %v333
      %v462 = vunpack.c.2.s8 %v334
      %v463 = vunpack.c.2.s8 %v335
      %v464 = vunpack.c.2.s8 %v336
      %v465 = vunpack.c.2.s8 %v337
      %v466 = vunpack.c.2.s8 %v338
      %v467 = vunpack.c.2.s8 %v339
      %v468 = vunpack.c.2.s8 %v340
      %v469 = vunpack.c.3.s8 %v333
      %v470 = vunpack.c.3.s8 %v334
      %v471 = vunpack.c.3.s8 %v335
      %v472 = vunpack.c.3.s8 %v336
      %v473 = vunpack.c.3.s8 %v337
      %v474 = vunpack.c.3.s8 %v338
      %v475 = vunpack.c.3.s8 %v339
      %v476 = vunpack.c.3.s8 %v340
      %v477 = vunpack.c.0.s8 %v341
      %v478 = vunpack.c.0.s8 %v342
      %v479 = vunpack.c.0.s8 %v343
      %v480 = vunpack.c.0.s8 %v344
      %v481 = vunpack.c.0.s8 %v345
      %v482 = vunpack.c.0.s8 %v346
      %v483 = vunpack.c.0.s8 %v347
      %v484 = vunpack.c.0.s8 %v348
      %v485 = vunpack.c.1.s8 %v341
      %v486 = vunpack.c.1.s8 %v342
      %v487 = vunpack.c.1.s8 %v343
      %v488 = vunpack.c.1.s8 %v344
      %v489 = vunpack.c.1.s8 %v345
      %v490 = vunpack.c.1.s8 %v346
      %v491 = vunpack.c.1.s8 %v347
      %v492 = vunpack.c.1.s8 %v348
      %v493 = vunpack.c.2.s8 %v341
      %v494 = vunpack.c.2.s8 %v342
      %v495 = vunpack.c.2.s8 %v343
      %v496 = vunpack.c.2.s8 %v344
      %v497 = vunpack.c.2.s8 %v345
      %v498 = vunpack.c.2.s8 %v346
      %v499 = vunpack.c.2.s8 %v347
      %v500 = vunpack.c.2.s8 %v348
      %v501 = vunpack.c.3.s8 %v341
      %v502 = vunpack.c.3.s8 %v342
      %v503 = vunpack.c.3.s8 %v343
      %v504 = vunpack.c.3.s8 %v344
      %v505 = vunpack.c.3.s8 %v345
      %v506 = vunpack.c.3.s8 %v346
      %v507 = vunpack.c.3.s8 %v347
      %v508 = vunpack.c.3.s8 %v348
      %v509 = vunpack.c.0.s8 %v349
      %v510 = vunpack.c.0.s8 %v350
      %v511 = vunpack.c.0.s8 %v351
      %v512 = vunpack.c.0.s8 %v352
      %v513 = vunpack.c.0.s8 %v353
      %v514 = vunpack.c.0.s8 %v354
      %v515 = vunpack.c.0.s8 %v355
      %v516 = vunpack.c.0.s8 %v356
      %v517 = vunpack.c.1.s8 %v349
      %v518 = vunpack.c.1.s8 %v350
      %v519 = vunpack.c.1.s8 %v351
      %v520 = vunpack.c.1.s8 %v352
      %v521 = vunpack.c.1.s8 %v353
      %v522 = vunpack.c.1.s8 %v354
      %v523 = vunpack.c.1.s8 %v355
      %v524 = vunpack.c.1.s8 %v356
      %v525 = vunpack.c.2.s8 %v349
      %v526 = vunpack.c.2.s8 %v350
      %v527 = vunpack.c.2.s8 %v351
      %v528 = vunpack.c.2.s8 %v352
      %v529 = vunpack.c.2.s8 %v353
      %v530 = vunpack.c.2.s8 %v354
      %v531 = vunpack.c.2.s8 %v355
      %v532 = vunpack.c.2.s8 %v356
      %v533 = vunpack.c.3.s8 %v349
      %v534 = vunpack.c.3.s8 %v350
      %v535 = vunpack.c.3.s8 %v351
      %v536 = vunpack.c.3.s8 %v352
      %v537 = vunpack.c.3.s8 %v353
      %v538 = vunpack.c.3.s8 %v354
      %v539 = vunpack.c.3.s8 %v355
      %v540 = vunpack.c.3.s8 %v356
      %v541 = vunpack.c.0.s8 %v357
      %v542 = vunpack.c.0.s8 %v358
      %v543 = vunpack.c.0.s8 %v359
      %v544 = vunpack.c.0.s8 %v360
      %v545 = vunpack.c.0.s8 %v361
      %v546 = vunpack.c.0.s8 %v362
      %v547 = vunpack.c.0.s8 %v363
      %v548 = vunpack.c.0.s8 %v364
      %v549 = vunpack.c.1.s8 %v357
      %v550 = vunpack.c.1.s8 %v358
      %v551 = vunpack.c.1.s8 %v359
      %v552 = vunpack.c.1.s8 %v360
      %v553 = vunpack.c.1.s8 %v361
      %v554 = vunpack.c.1.s8 %v362
      %v555 = vunpack.c.1.s8 %v363
      %v556 = vunpack.c.1.s8 %v364
      %v557 = vunpack.c.2.s8 %v357
      %v558 = vunpack.c.2.s8 %v358
      %v559 = vunpack.c.2.s8 %v359
      %v560 = vunpack.c.2.s8 %v360
      %v561 = vunpack.c.2.s8 %v361
      %v562 = vunpack.c.2.s8 %v362
      %v563 = vunpack.c.2.s8 %v363
      %v564 = vunpack.c.2.s8 %v364
      %v565 = vunpack.c.3.s8 %v357
      %v566 = vunpack.c.3.s8 %v358
      %v567 = vunpack.c.3.s8 %v359
      %v568 = vunpack.c.3.s8 %v360
      %v569 = vunpack.c.3.s8 %v361
      %v570 = vunpack.c.3.s8 %v362
      %v571 = vunpack.c.3.s8 %v363
      %v572 = vunpack.c.3.s8 %v364
      %v573 = vunpack.c.0.s8 %v365
      %v574 = vunpack.c.0.s8 %v366
      %v575 = vunpack.c.0.s8 %v367
      %v576 = vunpack.c.0.s8 %v368
      %v577 = vunpack.c.0.s8 %v369
      %v578 = vunpack.c.0.s8 %v370
      %v579 = vunpack.c.0.s8 %v371
      %v580 = vunpack.c.0.s8 %v372
      %v581 = vunpack.c.1.s8 %v365
      %v582 = vunpack.c.1.s8 %v366
      %v583 = vunpack.c.1.s8 %v367
      %v584 = vunpack.c.1.s8 %v368
      %v585 = vunpack.c.1.s8 %v369
      %v586 = vunpack.c.1.s8 %v370
      %v587 = vunpack.c.1.s8 %v371
      %v588 = vunpack.c.1.s8 %v372
      %v589 = vunpack.c.2.s8 %v365
      %v590 = vunpack.c.2.s8 %v366
      %v591 = vunpack.c.2.s8 %v367
      %v592 = vunpack.c.2.s8 %v368
      %v593 = vunpack.c.2.s8 %v369
      %v594 = vunpack.c.2.s8 %v370
      %v595 = vunpack.c.2.s8 %v371
      %v596 = vunpack.c.2.s8 %v372
      %v597 = vunpack.c.3.s8 %v365
      %v598 = vunpack.c.3.s8 %v366
      %v599 = vunpack.c.3.s8 %v367
      %v600 = vunpack.c.3.s8 %v368
      %v601 = vunpack.c.3.s8 %v369
      %v602 = vunpack.c.3.s8 %v370
      %v603 = vunpack.c.3.s8 %v371
      %v604 = vunpack.c.3.s8 %v372
      %v605 = vunpack.c.0.s8 %v373
      %v606 = vunpack.c.0.s8 %v374
      %v607 = vunpack.c.0.s8 %v375
      %v608 = vunpack.c.0.s8 %v376
      %v609 = vunpack.c.0.s8 %v377
      %v610 = vunpack.c.0.s8 %v378
      %v611 = vunpack.c.0.s8 %v379
      %v612 = vunpack.c.0.s8 %v380
      %v613 = vunpack.c.1.s8 %v373
      %v614 = vunpack.c.1.s8 %v374
      %v615 = vunpack.c.1.s8 %v375
      %v616 = vunpack.c.1.s8 %v376
      %v617 = vunpack.c.1.s8 %v377
      %v618 = vunpack.c.1.s8 %v378
      %v619 = vunpack.c.1.s8 %v379
      %v620 = vunpack.c.1.s8 %v380
      %v621 = vunpack.c.2.s8 %v373
      %v622 = vunpack.c.2.s8 %v374
      %v623 = vunpack.c.2.s8 %v375
      %v624 = vunpack.c.2.s8 %v376
      %v625 = vunpack.c.2.s8 %v377
      %v626 = vunpack.c.2.s8 %v378
      %v627 = vunpack.c.2.s8 %v379
      %v628 = vunpack.c.2.s8 %v380
      %v629 = vunpack.c.3.s8 %v373
      %v630 = vunpack.c.3.s8 %v374
      %v631 = vunpack.c.3.s8 %v375
      %v632 = vunpack.c.3.s8 %v376
      %v633 = vunpack.c.3.s8 %v377
      %v634 = vunpack.c.3.s8 %v378
      %v635 = vunpack.c.3.s8 %v379
      %v636 = vunpack.c.3.s8 %v380
      %v637 = vcvt.s32.f32 %v381
      %v638 = vcvt.s32.f32 %v382
      %v639 = vcvt.s32.f32 %v383
      %v640 = vcvt.s32.f32 %v384
      %v641 = vcvt.s32.f32 %v385
      %v642 = vcvt.s32.f32 %v386
      %v643 = vcvt.s32.f32 %v387
      %v644 = vcvt.s32.f32 %v388
      %v645 = vcvt.s32.f32 %v389
      %v646 = vcvt.s32.f32 %v390
      %v647 = vcvt.s32.f32 %v391
      %v648 = vcvt.s32.f32 %v392
      %v649 = vcvt.s32.f32 %v393
      %v650 = vcvt.s32.f32 %v394
      %v651 = vcvt.s32.f32 %v395
      %v652 = vcvt.s32.f32 %v396
      %v653 = vcvt.s32.f32 %v397
      %v654 = vcvt.s32.f32 %v398
      %v655 = vcvt.s32.f32 %v399
      %v656 = vcvt.s32.f32 %v400
      %v657 = vcvt.s32.f32 %v401
      %v658 = vcvt.s32.f32 %v402
      %v659 = vcvt.s32.f32 %v403
      %v660 = vcvt.s32.f32 %v404
      %v661 = vcvt.s32.f32 %v405
      %v662 = vcvt.s32.f32 %v406
      %v663 = vcvt.s32.f32 %v407
      %v664 = vcvt.s32.f32 %v408
      %v665 = vcvt.s32.f32 %v409
      %v666 = vcvt.s32.f32 %v410
      %v667 = vcvt.s32.f32 %v411
      %v668 = vcvt.s32.f32 %v412
      %v669 = vcvt.s32.f32 %v413
      %v670 = vcvt.s32.f32 %v414
      %v671 = vcvt.s32.f32 %v415
      %v672 = vcvt.s32.f32 %v416
      %v673 = vcvt.s32.f32 %v417
      %v674 = vcvt.s32.f32 %v418
      %v675 = vcvt.s32.f32 %v419
      %v676 = vcvt.s32.f32 %v420
      %v677 = vcvt.s32.f32 %v421
      %v678 = vcvt.s32.f32 %v422
      %v679 = vcvt.s32.f32 %v423
      %v680 = vcvt.s32.f32 %v424
      %v681 = vcvt.s32.f32 %v425
      %v682 = vcvt.s32.f32 %v426
      %v683 = vcvt.s32.f32 %v427
      %v684 = vcvt.s32.f32 %v428
      %v685 = vcvt.s32.f32 %v429
      %v686 = vcvt.s32.f32 %v430
      %v687 = vcvt.s32.f32 %v431
      %v688 = vcvt.s32.f32 %v432
      %v689 = vcvt.s32.f32 %v433
      %v690 = vcvt.s32.f32 %v434
      %v691 = vcvt.s32.f32 %v435
      %v692 = vcvt.s32.f32 %v436
      %v693 = vcvt.s32.f32 %v437
      %v694 = vcvt.s32.f32 %v438
      %v695 = vcvt.s32.f32 %v439
      %v696 = vcvt.s32.f32 %v440
      %v697 = vcvt.s32.f32 %v441
      %v698 = vcvt.s32.f32 %v442
      %v699 = vcvt.s32.f32 %v443
      %v700 = vcvt.s32.f32 %v444
      %v701 = vcvt.s32.f32 %v445
      %v702 = vcvt.s32.f32 %v446
      %v703 = vcvt.s32.f32 %v447
      %v704 = vcvt.s32.f32 %v448
      %v705 = vcvt.s32.f32 %v449
      %v706 = vcvt.s32.f32 %v450
      %v707 = vcvt.s32.f32 %v451
      %v708 = vcvt.s32.f32 %v452
      %v709 = vcvt.s32.f32 %v453
      %v710 = vcvt.s32.f32 %v454
      %v711 = vcvt.s32.f32 %v455
      %v712 = vcvt.s32.f32 %v456
      %v713 = vcvt.s32.f32 %v457
      %v714 = vcvt.s32.f32 %v458
      %v715 = vcvt.s32.f32 %v459
      %v716 = vcvt.s32.f32 %v460
      %v717 = vcvt.s32.f32 %v461
      %v718 = vcvt.s32.f32 %v462
      %v719 = vcvt.s32.f32 %v463
      %v720 = vcvt.s32.f32 %v464
      %v721 = vcvt.s32.f32 %v465
      %v722 = vcvt.s32.f32 %v466
      %v723 = vcvt.s32.f32 %v467
      %v724 = vcvt.s32.f32 %v468
      %v725 = vcvt.s32.f32 %v469
      %v726 = vcvt.s32.f32 %v470
      %v727 = vcvt.s32.f32 %v471
      %v728 = vcvt.s32.f32 %v472
      %v729 = vcvt.s32.f32 %v473
      %v730 = vcvt.s32.f32 %v474
      %v731 = vcvt.s32.f32 %v475
      %v732 = vcvt.s32.f32 %v476
      %v733 = vcvt.s32.f32 %v477
      %v734 = vcvt.s32.f32 %v478
      %v735 = vcvt.s32.f32 %v479
      %v736 = vcvt.s32.f32 %v480
      %v737 = vcvt.s32.f32 %v481
      %v738 = vcvt.s32.f32 %v482
      %v739 = vcvt.s32.f32 %v483
      %v740 = vcvt.s32.f32 %v484
      %v741 = vcvt.s32.f32 %v485
      %v742 = vcvt.s32.f32 %v486
      %v743 = vcvt.s32.f32 %v487
      %v744 = vcvt.s32.f32 %v488
      %v745 = vcvt.s32.f32 %v489
      %v746 = vcvt.s32.f32 %v490
      %v747 = vcvt.s32.f32 %v491
      %v748 = vcvt.s32.f32 %v492
      %v749 = vcvt.s32.f32 %v493
      %v750 = vcvt.s32.f32 %v494
      %v751 = vcvt.s32.f32 %v495
      %v752 = vcvt.s32.f32 %v496
      %v753 = vcvt.s32.f32 %v497
      %v754 = vcvt.s32.f32 %v498
      %v755 = vcvt.s32.f32 %v499
      %v756 = vcvt.s32.f32 %v500
      %v757 = vcvt.s32.f32 %v501
      %v758 = vcvt.s32.f32 %v502
      %v759 = vcvt.s32.f32 %v503
      %v760 = vcvt.s32.f32 %v504
      %v761 = vcvt.s32.f32 %v505
      %v762 = vcvt.s32.f32 %v506
      %v763 = vcvt.s32.f32 %v507
      %v764 = vcvt.s32.f32 %v508
      %v765 = vcvt.s32.f32 %v509
      %v766 = vcvt.s32.f32 %v510
      %v767 = vcvt.s32.f32 %v511
      %v768 = vcvt.s32.f32 %v512
      %v769 = vcvt.s32.f32 %v513
      %v770 = vcvt.s32.f32 %v514
      %v771 = vcvt.s32.f32 %v515
      %v772 = vcvt.s32.f32 %v516
      %v773 = vcvt.s32.f32 %v517
      %v774 = vcvt.s32.f32 %v518
      %v775 = vcvt.s32.f32 %v519
      %v776 = vcvt.s32.f32 %v520
      %v777 = vcvt.s32.f32 %v521
      %v778 = vcvt.s32.f32 %v522
      %v779 = vcvt.s32.f32 %v523
      %v780 = vcvt.s32.f32 %v524
      %v781 = vcvt.s32.f32 %v525
      %v782 = vcvt.s32.f32 %v526
      %v783 = vcvt.s32.f32 %v527
      %v784 = vcvt.s32.f32 %v528
      %v785 = vcvt.s32.f32 %v529
      %v786 = vcvt.s32.f32 %v530
      %v787 = vcvt.s32.f32 %v531
      %v788 = vcvt.s32.f32 %v532
      %v789 = vcvt.s32.f32 %v533
      %v790 = vcvt.s32.f32 %v534
      %v791 = vcvt.s32.f32 %v535
      %v792 = vcvt.s32.f32 %v536
      %v793 = vcvt.s32.f32 %v537
      %v794 = vcvt.s32.f32 %v538
      %v795 = vcvt.s32.f32 %v539
      %v796 = vcvt.s32.f32 %v540
      %v797 = vcvt.s32.f32 %v541
      %v798 = vcvt.s32.f32 %v542
      %v799 = vcvt.s32.f32 %v543
      %v800 = vcvt.s32.f32 %v544
      %v801 = vcvt.s32.f32 %v545
      %v802 = vcvt.s32.f32 %v546
      %v803 = vcvt.s32.f32 %v547
      %v804 = vcvt.s32.f32 %v548
      %v805 = vcvt.s32.f32 %v549
      %v806 = vcvt.s32.f32 %v550
      %v807 = vcvt.s32.f32 %v551
      %v808 = vcvt.s32.f32 %v552
      %v809 = vcvt.s32.f32 %v553
      %v810 = vcvt.s32.f32 %v554
      %v811 = vcvt.s32.f32 %v555
      %v812 = vcvt.s32.f32 %v556
      %v813 = vcvt.s32.f32 %v557
      %v814 = vcvt.s32.f32 %v558
      %v815 = vcvt.s32.f32 %v559
      %v816 = vcvt.s32.f32 %v560
      %v817 = vcvt.s32.f32 %v561
      %v818 = vcvt.s32.f32 %v562
      %v819 = vcvt.s32.f32 %v563
      %v820 = vcvt.s32.f32 %v564
      %v821 = vcvt.s32.f32 %v565
      %v822 = vcvt.s32.f32 %v566
      %v823 = vcvt.s32.f32 %v567
      %v824 = vcvt.s32.f32 %v568
      %v825 = vcvt.s32.f32 %v569
      %v826 = vcvt.s32.f32 %v570
      %v827 = vcvt.s32.f32 %v571
      %v828 = vcvt.s32.f32 %v572
      %v829 = vcvt.s32.f32 %v573
      %v830 = vcvt.s32.f32 %v574
      %v831 = vcvt.s32.f32 %v575
      %v832 = vcvt.s32.f32 %v576
      %v833 = vcvt.s32.f32 %v577
      %v834 = vcvt.s32.f32 %v578
      %v835 = vcvt.s32.f32 %v579
      %v836 = vcvt.s32.f32 %v580
      %v837 = vcvt.s32.f32 %v581
      %v838 = vcvt.s32.f32 %v582
      %v839 = vcvt.s32.f32 %v583
      %v840 = vcvt.s32.f32 %v584
      %v841 = vcvt.s32.f32 %v585
      %v842 = vcvt.s32.f32 %v586
      %v843 = vcvt.s32.f32 %v587
      %v844 = vcvt.s32.f32 %v588
      %v845 = vcvt.s32.f32 %v589
      %v846 = vcvt.s32.f32 %v590
      %v847 = vcvt.s32.f32 %v591
      %v848 = vcvt.s32.f32 %v592
      %v849 = vcvt.s32.f32 %v593
      %v850 = vcvt.s32.f32 %v594
      %v851 = vcvt.s32.f32 %v595
      %v852 = vcvt.s32.f32 %v596
      %v853 = vcvt.s32.f32 %v597
      %v854 = vcvt.s32.f32 %v598
      %v855 = vcvt.s32.f32 %v599
      %v856 = vcvt.s32.f32 %v600
      %v857 = vcvt.s32.f32 %v601
      %v858 = vcvt.s32.f32 %v602
      %v859 = vcvt.s32.f32 %v603
      %v860 = vcvt.s32.f32 %v604
      %v861 = vcvt.s32.f32 %v605
      %v862 = vcvt.s32.f32 %v606
      %v863 = vcvt.s32.f32 %v607
      %v864 = vcvt.s32.f32 %v608
      %v865 = vcvt.s32.f32 %v609
      %v866 = vcvt.s32.f32 %v610
      %v867 = vcvt.s32.f32 %v611
      %v868 = vcvt.s32.f32 %v612
      %v869 = vcvt.s32.f32 %v613
      %v870 = vcvt.s32.f32 %v614
      %v871 = vcvt.s32.f32 %v615
      %v872 = vcvt.s32.f32 %v616
      %v873 = vcvt.s32.f32 %v617
      %v874 = vcvt.s32.f32 %v618
      %v875 = vcvt.s32.f32 %v619
      %v876 = vcvt.s32.f32 %v620
      %v877 = vcvt.s32.f32 %v621
      %v878 = vcvt.s32.f32 %v622
      %v879 = vcvt.s32.f32 %v623
      %v880 = vcvt.s32.f32 %v624
      %v881 = vcvt.s32.f32 %v625
      %v882 = vcvt.s32.f32 %v626
      %v883 = vcvt.s32.f32 %v627
      %v884 = vcvt.s32.f32 %v628
      %v885 = vcvt.s32.f32 %v629
      %v886 = vcvt.s32.f32 %v630
      %v887 = vcvt.s32.f32 %v631
      %v888 = vcvt.s32.f32 %v632
      %v889 = vcvt.s32.f32 %v633
      %v890 = vcvt.s32.f32 %v634
      %v891 = vcvt.s32.f32 %v635
      %v892 = vcvt.s32.f32 %v636
      %v893 = vpack.c.bf16 %v645, %v637
      %v894 = vpack.c.bf16 %v646, %v638
      %v895 = vpack.c.bf16 %v647, %v639
      %v896 = vpack.c.bf16 %v648, %v640
      %v897 = vpack.c.bf16 %v649, %v641
      %v898 = vpack.c.bf16 %v650, %v642
      %v899 = vpack.c.bf16 %v651, %v643
      %v900 = vpack.c.bf16 %v652, %v644
      %v901 = vpack.c.bf16 %v661, %v653
      %v902 = vpack.c.bf16 %v662, %v654
      %v903 = vpack.c.bf16 %v663, %v655
      %v904 = vpack.c.bf16 %v664, %v656
      %v905 = vpack.c.bf16 %v665, %v657
      %v906 = vpack.c.bf16 %v666, %v658
      %v907 = vpack.c.bf16 %v667, %v659
      %v908 = vpack.c.bf16 %v668, %v660
      %v909 = vpack.c.bf16 %v677, %v669
      %v910 = vpack.c.bf16 %v678, %v670
      %v911 = vpack.c.bf16 %v679, %v671
      %v912 = vpack.c.bf16 %v680, %v672
      %v913 = vpack.c.bf16 %v681, %v673
      %v914 = vpack.c.bf16 %v682, %v674
      %v915 = vpack.c.bf16 %v683, %v675
      %v916 = vpack.c.bf16 %v684, %v676
      %v917 = vpack.c.bf16 %v693, %v685
      %v918 = vpack.c.bf16 %v694, %v686
      %v919 = vpack.c.bf16 %v695, %v687
      %v920 = vpack.c.bf16 %v696, %v688
      %v921 = vpack.c.bf16 %v697, %v689
      %v922 = vpack.c.bf16 %v698, %v690
      %v923 = vpack.c.bf16 %v699, %v691
      %v924 = vpack.c.bf16 %v700, %v692
      %v925 = vpack.c.bf16 %v709, %v701
      %v926 = vpack.c.bf16 %v710, %v702
      %v927 = vpack.c.bf16 %v711, %v703
      %v928 = vpack.c.bf16 %v712, %v704
      %v929 = vpack.c.bf16 %v713, %v705
      %v930 = vpack.c.bf16 %v714, %v706
      %v931 = vpack.c.bf16 %v715, %v707
      %v932 = vpack.c.bf16 %v716, %v708
      %v933 = vpack.c.bf16 %v725, %v717
      %v934 = vpack.c.bf16 %v726, %v718
      %v935 = vpack.c.bf16 %v727, %v719
      %v936 = vpack.c.bf16 %v728, %v720
      %v937 = vpack.c.bf16 %v729, %v721
      %v938 = vpack.c.bf16 %v730, %v722
      %v939 = vpack.c.bf16 %v731, %v723
      %v940 = vpack.c.bf16 %v732, %v724
      %v941 = vpack.c.bf16 %v741, %v733
      %v942 = vpack.c.bf16 %v742, %v734
      %v943 = vpack.c.bf16 %v743, %v735
      %v944 = vpack.c.bf16 %v744, %v736
      %v945 = vpack.c.bf16 %v745, %v737
      %v946 = vpack.c.bf16 %v746, %v738
      %v947 = vpack.c.bf16 %v747, %v739
      %v948 = vpack.c.bf16 %v748, %v740
      %v949 = vpack.c.bf16 %v757, %v749
      %v950 = vpack.c.bf16 %v758, %v750
      %v951 = vpack.c.bf16 %v759, %v751
      %v952 = vpack.c.bf16 %v760, %v752
      %v953 = vpack.c.bf16 %v761, %v753
      %v954 = vpack.c.bf16 %v762, %v754
      %v955 = vpack.c.bf16 %v763, %v755
      %v956 = vpack.c.bf16 %v764, %v756
      %v957 = vpack.c.bf16 %v773, %v765
      %v958 = vpack.c.bf16 %v774, %v766
      %v959 = vpack.c.bf16 %v775, %v767
      %v960 = vpack.c.bf16 %v776, %v768
      %v961 = vpack.c.bf16 %v777, %v769
      %v962 = vpack.c.bf16 %v778, %v770
      %v963 = vpack.c.bf16 %v779, %v771
      %v964 = vpack.c.bf16 %v780, %v772
      %v965 = vpack.c.bf16 %v789, %v781
      %v966 = vpack.c.bf16 %v790, %v782
      %v967 = vpack.c.bf16 %v791, %v783
      %v968 = vpack.c.bf16 %v792, %v784
      %v969 = vpack.c.bf16 %v793, %v785
      %v970 = vpack.c.bf16 %v794, %v786
      %v971 = vpack.c.bf16 %v795, %v787
      %v972 = vpack.c.bf16 %v796, %v788
      %v973 = vpack.c.bf16 %v805, %v797
      %v974 = vpack.c.bf16 %v806, %v798
      %v975 = vpack.c.bf16 %v807, %v799
      %v976 = vpack.c.bf16 %v808, %v800
      %v977 = vpack.c.bf16 %v809, %v801
      %v978 = vpack.c.bf16 %v810, %v802
      %v979 = vpack.c.bf16 %v811, %v803
      %v980 = vpack.c.bf16 %v812, %v804
      %v981 = vpack.c.bf16 %v821, %v813
      %v982 = vpack.c.bf16 %v822, %v814
      %v983 = vpack.c.bf16 %v823, %v815
      %v984 = vpack.c.bf16 %v824, %v816
      %v985 = vpack.c.bf16 %v825, %v817
      %v986 = vpack.c.bf16 %v826, %v818
      %v987 = vpack.c.bf16 %v827, %v819
      %v988 = vpack.c.bf16 %v828, %v820
      %v989 = vpack.c.bf16 %v837, %v829
      %v990 = vpack.c.bf16 %v838, %v830
      %v991 = vpack.c.bf16 %v839, %v831
      %v992 = vpack.c.bf16 %v840, %v832
      %v993 = vpack.c.bf16 %v841, %v833
      %v994 = vpack.c.bf16 %v842, %v834
      %v995 = vpack.c.bf16 %v843, %v835
      %v996 = vpack.c.bf16 %v844, %v836
      %v997 = vpack.c.bf16 %v853, %v845
      %v998 = vpack.c.bf16 %v854, %v846
      %v999 = vpack.c.bf16 %v855, %v847
      %v1000 = vpack.c.bf16 %v856, %v848
      %v1001 = vpack.c.bf16 %v857, %v849
      %v1002 = vpack.c.bf16 %v858, %v850
      %v1003 = vpack.c.bf16 %v859, %v851
      %v1004 = vpack.c.bf16 %v860, %v852
      %v1005 = vpack.c.bf16 %v869, %v861
      %v1006 = vpack.c.bf16 %v870, %v862
      %v1007 = vpack.c.bf16 %v871, %v863
      %v1008 = vpack.c.bf16 %v872, %v864
      %v1009 = vpack.c.bf16 %v873, %v865
      %v1010 = vpack.c.bf16 %v874, %v866
      %v1011 = vpack.c.bf16 %v875, %v867
      %v1012 = vpack.c.bf16 %v876, %v868
      %v1013 = vpack.c.bf16 %v885, %v877
      %v1014 = vpack.c.bf16 %v886, %v878
      %v1015 = vpack.c.bf16 %v887, %v879
      %v1016 = vpack.c.bf16 %v888, %v880
      %v1017 = vpack.c.bf16 %v889, %v881
      %v1018 = vpack.c.bf16 %v890, %v882
      %v1019 = vpack.c.bf16 %v891, %v883
      %v1020 = vpack.c.bf16 %v892, %v884
      %v1021 = vld [vmem:[%s1] sm:$0xf]
      %v1022 = vld [vmem:[%s1 + $0x4] sm:$0xf]
      %v1023 = vld [vmem:[%s1 + $0x8] sm:$0xf]
      %v1024 = vld [vmem:[%s1 + $0xc] sm:$0xf]
      %v1025 = vld [vmem:[%s1 + $0x10] sm:$0xf]
      %v1026 = vld [vmem:[%s1 + $0x14] sm:$0xf]
      %v1027 = vld [vmem:[%s1 + $0x18] sm:$0xf]
      %v1028 = vld [vmem:[%s1 + $0x1c] sm:$0xf]
      %v1029 = vld [vmem:[%s1 + $0x20] sm:$0xf]
      %v1030 = vld [vmem:[%s1 + $0x24] sm:$0xf]
      %v1031 = vld [vmem:[%s1 + $0x28] sm:$0xf]
      %v1032 = vld [vmem:[%s1 + $0x2c] sm:$0xf]
      %v1033 = vld [vmem:[%s1 + $0x30] sm:$0xf]
      %v1034 = vld [vmem:[%s1 + $0x34] sm:$0xf]
      %v1035 = vld [vmem:[%s1 + $0x38] sm:$0xf]
      %v1036 = vld [vmem:[%s1 + $0x3c] sm:$0xf]
      %v1037 = vld [vmem:[%s1 + $0x40] sm:$0xf]
      %v1038 = vld [vmem:[%s1 + $0x44] sm:$0xf]
      %v1039 = vld [vmem:[%s1 + $0x48] sm:$0xf]
      %v1040 = vld [vmem:[%s1 + $0x4c] sm:$0xf]
      %v1041 = vld [vmem:[%s1 + $0x50] sm:$0xf]
      %v1042 = vld [vmem:[%s1 + $0x54] sm:$0xf]
      %v1043 = vld [vmem:[%s1 + $0x58] sm:$0xf]
      %v1044 = vld [vmem:[%s1 + $0x5c] sm:$0xf]
      %v1045 = vld [vmem:[%s1 + $0x60] sm:$0xf]
      %v1046 = vld [vmem:[%s1 + $0x64] sm:$0xf]
      %v1047 = vld [vmem:[%s1 + $0x68] sm:$0xf]
      %v1048 = vld [vmem:[%s1 + $0x6c] sm:$0xf]
      %v1049 = vld [vmem:[%s1 + $0x70] sm:$0xf]
      %v1050 = vld [vmem:[%s1 + $0x74] sm:$0xf]
      %v1051 = vld [vmem:[%s1 + $0x78] sm:$0xf]
      %v1052 = vld [vmem:[%s1 + $0x7c] sm:$0xf]
      %v1053 = vld [vmem:[%s1 + $0x80] sm:$0xf]
      %v1054 = vld [vmem:[%s1 + $0x84] sm:$0xf]
      %v1055 = vld [vmem:[%s1 + $0x88] sm:$0xf]
      %v1056 = vld [vmem:[%s1 + $0x8c] sm:$0xf]
      %v1057 = vld [vmem:[%s1 + $0x90] sm:$0xf]
      %v1058 = vld [vmem:[%s1 + $0x94] sm:$0xf]
      %v1059 = vld [vmem:[%s1 + $0x98] sm:$0xf]
      %v1060 = vld [vmem:[%s1 + $0x9c] sm:$0xf]
      %v1061 = vld [vmem:[%s1 + $0xa0] sm:$0xf]
      %v1062 = vld [vmem:[%s1 + $0xa4] sm:$0xf]
      %v1063 = vld [vmem:[%s1 + $0xa8] sm:$0xf]
      %v1064 = vld [vmem:[%s1 + $0xac] sm:$0xf]
      %v1065 = vld [vmem:[%s1 + $0xb0] sm:$0xf]
      %v1066 = vld [vmem:[%s1 + $0xb4] sm:$0xf]
      %v1067 = vld [vmem:[%s1 + $0xb8] sm:$0xf]
      %v1068 = vld [vmem:[%s1 + $0xbc] sm:$0xf]
      %v1069 = vld [vmem:[%s1 + $0xc0] sm:$0xf]
      %v1070 = vld [vmem:[%s1 + $0xc4] sm:$0xf]
      %v1071 = vld [vmem:[%s1 + $0xc8] sm:$0xf]
      %v1072 = vld [vmem:[%s1 + $0xcc] sm:$0xf]
      %v1073 = vld [vmem:[%s1 + $0xd0] sm:$0xf]
      %v1074 = vld [vmem:[%s1 + $0xd4] sm:$0xf]
      %v1075 = vld [vmem:[%s1 + $0xd8] sm:$0xf]
      %v1076 = vld [vmem:[%s1 + $0xdc] sm:$0xf]
      %v1077 = vld [vmem:[%s1 + $0xe0] sm:$0xf]
      %v1078 = vld [vmem:[%s1 + $0xe4] sm:$0xf]
      %v1079 = vld [vmem:[%s1 + $0xe8] sm:$0xf]
      %v1080 = vld [vmem:[%s1 + $0xec] sm:$0xf]
      %v1081 = vld [vmem:[%s1 + $0xf0] sm:$0xf]
      %v1082 = vld [vmem:[%s1 + $0xf4] sm:$0xf]
      %v1083 = vld [vmem:[%s1 + $0xf8] sm:$0xf]
      %v1084 = vld [vmem:[%s1 + $0xfc] sm:$0xf]
      %v1085 = vld [vmem:[%s1 + $0x100] sm:$0xf]
      %v1086 = vld [vmem:[%s1 + $0x104] sm:$0xf]
      %v1087 = vld [vmem:[%s1 + $0x108] sm:$0xf]
      %v1088 = vld [vmem:[%s1 + $0x10c] sm:$0xf]
      %v1089 = vld [vmem:[%s1 + $0x110] sm:$0xf]
      %v1090 = vld [vmem:[%s1 + $0x114] sm:$0xf]
      %v1091 = vld [vmem:[%s1 + $0x118] sm:$0xf]
      %v1092 = vld [vmem:[%s1 + $0x11c] sm:$0xf]
      %v1093 = vld [vmem:[%s1 + $0x120] sm:$0xf]
      %v1094 = vld [vmem:[%s1 + $0x124] sm:$0xf]
      %v1095 = vld [vmem:[%s1 + $0x128] sm:$0xf]
      %v1096 = vld [vmem:[%s1 + $0x12c] sm:$0xf]
      %v1097 = vld [vmem:[%s1 + $0x130] sm:$0xf]
      %v1098 = vld [vmem:[%s1 + $0x134] sm:$0xf]
      %v1099 = vld [vmem:[%s1 + $0x138] sm:$0xf]
      %v1100 = vld [vmem:[%s1 + $0x13c] sm:$0xf]
      %v1101 = vld [vmem:[%s1 + $0x140] sm:$0xf]
      %v1102 = vld [vmem:[%s1 + $0x144] sm:$0xf]
      %v1103 = vld [vmem:[%s1 + $0x148] sm:$0xf]
      %v1104 = vld [vmem:[%s1 + $0x14c] sm:$0xf]
      %v1105 = vld [vmem:[%s1 + $0x150] sm:$0xf]
      %v1106 = vld [vmem:[%s1 + $0x154] sm:$0xf]
      %v1107 = vld [vmem:[%s1 + $0x158] sm:$0xf]
      %v1108 = vld [vmem:[%s1 + $0x15c] sm:$0xf]
      %v1109 = vld [vmem:[%s1 + $0x160] sm:$0xf]
      %v1110 = vld [vmem:[%s1 + $0x164] sm:$0xf]
      %v1111 = vld [vmem:[%s1 + $0x168] sm:$0xf]
      %v1112 = vld [vmem:[%s1 + $0x16c] sm:$0xf]
      %v1113 = vld [vmem:[%s1 + $0x170] sm:$0xf]
      %v1114 = vld [vmem:[%s1 + $0x174] sm:$0xf]
      %v1115 = vld [vmem:[%s1 + $0x178] sm:$0xf]
      %v1116 = vld [vmem:[%s1 + $0x17c] sm:$0xf]
      %v1117 = vld [vmem:[%s1 + $0x180] sm:$0xf]
      %v1118 = vld [vmem:[%s1 + $0x184] sm:$0xf]
      %v1119 = vld [vmem:[%s1 + $0x188] sm:$0xf]
      %v1120 = vld [vmem:[%s1 + $0x18c] sm:$0xf]
      %v1121 = vld [vmem:[%s1 + $0x190] sm:$0xf]
      %v1122 = vld [vmem:[%s1 + $0x194] sm:$0xf]
      %v1123 = vld [vmem:[%s1 + $0x198] sm:$0xf]
      %v1124 = vld [vmem:[%s1 + $0x19c] sm:$0xf]
      %v1125 = vld [vmem:[%s1 + $0x1a0] sm:$0xf]
      %v1126 = vld [vmem:[%s1 + $0x1a4] sm:$0xf]
      %v1127 = vld [vmem:[%s1 + $0x1a8] sm:$0xf]
      %v1128 = vld [vmem:[%s1 + $0x1ac] sm:$0xf]
      %v1129 = vld [vmem:[%s1 + $0x1b0] sm:$0xf]
      %v1130 = vld [vmem:[%s1 + $0x1b4] sm:$0xf]
      %v1131 = vld [vmem:[%s1 + $0x1b8] sm:$0xf]
      %v1132 = vld [vmem:[%s1 + $0x1bc] sm:$0xf]
      %v1133 = vld [vmem:[%s1 + $0x1c0] sm:$0xf]
      %v1134 = vld [vmem:[%s1 + $0x1c4] sm:$0xf]
      %v1135 = vld [vmem:[%s1 + $0x1c8] sm:$0xf]
      %v1136 = vld [vmem:[%s1 + $0x1cc] sm:$0xf]
      %v1137 = vld [vmem:[%s1 + $0x1d0] sm:$0xf]
      %v1138 = vld [vmem:[%s1 + $0x1d4] sm:$0xf]
      %v1139 = vld [vmem:[%s1 + $0x1d8] sm:$0xf]
      %v1140 = vld [vmem:[%s1 + $0x1dc] sm:$0xf]
      %v1141 = vld [vmem:[%s1 + $0x1e0] sm:$0xf]
      %v1142 = vld [vmem:[%s1 + $0x1e4] sm:$0xf]
      %v1143 = vld [vmem:[%s1 + $0x1e8] sm:$0xf]
      %v1144 = vld [vmem:[%s1 + $0x1ec] sm:$0xf]
      %v1145 = vld [vmem:[%s1 + $0x1f0] sm:$0xf]
      %v1146 = vld [vmem:[%s1 + $0x1f4] sm:$0xf]
      %v1147 = vld [vmem:[%s1 + $0x1f8] sm:$0xf]
      %v1148 = vld [vmem:[%s1 + $0x1fc] sm:$0xf]
      %v1277 = vunpack.c.l.b16 %v1021
      %v1278 = vunpack.c.l.b16 %v1022
      %v1279 = vunpack.c.l.b16 %v1023
      %v1280 = vunpack.c.l.b16 %v1024
      %v1281 = vunpack.c.l.b16 %v1025
      %v1282 = vunpack.c.l.b16 %v1026
      %v1283 = vunpack.c.l.b16 %v1027
      %v1284 = vunpack.c.l.b16 %v1028
      %v1285 = vunpack.c.l.b16 %v1029
      %v1286 = vunpack.c.l.b16 %v1030
      %v1287 = vunpack.c.l.b16 %v1031
      %v1288 = vunpack.c.l.b16 %v1032
      %v1289 = vunpack.c.l.b16 %v1033
      %v1290 = vunpack.c.l.b16 %v1034
      %v1291 = vunpack.c.l.b16 %v1035
      %v1292 = vunpack.c.l.b16 %v1036
      %v1293 = vunpack.c.l.b16 %v1037
      %v1294 = vunpack.c.l.b16 %v1038
      %v1295 = vunpack.c.l.b16 %v1039
      %v1296 = vunpack.c.l.b16 %v1040
      %v1297 = vunpack.c.l.b16 %v1041
      %v1298 = vunpack.c.l.b16 %v1042
      %v1299 = vunpack.c.l.b16 %v1043
      %v1300 = vunpack.c.l.b16 %v1044
      %v1301 = vunpack.c.l.b16 %v1045
      %v1302 = vunpack.c.l.b16 %v1046
      %v1303 = vunpack.c.l.b16 %v1047
      %v1304 = vunpack.c.l.b16 %v1048
      %v1305 = vunpack.c.l.b16 %v1049
      %v1306 = vunpack.c.l.b16 %v1050
      %v1307 = vunpack.c.l.b16 %v1051
      %v1308 = vunpack.c.l.b16 %v1052
      %v1309 = vunpack.c.l.b16 %v1053
      %v1310 = vunpack.c.l.b16 %v1054
      %v1311 = vunpack.c.l.b16 %v1055
      %v1312 = vunpack.c.l.b16 %v1056
      %v1313 = vunpack.c.l.b16 %v1057
      %v1314 = vunpack.c.l.b16 %v1058
      %v1315 = vunpack.c.l.b16 %v1059
      %v1316 = vunpack.c.l.b16 %v1060
      %v1317 = vunpack.c.l.b16 %v1061
      %v1318 = vunpack.c.l.b16 %v1062
      %v1319 = vunpack.c.l.b16 %v1063
      %v1320 = vunpack.c.l.b16 %v1064
      %v1321 = vunpack.c.l.b16 %v1065
      %v1322 = vunpack.c.l.b16 %v1066
      %v1323 = vunpack.c.l.b16 %v1067
      %v1324 = vunpack.c.l.b16 %v1068
      %v1325 = vunpack.c.l.b16 %v1069
      %v1326 = vunpack.c.l.b16 %v1070
      %v1327 = vunpack.c.l.b16 %v1071
      %v1328 = vunpack.c.l.b16 %v1072
      %v1329 = vunpack.c.l.b16 %v1073
      %v1330 = vunpack.c.l.b16 %v1074
      %v1331 = vunpack.c.l.b16 %v1075
      %v1332 = vunpack.c.l.b16 %v1076
      %v1333 = vunpack.c.l.b16 %v1077
      %v1334 = vunpack.c.l.b16 %v1078
      %v1335 = vunpack.c.l.b16 %v1079
      %v1336 = vunpack.c.l.b16 %v1080
      %v1337 = vunpack.c.l.b16 %v1081
      %v1338 = vunpack.c.l.b16 %v1082
      %v1339 = vunpack.c.l.b16 %v1083
      %v1340 = vunpack.c.l.b16 %v1084
      %v1341 = vunpack.c.l.b16 %v1085
      %v1342 = vunpack.c.l.b16 %v1086
      %v1343 = vunpack.c.l.b16 %v1087
      %v1344 = vunpack.c.l.b16 %v1088
      %v1345 = vunpack.c.l.b16 %v1089
      %v1346 = vunpack.c.l.b16 %v1090
      %v1347 = vunpack.c.l.b16 %v1091
      %v1348 = vunpack.c.l.b16 %v1092
      %v1349 = vunpack.c.l.b16 %v1093
      %v1350 = vunpack.c.l.b16 %v1094
      %v1351 = vunpack.c.l.b16 %v1095
      %v1352 = vunpack.c.l.b16 %v1096
      %v1353 = vunpack.c.l.b16 %v1097
      %v1354 = vunpack.c.l.b16 %v1098
      %v1355 = vunpack.c.l.b16 %v1099
      %v1356 = vunpack.c.l.b16 %v1100
      %v1357 = vunpack.c.l.b16 %v1101
      %v1358 = vunpack.c.l.b16 %v1102
      %v1359 = vunpack.c.l.b16 %v1103
      %v1360 = vunpack.c.l.b16 %v1104
      %v1361 = vunpack.c.l.b16 %v1105
      %v1362 = vunpack.c.l.b16 %v1106
      %v1363 = vunpack.c.l.b16 %v1107
      %v1364 = vunpack.c.l.b16 %v1108
      %v1365 = vunpack.c.l.b16 %v1109
      %v1366 = vunpack.c.l.b16 %v1110
      %v1367 = vunpack.c.l.b16 %v1111
      %v1368 = vunpack.c.l.b16 %v1112
      %v1369 = vunpack.c.l.b16 %v1113
      %v1370 = vunpack.c.l.b16 %v1114
      %v1371 = vunpack.c.l.b16 %v1115
      %v1372 = vunpack.c.l.b16 %v1116
      %v1373 = vunpack.c.l.b16 %v1117
      %v1374 = vunpack.c.l.b16 %v1118
      %v1375 = vunpack.c.l.b16 %v1119
      %v1376 = vunpack.c.l.b16 %v1120
      %v1377 = vunpack.c.l.b16 %v1121
      %v1378 = vunpack.c.l.b16 %v1122
      %v1379 = vunpack.c.l.b16 %v1123
      %v1380 = vunpack.c.l.b16 %v1124
      %v1381 = vunpack.c.l.b16 %v1125
      %v1382 = vunpack.c.l.b16 %v1126
      %v1383 = vunpack.c.l.b16 %v1127
      %v1384 = vunpack.c.l.b16 %v1128
      %v1385 = vunpack.c.l.b16 %v1129
      %v1386 = vunpack.c.l.b16 %v1130
      %v1387 = vunpack.c.l.b16 %v1131
      %v1388 = vunpack.c.l.b16 %v1132
      %v1389 = vunpack.c.l.b16 %v1133
      %v1390 = vunpack.c.l.b16 %v1134
      %v1391 = vunpack.c.l.b16 %v1135
      %v1392 = vunpack.c.l.b16 %v1136
      %v1393 = vunpack.c.l.b16 %v1137
      %v1394 = vunpack.c.l.b16 %v1138
      %v1395 = vunpack.c.l.b16 %v1139
      %v1396 = vunpack.c.l.b16 %v1140
      %v1397 = vunpack.c.l.b16 %v1141
      %v1398 = vunpack.c.l.b16 %v1142
      %v1399 = vunpack.c.l.b16 %v1143
      %v1400 = vunpack.c.l.b16 %v1144
      %v1401 = vunpack.c.l.b16 %v1145
      %v1402 = vunpack.c.l.b16 %v1146
      %v1403 = vunpack.c.l.b16 %v1147
      %v1404 = vunpack.c.l.b16 %v1148
      %v1405 = vpack.c.b16 %v1278, %v1277
      %v1406 = vpack.c.b16 %v1280, %v1279
      %v1407 = vpack.c.b16 %v1282, %v1281
      %v1408 = vpack.c.b16 %v1284, %v1283
      %v1409 = vpack.c.b16 %v1286, %v1285
      %v1410 = vpack.c.b16 %v1288, %v1287
      %v1411 = vpack.c.b16 %v1290, %v1289
      %v1412 = vpack.c.b16 %v1292, %v1291
      %v1413 = vpack.c.b16 %v1294, %v1293
      %v1414 = vpack.c.b16 %v1296, %v1295
      %v1415 = vpack.c.b16 %v1298, %v1297
      %v1416 = vpack.c.b16 %v1300, %v1299
      %v1417 = vpack.c.b16 %v1302, %v1301
      %v1418 = vpack.c.b16 %v1304, %v1303
      %v1419 = vpack.c.b16 %v1306, %v1305
      %v1420 = vpack.c.b16 %v1308, %v1307
      %v1421 = vpack.c.b16 %v1310, %v1309
      %v1422 = vpack.c.b16 %v1312, %v1311
      %v1423 = vpack.c.b16 %v1314, %v1313
      %v1424 = vpack.c.b16 %v1316, %v1315
      %v1425 = vpack.c.b16 %v1318, %v1317
      %v1426 = vpack.c.b16 %v1320, %v1319
      %v1427 = vpack.c.b16 %v1322, %v1321
      %v1428 = vpack.c.b16 %v1324, %v1323
      %v1429 = vpack.c.b16 %v1326, %v1325
      %v1430 = vpack.c.b16 %v1328, %v1327
      %v1431 = vpack.c.b16 %v1330, %v1329
      %v1432 = vpack.c.b16 %v1332, %v1331
      %v1433 = vpack.c.b16 %v1334, %v1333
      %v1434 = vpack.c.b16 %v1336, %v1335
      %v1435 = vpack.c.b16 %v1338, %v1337
      %v1436 = vpack.c.b16 %v1340, %v1339
      %v1437 = vpack.c.b16 %v1342, %v1341
      %v1438 = vpack.c.b16 %v1344, %v1343
      %v1439 = vpack.c.b16 %v1346, %v1345
      %v1440 = vpack.c.b16 %v1348, %v1347
      %v1441 = vpack.c.b16 %v1350, %v1349
      %v1442 = vpack.c.b16 %v1352, %v1351
      %v1443 = vpack.c.b16 %v1354, %v1353
      %v1444 = vpack.c.b16 %v1356, %v1355
      %v1445 = vpack.c.b16 %v1358, %v1357
      %v1446 = vpack.c.b16 %v1360, %v1359
      %v1447 = vpack.c.b16 %v1362, %v1361
      %v1448 = vpack.c.b16 %v1364, %v1363
      %v1449 = vpack.c.b16 %v1366, %v1365
      %v1450 = vpack.c.b16 %v1368, %v1367
      %v1451 = vpack.c.b16 %v1370, %v1369
      %v1452 = vpack.c.b16 %v1372, %v1371
      %v1453 = vpack.c.b16 %v1374, %v1373
      %v1454 = vpack.c.b16 %v1376, %v1375
      %v1455 = vpack.c.b16 %v1378, %v1377
      %v1456 = vpack.c.b16 %v1380, %v1379
      %v1457 = vpack.c.b16 %v1382, %v1381
      %v1458 = vpack.c.b16 %v1384, %v1383
      %v1459 = vpack.c.b16 %v1386, %v1385
      %v1460 = vpack.c.b16 %v1388, %v1387
      %v1461 = vpack.c.b16 %v1390, %v1389
      %v1462 = vpack.c.b16 %v1392, %v1391
      %v1463 = vpack.c.b16 %v1394, %v1393
      %v1464 = vpack.c.b16 %v1396, %v1395
      %v1465 = vpack.c.b16 %v1398, %v1397
      %v1466 = vpack.c.b16 %v1400, %v1399
      %v1467 = vpack.c.b16 %v1402, %v1401
      %v1468 = vpack.c.b16 %v1404, %v1403
      %1533 = vmatpush.bf16.msra.mxu0 %v1412
      %1534 = vmatpush.bf16.msra.mxu0 %v1411
      %1535 = vmatpush.bf16.msra.mxu0 %v1410
      %1536 = vmatpush.bf16.msra.mxu0 %v1409
      %1537 = vmatpush.bf16.msra.mxu0 %v1408
      %1538 = vmatpush.bf16.msra.mxu0 %v1407
      %1539 = vmatpush.bf16.msra.mxu0 %v1406
      %1540 = vmatpush.bf16.msra.mxu0 %v1405
      %1541 = vmatmul.bf16.gmra.mxu0 %v893
      %v1542 = vpop.f32.mrf.mxu0
      %v1543 = vadd.f32 0.0, %v1542
      %v1544 = vpop.f32.mrf.mxu0
      %v1545 = vadd.f32 0.0, %v1544
      %1546 = vmatmul.bf16.gmra.mxu0 %v901
      %v1547 = vpop.f32.mrf.mxu0
      %v1548 = vadd.f32 0.0, %v1547
      %v1549 = vpop.f32.mrf.mxu0
      %v1550 = vadd.f32 0.0, %v1549
      %1551 = vmatmul.bf16.gmra.mxu0 %v909
      %v1552 = vpop.f32.mrf.mxu0
      %v1553 = vadd.f32 0.0, %v1552
      %v1554 = vpop.f32.mrf.mxu0
      %v1555 = vadd.f32 0.0, %v1554
      %1556 = vmatmul.bf16.gmra.mxu0 %v917
      %v1557 = vpop.f32.mrf.mxu0
      %v1558 = vadd.f32 0.0, %v1557
      %v1559 = vpop.f32.mrf.mxu0
      %v1560 = vadd.f32 0.0, %v1559
      %1561 = vmatmul.bf16.gmra.mxu0 %v925
      %v1562 = vpop.f32.mrf.mxu0
      %v1563 = vadd.f32 0.0, %v1562
      %v1564 = vpop.f32.mrf.mxu0
      %v1565 = vadd.f32 0.0, %v1564
      %1566 = vmatmul.bf16.gmra.mxu0 %v933
      %v1567 = vpop.f32.mrf.mxu0
      %v1568 = vadd.f32 0.0, %v1567
      %v1569 = vpop.f32.mrf.mxu0
      %v1570 = vadd.f32 0.0, %v1569
      %1571 = vmatmul.bf16.gmra.mxu0 %v941
      %v1572 = vpop.f32.mrf.mxu0
      %v1573 = vadd.f32 0.0, %v1572
      %v1574 = vpop.f32.mrf.mxu0
      %v1575 = vadd.f32 0.0, %v1574
      %1576 = vmatmul.bf16.gmra.mxu0 %v949
      %v1577 = vpop.f32.mrf.mxu0
      %v1578 = vadd.f32 0.0, %v1577
      %v1579 = vpop.f32.mrf.mxu0
      %v1580 = vadd.f32 0.0, %v1579
      %1581 = vmatmul.bf16.gmra.mxu0 %v957
      %v1582 = vpop.f32.mrf.mxu0
      %v1583 = vadd.f32 0.0, %v1582
      %v1584 = vpop.f32.mrf.mxu0
      %v1585 = vadd.f32 0.0, %v1584
      %1586 = vmatmul.bf16.gmra.mxu0 %v965
      %v1587 = vpop.f32.mrf.mxu0
      %v1588 = vadd.f32 0.0, %v1587
      %v1589 = vpop.f32.mrf.mxu0
      %v1590 = vadd.f32 0.0, %v1589
      %1591 = vmatmul.bf16.gmra.mxu0 %v973
      %v1592 = vpop.f32.mrf.mxu0
      %v1593 = vadd.f32 0.0, %v1592
      %v1594 = vpop.f32.mrf.mxu0
      %v1595 = vadd.f32 0.0, %v1594
      %1596 = vmatmul.bf16.gmra.mxu0 %v981
      %v1597 = vpop.f32.mrf.mxu0
      %v1598 = vadd.f32 0.0, %v1597
      %v1599 = vpop.f32.mrf.mxu0
      %v1600 = vadd.f32 0.0, %v1599
      %1601 = vmatmul.bf16.gmra.mxu0 %v989
      %v1602 = vpop.f32.mrf.mxu0
      %v1603 = vadd.f32 0.0, %v1602
      %v1604 = vpop.f32.mrf.mxu0
      %v1605 = vadd.f32 0.0, %v1604
      %1606 = vmatmul.bf16.gmra.mxu0 %v997
      %v1607 = vpop.f32.mrf.mxu0
      %v1608 = vadd.f32 0.0, %v1607
      %v1609 = vpop.f32.mrf.mxu0
      %v1610 = vadd.f32 0.0, %v1609
      %1611 = vmatmul.bf16.gmra.mxu0 %v1005
      %v1612 = vpop.f32.mrf.mxu0
      %v1613 = vadd.f32 0.0, %v1612
      %v1614 = vpop.f32.mrf.mxu0
      %v1615 = vadd.f32 0.0, %v1614
      %1616 = vmatmul.bf16.gmra.mxu0 %v1013
      %v1617 = vpop.f32.mrf.mxu0
      %v1618 = vadd.f32 0.0, %v1617
      %v1619 = vpop.f32.mrf.mxu0
      %v1620 = vadd.f32 0.0, %v1619
      %1621 = vdwg.mxu0
      %1622 = vmatpush.bf16.msra.mxu0 %v1420
      %1623 = vmatpush.bf16.msra.mxu0 %v1419
      %1624 = vmatpush.bf16.msra.mxu0 %v1418
      %1625 = vmatpush.bf16.msra.mxu0 %v1417
      %1626 = vmatpush.bf16.msra.mxu0 %v1416
      %1627 = vmatpush.bf16.msra.mxu0 %v1415
      %1628 = vmatpush.bf16.msra.mxu0 %v1414
      %1629 = vmatpush.bf16.msra.mxu0 %v1413
      %1630 = vmatmul.bf16.gmra.mxu0 %v894
      %v1631 = vpop.f32.mrf.mxu0
      %v1632 = vadd.f32 %v1543, %v1631
      %v1633 = vpop.f32.mrf.mxu0
      %v1634 = vadd.f32 %v1545, %v1633
      %1635 = vmatmul.bf16.gmra.mxu0 %v902
      %v1636 = vpop.f32.mrf.mxu0
      %v1637 = vadd.f32 %v1548, %v1636
      %v1638 = vpop.f32.mrf.mxu0
      %v1639 = vadd.f32 %v1550, %v1638
      %1640 = vmatmul.bf16.gmra.mxu0 %v910
      %v1641 = vpop.f32.mrf.mxu0
      %v1642 = vadd.f32 %v1553, %v1641
      %v1643 = vpop.f32.mrf.mxu0
      %v1644 = vadd.f32 %v1555, %v1643
      %1645 = vmatmul.bf16.gmra.mxu0 %v918
      %v1646 = vpop.f32.mrf.mxu0
      %v1647 = vadd.f32 %v1558, %v1646
      %v1648 = vpop.f32.mrf.mxu0
      %v1649 = vadd.f32 %v1560, %v1648
      %1650 = vmatmul.bf16.gmra.mxu0 %v926
      %v1651 = vpop.f32.mrf.mxu0
      %v1652 = vadd.f32 %v1563, %v1651
      %v1653 = vpop.f32.mrf.mxu0
      %v1654 = vadd.f32 %v1565, %v1653
      %1655 = vmatmul.bf16.gmra.mxu0 %v934
      %v1656 = vpop.f32.mrf.mxu0
      %v1657 = vadd.f32 %v1568, %v1656
      %v1658 = vpop.f32.mrf.mxu0
      %v1659 = vadd.f32 %v1570, %v1658
      %1660 = vmatmul.bf16.gmra.mxu0 %v942
      %v1661 = vpop.f32.mrf.mxu0
      %v1662 = vadd.f32 %v1573, %v1661
      %v1663 = vpop.f32.mrf.mxu0
      %v1664 = vadd.f32 %v1575, %v1663
      %1665 = vmatmul.bf16.gmra.mxu0 %v950
      %v1666 = vpop.f32.mrf.mxu0
      %v1667 = vadd.f32 %v1578, %v1666
      %v1668 = vpop.f32.mrf.mxu0
      %v1669 = vadd.f32 %v1580, %v1668
      %1670 = vmatmul.bf16.gmra.mxu0 %v958
      %v1671 = vpop.f32.mrf.mxu0
      %v1672 = vadd.f32 %v1583, %v1671
      %v1673 = vpop.f32.mrf.mxu0
      %v1674 = vadd.f32 %v1585, %v1673
      %1675 = vmatmul.bf16.gmra.mxu0 %v966
      %v1676 = vpop.f32.mrf.mxu0
      %v1677 = vadd.f32 %v1588, %v1676
      %v1678 = vpop.f32.mrf.mxu0
      %v1679 = vadd.f32 %v1590, %v1678
      %1680 = vmatmul.bf16.gmra.mxu0 %v974
      %v1681 = vpop.f32.mrf.mxu0
      %v1682 = vadd.f32 %v1593, %v1681
      %v1683 = vpop.f32.mrf.mxu0
      %v1684 = vadd.f32 %v1595, %v1683
      %1685 = vmatmul.bf16.gmra.mxu0 %v982
      %v1686 = vpop.f32.mrf.mxu0
      %v1687 = vadd.f32 %v1598, %v1686
      %v1688 = vpop.f32.mrf.mxu0
      %v1689 = vadd.f32 %v1600, %v1688
      %1690 = vmatmul.bf16.gmra.mxu0 %v990
      %v1691 = vpop.f32.mrf.mxu0
      %v1692 = vadd.f32 %v1603, %v1691
      %v1693 = vpop.f32.mrf.mxu0
      %v1694 = vadd.f32 %v1605, %v1693
      %1695 = vmatmul.bf16.gmra.mxu0 %v998
      %v1696 = vpop.f32.mrf.mxu0
      %v1697 = vadd.f32 %v1608, %v1696
      %v1698 = vpop.f32.mrf.mxu0
      %v1699 = vadd.f32 %v1610, %v1698
      %1700 = vmatmul.bf16.gmra.mxu0 %v1006
      %v1701 = vpop.f32.mrf.mxu0
      %v1702 = vadd.f32 %v1613, %v1701
      %v1703 = vpop.f32.mrf.mxu0
      %v1704 = vadd.f32 %v1615, %v1703
      %1705 = vmatmul.bf16.gmra.mxu0 %v1014
      %v1706 = vpop.f32.mrf.mxu0
      %v1707 = vadd.f32 %v1618, %v1706
      %v1708 = vpop.f32.mrf.mxu0
      %v1709 = vadd.f32 %v1620, %v1708
      %1710 = vdwg.mxu0
      %1711 = vmatpush.bf16.msra.mxu0 %v1428
      %1712 = vmatpush.bf16.msra.mxu0 %v1427
      %1713 = vmatpush.bf16.msra.mxu0 %v1426
      %1714 = vmatpush.bf16.msra.mxu0 %v1425
      %1715 = vmatpush.bf16.msra.mxu0 %v1424
      %1716 = vmatpush.bf16.msra.mxu0 %v1423
      %1717 = vmatpush.bf16.msra.mxu0 %v1422
      %1718 = vmatpush.bf16.msra.mxu0 %v1421
      %1719 = vmatmul.bf16.gmra.mxu0 %v895
      %v1720 = vpop.f32.mrf.mxu0
      %v1721 = vadd.f32 %v1632, %v1720
      %v1722 = vpop.f32.mrf.mxu0
      %v1723 = vadd.f32 %v1634, %v1722
      %1724 = vmatmul.bf16.gmra.mxu0 %v903
      %v1725 = vpop.f32.mrf.mxu0
      %v1726 = vadd.f32 %v1637, %v1725
      %v1727 = vpop.f32.mrf.mxu0
      %v1728 = vadd.f32 %v1639, %v1727
      %1729 = vmatmul.bf16.gmra.mxu0 %v911
      %v1730 = vpop.f32.mrf.mxu0
      %v1731 = vadd.f32 %v1642, %v1730
      %v1732 = vpop.f32.mrf.mxu0
      %v1733 = vadd.f32 %v1644, %v1732
      %1734 = vmatmul.bf16.gmra.mxu0 %v919
      %v1735 = vpop.f32.mrf.mxu0
      %v1736 = vadd.f32 %v1647, %v1735
      %v1737 = vpop.f32.mrf.mxu0
      %v1738 = vadd.f32 %v1649, %v1737
      %1739 = vmatmul.bf16.gmra.mxu0 %v927
      %v1740 = vpop.f32.mrf.mxu0
      %v1741 = vadd.f32 %v1652, %v1740
      %v1742 = vpop.f32.mrf.mxu0
      %v1743 = vadd.f32 %v1654, %v1742
      %1744 = vmatmul.bf16.gmra.mxu0 %v935
      %v1745 = vpop.f32.mrf.mxu0
      %v1746 = vadd.f32 %v1657, %v1745
      %v1747 = vpop.f32.mrf.mxu0
      %v1748 = vadd.f32 %v1659, %v1747
      %1749 = vmatmul.bf16.gmra.mxu0 %v943
      %v1750 = vpop.f32.mrf.mxu0
      %v1751 = vadd.f32 %v1662, %v1750
      %v1752 = vpop.f32.mrf.mxu0
      %v1753 = vadd.f32 %v1664, %v1752
      %1754 = vmatmul.bf16.gmra.mxu0 %v951
      %v1755 = vpop.f32.mrf.mxu0
      %v1756 = vadd.f32 %v1667, %v1755
      %v1757 = vpop.f32.mrf.mxu0
      %v1758 = vadd.f32 %v1669, %v1757
      %1759 = vmatmul.bf16.gmra.mxu0 %v959
      %v1760 = vpop.f32.mrf.mxu0
      %v1761 = vadd.f32 %v1672, %v1760
      %v1762 = vpop.f32.mrf.mxu0
      %v1763 = vadd.f32 %v1674, %v1762
      %1764 = vmatmul.bf16.gmra.mxu0 %v967
      %v1765 = vpop.f32.mrf.mxu0
      %v1766 = vadd.f32 %v1677, %v1765
      %v1767 = vpop.f32.mrf.mxu0
      %v1768 = vadd.f32 %v1679, %v1767
      %1769 = vmatmul.bf16.gmra.mxu0 %v975
      %v1770 = vpop.f32.mrf.mxu0
      %v1771 = vadd.f32 %v1682, %v1770
      %v1772 = vpop.f32.mrf.mxu0
      %v1773 = vadd.f32 %v1684, %v1772
      %1774 = vmatmul.bf16.gmra.mxu0 %v983
      %v1775 = vpop.f32.mrf.mxu0
      %v1776 = vadd.f32 %v1687, %v1775
      %v1777 = vpop.f32.mrf.mxu0
      %v1778 = vadd.f32 %v1689, %v1777
      %1779 = vmatmul.bf16.gmra.mxu0 %v991
      %v1780 = vpop.f32.mrf.mxu0
      %v1781 = vadd.f32 %v1692, %v1780
      %v1782 = vpop.f32.mrf.mxu0
      %v1783 = vadd.f32 %v1694, %v1782
      %1784 = vmatmul.bf16.gmra.mxu0 %v999
      %v1785 = vpop.f32.mrf.mxu0
      %v1786 = vadd.f32 %v1697, %v1785
      %v1787 = vpop.f32.mrf.mxu0
      %v1788 = vadd.f32 %v1699, %v1787
      %1789 = vmatmul.bf16.gmra.mxu0 %v1007
      %v1790 = vpop.f32.mrf.mxu0
      %v1791 = vadd.f32 %v1702, %v1790
      %v1792 = vpop.f32.mrf.mxu0
      %v1793 = vadd.f32 %v1704, %v1792
      %1794 = vmatmul.bf16.gmra.mxu0 %v1015
      %v1795 = vpop.f32.mrf.mxu0
      %v1796 = vadd.f32 %v1707, %v1795
      %v1797 = vpop.f32.mrf.mxu0
      %v1798 = vadd.f32 %v1709, %v1797
      %1799 = vdwg.mxu0
      %1800 = vmatpush.bf16.msra.mxu0 %v1436
      %1801 = vmatpush.bf16.msra.mxu0 %v1435
      %1802 = vmatpush.bf16.msra.mxu0 %v1434
      %1803 = vmatpush.bf16.msra.mxu0 %v1433
      %1804 = vmatpush.bf16.msra.mxu0 %v1432
      %1805 = vmatpush.bf16.msra.mxu0 %v1431
      %1806 = vmatpush.bf16.msra.mxu0 %v1430
      %1807 = vmatpush.bf16.msra.mxu0 %v1429
      %1808 = vmatmul.bf16.gmra.mxu0 %v896
      %v1809 = vpop.f32.mrf.mxu0
      %v1810 = vadd.f32 %v1721, %v1809
      %v1811 = vpop.f32.mrf.mxu0
      %v1812 = vadd.f32 %v1723, %v1811
      %1813 = vmatmul.bf16.gmra.mxu0 %v904
      %v1814 = vpop.f32.mrf.mxu0
      %v1815 = vadd.f32 %v1726, %v1814
      %v1816 = vpop.f32.mrf.mxu0
      %v1817 = vadd.f32 %v1728, %v1816
      %1818 = vmatmul.bf16.gmra.mxu0 %v912
      %v1819 = vpop.f32.mrf.mxu0
      %v1820 = vadd.f32 %v1731, %v1819
      %v1821 = vpop.f32.mrf.mxu0
      %v1822 = vadd.f32 %v1733, %v1821
      %1823 = vmatmul.bf16.gmra.mxu0 %v920
      %v1824 = vpop.f32.mrf.mxu0
      %v1825 = vadd.f32 %v1736, %v1824
      %v1826 = vpop.f32.mrf.mxu0
      %v1827 = vadd.f32 %v1738, %v1826
      %1828 = vmatmul.bf16.gmra.mxu0 %v928
      %v1829 = vpop.f32.mrf.mxu0
      %v1830 = vadd.f32 %v1741, %v1829
      %v1831 = vpop.f32.mrf.mxu0
      %v1832 = vadd.f32 %v1743, %v1831
      %1833 = vmatmul.bf16.gmra.mxu0 %v936
      %v1834 = vpop.f32.mrf.mxu0
      %v1835 = vadd.f32 %v1746, %v1834
      %v1836 = vpop.f32.mrf.mxu0
      %v1837 = vadd.f32 %v1748, %v1836
      %1838 = vmatmul.bf16.gmra.mxu0 %v944
      %v1839 = vpop.f32.mrf.mxu0
      %v1840 = vadd.f32 %v1751, %v1839
      %v1841 = vpop.f32.mrf.mxu0
      %v1842 = vadd.f32 %v1753, %v1841
      %1843 = vmatmul.bf16.gmra.mxu0 %v952
      %v1844 = vpop.f32.mrf.mxu0
      %v1845 = vadd.f32 %v1756, %v1844
      %v1846 = vpop.f32.mrf.mxu0
      %v1847 = vadd.f32 %v1758, %v1846
      %1848 = vmatmul.bf16.gmra.mxu0 %v960
      %v1849 = vpop.f32.mrf.mxu0
      %v1850 = vadd.f32 %v1761, %v1849
      %v1851 = vpop.f32.mrf.mxu0
      %v1852 = vadd.f32 %v1763, %v1851
      %1853 = vmatmul.bf16.gmra.mxu0 %v968
      %v1854 = vpop.f32.mrf.mxu0
      %v1855 = vadd.f32 %v1766, %v1854
      %v1856 = vpop.f32.mrf.mxu0
      %v1857 = vadd.f32 %v1768, %v1856
      %1858 = vmatmul.bf16.gmra.mxu0 %v976
      %v1859 = vpop.f32.mrf.mxu0
      %v1860 = vadd.f32 %v1771, %v1859
      %v1861 = vpop.f32.mrf.mxu0
      %v1862 = vadd.f32 %v1773, %v1861
      %1863 = vmatmul.bf16.gmra.mxu0 %v984
      %v1864 = vpop.f32.mrf.mxu0
      %v1865 = vadd.f32 %v1776, %v1864
      %v1866 = vpop.f32.mrf.mxu0
      %v1867 = vadd.f32 %v1778, %v1866
      %1868 = vmatmul.bf16.gmra.mxu0 %v992
      %v1869 = vpop.f32.mrf.mxu0
      %v1870 = vadd.f32 %v1781, %v1869
      %v1871 = vpop.f32.mrf.mxu0
      %v1872 = vadd.f32 %v1783, %v1871
      %1873 = vmatmul.bf16.gmra.mxu0 %v1000
      %v1874 = vpop.f32.mrf.mxu0
      %v1875 = vadd.f32 %v1786, %v1874
      %v1876 = vpop.f32.mrf.mxu0
      %v1877 = vadd.f32 %v1788, %v1876
      %1878 = vmatmul.bf16.gmra.mxu0 %v1008
      %v1879 = vpop.f32.mrf.mxu0
      %v1880 = vadd.f32 %v1791, %v1879
      %v1881 = vpop.f32.mrf.mxu0
      %v1882 = vadd.f32 %v1793, %v1881
      %1883 = vmatmul.bf16.gmra.mxu0 %v1016
      %v1884 = vpop.f32.mrf.mxu0
      %v1885 = vadd.f32 %v1796, %v1884
      %v1886 = vpop.f32.mrf.mxu0
      %v1887 = vadd.f32 %v1798, %v1886
      %1888 = vdwg.mxu0
      %1889 = vmatpush.bf16.msra.mxu0 %v1444
      %1890 = vmatpush.bf16.msra.mxu0 %v1443
      %1891 = vmatpush.bf16.msra.mxu0 %v1442
      %1892 = vmatpush.bf16.msra.mxu0 %v1441
      %1893 = vmatpush.bf16.msra.mxu0 %v1440
      %1894 = vmatpush.bf16.msra.mxu0 %v1439
      %1895 = vmatpush.bf16.msra.mxu0 %v1438
      %1896 = vmatpush.bf16.msra.mxu0 %v1437
      %1897 = vmatmul.bf16.gmra.mxu0 %v897
      %v1898 = vpop.f32.mrf.mxu0
      %v1899 = vadd.f32 %v1810, %v1898
      %v1900 = vpop.f32.mrf.mxu0
      %v1901 = vadd.f32 %v1812, %v1900
      %1902 = vmatmul.bf16.gmra.mxu0 %v905
      %v1903 = vpop.f32.mrf.mxu0
      %v1904 = vadd.f32 %v1815, %v1903
      %v1905 = vpop.f32.mrf.mxu0
      %v1906 = vadd.f32 %v1817, %v1905
      %1907 = vmatmul.bf16.gmra.mxu0 %v913
      %v1908 = vpop.f32.mrf.mxu0
      %v1909 = vadd.f32 %v1820, %v1908
      %v1910 = vpop.f32.mrf.mxu0
      %v1911 = vadd.f32 %v1822, %v1910
      %1912 = vmatmul.bf16.gmra.mxu0 %v921
      %v1913 = vpop.f32.mrf.mxu0
      %v1914 = vadd.f32 %v1825, %v1913
      %v1915 = vpop.f32.mrf.mxu0
      %v1916 = vadd.f32 %v1827, %v1915
      %1917 = vmatmul.bf16.gmra.mxu0 %v929
      %v1918 = vpop.f32.mrf.mxu0
      %v1919 = vadd.f32 %v1830, %v1918
      %v1920 = vpop.f32.mrf.mxu0
      %v1921 = vadd.f32 %v1832, %v1920
      %1922 = vmatmul.bf16.gmra.mxu0 %v937
      %v1923 = vpop.f32.mrf.mxu0
      %v1924 = vadd.f32 %v1835, %v1923
      %v1925 = vpop.f32.mrf.mxu0
      %v1926 = vadd.f32 %v1837, %v1925
      %1927 = vmatmul.bf16.gmra.mxu0 %v945
      %v1928 = vpop.f32.mrf.mxu0
      %v1929 = vadd.f32 %v1840, %v1928
      %v1930 = vpop.f32.mrf.mxu0
      %v1931 = vadd.f32 %v1842, %v1930
      %1932 = vmatmul.bf16.gmra.mxu0 %v953
      %v1933 = vpop.f32.mrf.mxu0
      %v1934 = vadd.f32 %v1845, %v1933
      %v1935 = vpop.f32.mrf.mxu0
      %v1936 = vadd.f32 %v1847, %v1935
      %1937 = vmatmul.bf16.gmra.mxu0 %v961
      %v1938 = vpop.f32.mrf.mxu0
      %v1939 = vadd.f32 %v1850, %v1938
      %v1940 = vpop.f32.mrf.mxu0
      %v1941 = vadd.f32 %v1852, %v1940
      %1942 = vmatmul.bf16.gmra.mxu0 %v969
      %v1943 = vpop.f32.mrf.mxu0
      %v1944 = vadd.f32 %v1855, %v1943
      %v1945 = vpop.f32.mrf.mxu0
      %v1946 = vadd.f32 %v1857, %v1945
      %1947 = vmatmul.bf16.gmra.mxu0 %v977
      %v1948 = vpop.f32.mrf.mxu0
      %v1949 = vadd.f32 %v1860, %v1948
      %v1950 = vpop.f32.mrf.mxu0
      %v1951 = vadd.f32 %v1862, %v1950
      %1952 = vmatmul.bf16.gmra.mxu0 %v985
      %v1953 = vpop.f32.mrf.mxu0
      %v1954 = vadd.f32 %v1865, %v1953
      %v1955 = vpop.f32.mrf.mxu0
      %v1956 = vadd.f32 %v1867, %v1955
      %1957 = vmatmul.bf16.gmra.mxu0 %v993
      %v1958 = vpop.f32.mrf.mxu0
      %v1959 = vadd.f32 %v1870, %v1958
      %v1960 = vpop.f32.mrf.mxu0
      %v1961 = vadd.f32 %v1872, %v1960
      %1962 = vmatmul.bf16.gmra.mxu0 %v1001
      %v1963 = vpop.f32.mrf.mxu0
      %v1964 = vadd.f32 %v1875, %v1963
      %v1965 = vpop.f32.mrf.mxu0
      %v1966 = vadd.f32 %v1877, %v1965
      %1967 = vmatmul.bf16.gmra.mxu0 %v1009
      %v1968 = vpop.f32.mrf.mxu0
      %v1969 = vadd.f32 %v1880, %v1968
      %v1970 = vpop.f32.mrf.mxu0
      %v1971 = vadd.f32 %v1882, %v1970
      %1972 = vmatmul.bf16.gmra.mxu0 %v1017
      %v1973 = vpop.f32.mrf.mxu0
      %v1974 = vadd.f32 %v1885, %v1973
      %v1975 = vpop.f32.mrf.mxu0
      %v1976 = vadd.f32 %v1887, %v1975
      %1977 = vdwg.mxu0
      %1978 = vmatpush.bf16.msra.mxu0 %v1452
      %1979 = vmatpush.bf16.msra.mxu0 %v1451
      %1980 = vmatpush.bf16.msra.mxu0 %v1450
      %1981 = vmatpush.bf16.msra.mxu0 %v1449
      %1982 = vmatpush.bf16.msra.mxu0 %v1448
      %1983 = vmatpush.bf16.msra.mxu0 %v1447
      %1984 = vmatpush.bf16.msra.mxu0 %v1446
      %1985 = vmatpush.bf16.msra.mxu0 %v1445
      %1986 = vmatmul.bf16.gmra.mxu0 %v898
      %v1987 = vpop.f32.mrf.mxu0
      %v1988 = vadd.f32 %v1899, %v1987
      %v1989 = vpop.f32.mrf.mxu0
      %v1990 = vadd.f32 %v1901, %v1989
      %1991 = vmatmul.bf16.gmra.mxu0 %v906
      %v1992 = vpop.f32.mrf.mxu0
      %v1993 = vadd.f32 %v1904, %v1992
      %v1994 = vpop.f32.mrf.mxu0
      %v1995 = vadd.f32 %v1906, %v1994
      %1996 = vmatmul.bf16.gmra.mxu0 %v914
      %v1997 = vpop.f32.mrf.mxu0
      %v1998 = vadd.f32 %v1909, %v1997
      %v1999 = vpop.f32.mrf.mxu0
      %v2000 = vadd.f32 %v1911, %v1999
      %2001 = vmatmul.bf16.gmra.mxu0 %v922
      %v2002 = vpop.f32.mrf.mxu0
      %v2003 = vadd.f32 %v1914, %v2002
      %v2004 = vpop.f32.mrf.mxu0
      %v2005 = vadd.f32 %v1916, %v2004
      %2006 = vmatmul.bf16.gmra.mxu0 %v930
      %v2007 = vpop.f32.mrf.mxu0
      %v2008 = vadd.f32 %v1919, %v2007
      %v2009 = vpop.f32.mrf.mxu0
      %v2010 = vadd.f32 %v1921, %v2009
      %2011 = vmatmul.bf16.gmra.mxu0 %v938
      %v2012 = vpop.f32.mrf.mxu0
      %v2013 = vadd.f32 %v1924, %v2012
      %v2014 = vpop.f32.mrf.mxu0
      %v2015 = vadd.f32 %v1926, %v2014
      %2016 = vmatmul.bf16.gmra.mxu0 %v946
      %v2017 = vpop.f32.mrf.mxu0
      %v2018 = vadd.f32 %v1929, %v2017
      %v2019 = vpop.f32.mrf.mxu0
      %v2020 = vadd.f32 %v1931, %v2019
      %2021 = vmatmul.bf16.gmra.mxu0 %v954
      %v2022 = vpop.f32.mrf.mxu0
      %v2023 = vadd.f32 %v1934, %v2022
      %v2024 = vpop.f32.mrf.mxu0
      %v2025 = vadd.f32 %v1936, %v2024
      %2026 = vmatmul.bf16.gmra.mxu0 %v962
      %v2027 = vpop.f32.mrf.mxu0
      %v2028 = vadd.f32 %v1939, %v2027
      %v2029 = vpop.f32.mrf.mxu0
      %v2030 = vadd.f32 %v1941, %v2029
      %2031 = vmatmul.bf16.gmra.mxu0 %v970
      %v2032 = vpop.f32.mrf.mxu0
      %v2033 = vadd.f32 %v1944, %v2032
      %v2034 = vpop.f32.mrf.mxu0
      %v2035 = vadd.f32 %v1946, %v2034
      %2036 = vmatmul.bf16.gmra.mxu0 %v978
      %v2037 = vpop.f32.mrf.mxu0
      %v2038 = vadd.f32 %v1949, %v2037
      %v2039 = vpop.f32.mrf.mxu0
      %v2040 = vadd.f32 %v1951, %v2039
      %2041 = vmatmul.bf16.gmra.mxu0 %v986
      %v2042 = vpop.f32.mrf.mxu0
      %v2043 = vadd.f32 %v1954, %v2042
      %v2044 = vpop.f32.mrf.mxu0
      %v2045 = vadd.f32 %v1956, %v2044
      %2046 = vmatmul.bf16.gmra.mxu0 %v994
      %v2047 = vpop.f32.mrf.mxu0
      %v2048 = vadd.f32 %v1959, %v2047
      %v2049 = vpop.f32.mrf.mxu0
      %v2050 = vadd.f32 %v1961, %v2049
      %2051 = vmatmul.bf16.gmra.mxu0 %v1002
      %v2052 = vpop.f32.mrf.mxu0
      %v2053 = vadd.f32 %v1964, %v2052
      %v2054 = vpop.f32.mrf.mxu0
      %v2055 = vadd.f32 %v1966, %v2054
      %2056 = vmatmul.bf16.gmra.mxu0 %v1010
      %v2057 = vpop.f32.mrf.mxu0
      %v2058 = vadd.f32 %v1969, %v2057
      %v2059 = vpop.f32.mrf.mxu0
      %v2060 = vadd.f32 %v1971, %v2059
      %2061 = vmatmul.bf16.gmra.mxu0 %v1018
      %v2062 = vpop.f32.mrf.mxu0
      %v2063 = vadd.f32 %v1974, %v2062
      %v2064 = vpop.f32.mrf.mxu0
      %v2065 = vadd.f32 %v1976, %v2064
      %2066 = vdwg.mxu0
      %2067 = vmatpush.bf16.msra.mxu0 %v1460
      %2068 = vmatpush.bf16.msra.mxu0 %v1459
      %2069 = vmatpush.bf16.msra.mxu0 %v1458
      %2070 = vmatpush.bf16.msra.mxu0 %v1457
      %2071 = vmatpush.bf16.msra.mxu0 %v1456
      %2072 = vmatpush.bf16.msra.mxu0 %v1455
      %2073 = vmatpush.bf16.msra.mxu0 %v1454
      %2074 = vmatpush.bf16.msra.mxu0 %v1453
      %2075 = vmatmul.bf16.gmra.mxu0 %v899
      %v2076 = vpop.f32.mrf.mxu0
      %v2077 = vadd.f32 %v1988, %v2076
      %v2078 = vpop.f32.mrf.mxu0
      %v2079 = vadd.f32 %v1990, %v2078
      %2080 = vmatmul.bf16.gmra.mxu0 %v907
      %v2081 = vpop.f32.mrf.mxu0
      %v2082 = vadd.f32 %v1993, %v2081
      %v2083 = vpop.f32.mrf.mxu0
      %v2084 = vadd.f32 %v1995, %v2083
      %2085 = vmatmul.bf16.gmra.mxu0 %v915
      %v2086 = vpop.f32.mrf.mxu0
      %v2087 = vadd.f32 %v1998, %v2086
      %v2088 = vpop.f32.mrf.mxu0
      %v2089 = vadd.f32 %v2000, %v2088
      %2090 = vmatmul.bf16.gmra.mxu0 %v923
      %v2091 = vpop.f32.mrf.mxu0
      %v2092 = vadd.f32 %v2003, %v2091
      %v2093 = vpop.f32.mrf.mxu0
      %v2094 = vadd.f32 %v2005, %v2093
      %2095 = vmatmul.bf16.gmra.mxu0 %v931
      %v2096 = vpop.f32.mrf.mxu0
      %v2097 = vadd.f32 %v2008, %v2096
      %v2098 = vpop.f32.mrf.mxu0
      %v2099 = vadd.f32 %v2010, %v2098
      %2100 = vmatmul.bf16.gmra.mxu0 %v939
      %v2101 = vpop.f32.mrf.mxu0
      %v2102 = vadd.f32 %v2013, %v2101
      %v2103 = vpop.f32.mrf.mxu0
      %v2104 = vadd.f32 %v2015, %v2103
      %2105 = vmatmul.bf16.gmra.mxu0 %v947
      %v2106 = vpop.f32.mrf.mxu0
      %v2107 = vadd.f32 %v2018, %v2106
      %v2108 = vpop.f32.mrf.mxu0
      %v2109 = vadd.f32 %v2020, %v2108
      %2110 = vmatmul.bf16.gmra.mxu0 %v955
      %v2111 = vpop.f32.mrf.mxu0
      %v2112 = vadd.f32 %v2023, %v2111
      %v2113 = vpop.f32.mrf.mxu0
      %v2114 = vadd.f32 %v2025, %v2113
      %2115 = vmatmul.bf16.gmra.mxu0 %v963
      %v2116 = vpop.f32.mrf.mxu0
      %v2117 = vadd.f32 %v2028, %v2116
      %v2118 = vpop.f32.mrf.mxu0
      %v2119 = vadd.f32 %v2030, %v2118
      %2120 = vmatmul.bf16.gmra.mxu0 %v971
      %v2121 = vpop.f32.mrf.mxu0
      %v2122 = vadd.f32 %v2033, %v2121
      %v2123 = vpop.f32.mrf.mxu0
      %v2124 = vadd.f32 %v2035, %v2123
      %2125 = vmatmul.bf16.gmra.mxu0 %v979
      %v2126 = vpop.f32.mrf.mxu0
      %v2127 = vadd.f32 %v2038, %v2126
      %v2128 = vpop.f32.mrf.mxu0
      %v2129 = vadd.f32 %v2040, %v2128
      %2130 = vmatmul.bf16.gmra.mxu0 %v987
      %v2131 = vpop.f32.mrf.mxu0
      %v2132 = vadd.f32 %v2043, %v2131
      %v2133 = vpop.f32.mrf.mxu0
      %v2134 = vadd.f32 %v2045, %v2133
      %2135 = vmatmul.bf16.gmra.mxu0 %v995
      %v2136 = vpop.f32.mrf.mxu0
      %v2137 = vadd.f32 %v2048, %v2136
      %v2138 = vpop.f32.mrf.mxu0
      %v2139 = vadd.f32 %v2050, %v2138
      %2140 = vmatmul.bf16.gmra.mxu0 %v1003
      %v2141 = vpop.f32.mrf.mxu0
      %v2142 = vadd.f32 %v2053, %v2141
      %v2143 = vpop.f32.mrf.mxu0
      %v2144 = vadd.f32 %v2055, %v2143
      %2145 = vmatmul.bf16.gmra.mxu0 %v1011
      %v2146 = vpop.f32.mrf.mxu0
      %v2147 = vadd.f32 %v2058, %v2146
      %v2148 = vpop.f32.mrf.mxu0
      %v2149 = vadd.f32 %v2060, %v2148
      %2150 = vmatmul.bf16.gmra.mxu0 %v1019
      %v2151 = vpop.f32.mrf.mxu0
      %v2152 = vadd.f32 %v2063, %v2151
      %v2153 = vpop.f32.mrf.mxu0
      %v2154 = vadd.f32 %v2065, %v2153
      %2155 = vdwg.mxu0
      %2156 = vmatpush.bf16.msra.mxu0 %v1468
      %2157 = vmatpush.bf16.msra.mxu0 %v1467
      %2158 = vmatpush.bf16.msra.mxu0 %v1466
      %2159 = vmatpush.bf16.msra.mxu0 %v1465
      %2160 = vmatpush.bf16.msra.mxu0 %v1464
      %2161 = vmatpush.bf16.msra.mxu0 %v1463
      %2162 = vmatpush.bf16.msra.mxu0 %v1462
      %2163 = vmatpush.bf16.msra.mxu0 %v1461
      %2164 = vmatmul.bf16.gmra.mxu0 %v900
      %v2165 = vpop.f32.mrf.mxu0
      %v2166 = vadd.f32 %v2077, %v2165
      %v2167 = vpop.f32.mrf.mxu0
      %v2168 = vadd.f32 %v2079, %v2167
      %2169 = vmatmul.bf16.gmra.mxu0 %v908
      %v2170 = vpop.f32.mrf.mxu0
      %v2171 = vadd.f32 %v2082, %v2170
      %v2172 = vpop.f32.mrf.mxu0
      %v2173 = vadd.f32 %v2084, %v2172
      %2174 = vmatmul.bf16.gmra.mxu0 %v916
      %v2175 = vpop.f32.mrf.mxu0
      %v2176 = vadd.f32 %v2087, %v2175
      %v2177 = vpop.f32.mrf.mxu0
      %v2178 = vadd.f32 %v2089, %v2177
      %2179 = vmatmul.bf16.gmra.mxu0 %v924
      %v2180 = vpop.f32.mrf.mxu0
      %v2181 = vadd.f32 %v2092, %v2180
      %v2182 = vpop.f32.mrf.mxu0
      %v2183 = vadd.f32 %v2094, %v2182
      %2184 = vmatmul.bf16.gmra.mxu0 %v932
      %v2185 = vpop.f32.mrf.mxu0
      %v2186 = vadd.f32 %v2097, %v2185
      %v2187 = vpop.f32.mrf.mxu0
      %v2188 = vadd.f32 %v2099, %v2187
      %2189 = vmatmul.bf16.gmra.mxu0 %v940
      %v2190 = vpop.f32.mrf.mxu0
      %v2191 = vadd.f32 %v2102, %v2190
      %v2192 = vpop.f32.mrf.mxu0
      %v2193 = vadd.f32 %v2104, %v2192
      %2194 = vmatmul.bf16.gmra.mxu0 %v948
      %v2195 = vpop.f32.mrf.mxu0
      %v2196 = vadd.f32 %v2107, %v2195
      %v2197 = vpop.f32.mrf.mxu0
      %v2198 = vadd.f32 %v2109, %v2197
      %2199 = vmatmul.bf16.gmra.mxu0 %v956
      %v2200 = vpop.f32.mrf.mxu0
      %v2201 = vadd.f32 %v2112, %v2200
      %v2202 = vpop.f32.mrf.mxu0
      %v2203 = vadd.f32 %v2114, %v2202
      %2204 = vmatmul.bf16.gmra.mxu0 %v964
      %v2205 = vpop.f32.mrf.mxu0
      %v2206 = vadd.f32 %v2117, %v2205
      %v2207 = vpop.f32.mrf.mxu0
      %v2208 = vadd.f32 %v2119, %v2207
      %2209 = vmatmul.bf16.gmra.mxu0 %v972
      %v2210 = vpop.f32.mrf.mxu0
      %v2211 = vadd.f32 %v2122, %v2210
      %v2212 = vpop.f32.mrf.mxu0
      %v2213 = vadd.f32 %v2124, %v2212
      %2214 = vmatmul.bf16.gmra.mxu0 %v980
      %v2215 = vpop.f32.mrf.mxu0
      %v2216 = vadd.f32 %v2127, %v2215
      %v2217 = vpop.f32.mrf.mxu0
      %v2218 = vadd.f32 %v2129, %v2217
      %2219 = vmatmul.bf16.gmra.mxu0 %v988
      %v2220 = vpop.f32.mrf.mxu0
      %v2221 = vadd.f32 %v2132, %v2220
      %v2222 = vpop.f32.mrf.mxu0
      %v2223 = vadd.f32 %v2134, %v2222
      %2224 = vmatmul.bf16.gmra.mxu0 %v996
      %v2225 = vpop.f32.mrf.mxu0
      %v2226 = vadd.f32 %v2137, %v2225
      %v2227 = vpop.f32.mrf.mxu0
      %v2228 = vadd.f32 %v2139, %v2227
      %2229 = vmatmul.bf16.gmra.mxu0 %v1004
      %v2230 = vpop.f32.mrf.mxu0
      %v2231 = vadd.f32 %v2142, %v2230
      %v2232 = vpop.f32.mrf.mxu0
      %v2233 = vadd.f32 %v2144, %v2232
      %2234 = vmatmul.bf16.gmra.mxu0 %v1012
      %v2235 = vpop.f32.mrf.mxu0
      %v2236 = vadd.f32 %v2147, %v2235
      %v2237 = vpop.f32.mrf.mxu0
      %v2238 = vadd.f32 %v2149, %v2237
      %2239 = vmatmul.bf16.gmra.mxu0 %v1020
      %v2240 = vpop.f32.mrf.mxu0
      %v2241 = vadd.f32 %v2152, %v2240
      %v2242 = vpop.f32.mrf.mxu0
      %v2243 = vadd.f32 %v2154, %v2242
      %2244 = vdwg.mxu0
      %v2245 = vld [vmem:[%s272] sm:$0xff]
      %v2246 = vld [vmem:[%s272 + $0x8] sm:$0xff]
      %v2247 = vld [vmem:[%s272 + $0x10] sm:$0xff]
      %v2248 = vld [vmem:[%s272 + $0x18] sm:$0xff]
      %v2249 = vld [vmem:[%s272 + $0x20] sm:$0xff]
      %v2250 = vld [vmem:[%s272 + $0x28] sm:$0xff]
      %v2251 = vld [vmem:[%s272 + $0x30] sm:$0xff]
      %v2252 = vld [vmem:[%s272 + $0x38] sm:$0xff]
      %v2253 = vld [vmem:[%s272 + $0x40] sm:$0xff]
      %v2254 = vld [vmem:[%s272 + $0x48] sm:$0xff]
      %v2255 = vld [vmem:[%s272 + $0x50] sm:$0xff]
      %v2256 = vld [vmem:[%s272 + $0x58] sm:$0xff]
      %v2257 = vld [vmem:[%s272 + $0x60] sm:$0xff]
      %v2258 = vld [vmem:[%s272 + $0x68] sm:$0xff]
      %v2259 = vld [vmem:[%s272 + $0x70] sm:$0xff]
      %v2260 = vld [vmem:[%s272 + $0x78] sm:$0xff]
      %v2261 = vld [vmem:[%s272 + $0x80] sm:$0xff]
      %v2262 = vld [vmem:[%s272 + $0x88] sm:$0xff]
      %v2263 = vld [vmem:[%s272 + $0x90] sm:$0xff]
      %v2264 = vld [vmem:[%s272 + $0x98] sm:$0xff]
      %v2265 = vld [vmem:[%s272 + $0xa0] sm:$0xff]
      %v2266 = vld [vmem:[%s272 + $0xa8] sm:$0xff]
      %v2267 = vld [vmem:[%s272 + $0xb0] sm:$0xff]
      %v2268 = vld [vmem:[%s272 + $0xb8] sm:$0xff]
      %v2269 = vld [vmem:[%s272 + $0xc0] sm:$0xff]
      %v2270 = vld [vmem:[%s272 + $0xc8] sm:$0xff]
      %v2271 = vld [vmem:[%s272 + $0xd0] sm:$0xff]
      %v2272 = vld [vmem:[%s272 + $0xd8] sm:$0xff]
      %v2273 = vld [vmem:[%s272 + $0xe0] sm:$0xff]
      %v2274 = vld [vmem:[%s272 + $0xe8] sm:$0xff]
      %v2275 = vld [vmem:[%s272 + $0xf0] sm:$0xff]
      %v2276 = vld [vmem:[%s272 + $0xf8] sm:$0xff]
      %2278 = vset.pattern.permute.xlu0 0
      %2279 = vperm.xlu0 %2278, %v2245
      %v2280 = vpop.permute.xlu0 %2279
      %2283 = vset.pattern.permute.xlu0 0
      %2284 = vperm.xlu0 %2283, %v2246
      %v2285 = vpop.permute.xlu0 %2284
      %2288 = vset.pattern.permute.xlu0 0
      %2289 = vperm.xlu0 %2288, %v2247
      %v2290 = vpop.permute.xlu0 %2289
      %2293 = vset.pattern.permute.xlu0 0
      %2294 = vperm.xlu0 %2293, %v2248
      %v2295 = vpop.permute.xlu0 %2294
      %2298 = vset.pattern.permute.xlu0 0
      %2299 = vperm.xlu0 %2298, %v2249
      %v2300 = vpop.permute.xlu0 %2299
      %2303 = vset.pattern.permute.xlu0 0
      %2304 = vperm.xlu0 %2303, %v2250
      %v2305 = vpop.permute.xlu0 %2304
      %2308 = vset.pattern.permute.xlu0 0
      %2309 = vperm.xlu0 %2308, %v2251
      %v2310 = vpop.permute.xlu0 %2309
      %2313 = vset.pattern.permute.xlu0 0
      %2314 = vperm.xlu0 %2313, %v2252
      %v2315 = vpop.permute.xlu0 %2314
      %2318 = vset.pattern.permute.xlu0 0
      %2319 = vperm.xlu0 %2318, %v2253
      %v2320 = vpop.permute.xlu0 %2319
      %2323 = vset.pattern.permute.xlu0 0
      %2324 = vperm.xlu0 %2323, %v2254
      %v2325 = vpop.permute.xlu0 %2324
      %2328 = vset.pattern.permute.xlu0 0
      %2329 = vperm.xlu0 %2328, %v2255
      %v2330 = vpop.permute.xlu0 %2329
      %2333 = vset.pattern.permute.xlu0 0
      %2334 = vperm.xlu0 %2333, %v2256
      %v2335 = vpop.permute.xlu0 %2334
      %2338 = vset.pattern.permute.xlu0 0
      %2339 = vperm.xlu0 %2338, %v2257
      %v2340 = vpop.permute.xlu0 %2339
      %2343 = vset.pattern.permute.xlu0 0
      %2344 = vperm.xlu0 %2343, %v2258
      %v2345 = vpop.permute.xlu0 %2344
      %2348 = vset.pattern.permute.xlu0 0
      %2349 = vperm.xlu0 %2348, %v2259
      %v2350 = vpop.permute.xlu0 %2349
      %2353 = vset.pattern.permute.xlu0 0
      %2354 = vperm.xlu0 %2353, %v2260
      %v2355 = vpop.permute.xlu0 %2354
      %2358 = vset.pattern.permute.xlu0 0
      %2359 = vperm.xlu0 %2358, %v2261
      %v2360 = vpop.permute.xlu0 %2359
      %2363 = vset.pattern.permute.xlu0 0
      %2364 = vperm.xlu0 %2363, %v2262
      %v2365 = vpop.permute.xlu0 %2364
      %2368 = vset.pattern.permute.xlu0 0
      %2369 = vperm.xlu0 %2368, %v2263
      %v2370 = vpop.permute.xlu0 %2369
      %2373 = vset.pattern.permute.xlu0 0
      %2374 = vperm.xlu0 %2373, %v2264
      %v2375 = vpop.permute.xlu0 %2374
      %2378 = vset.pattern.permute.xlu0 0
      %2379 = vperm.xlu0 %2378, %v2265
      %v2380 = vpop.permute.xlu0 %2379
      %2383 = vset.pattern.permute.xlu0 0
      %2384 = vperm.xlu0 %2383, %v2266
      %v2385 = vpop.permute.xlu0 %2384
      %2388 = vset.pattern.permute.xlu0 0
      %2389 = vperm.xlu0 %2388, %v2267
      %v2390 = vpop.permute.xlu0 %2389
      %2393 = vset.pattern.permute.xlu0 0
      %2394 = vperm.xlu0 %2393, %v2268
      %v2395 = vpop.permute.xlu0 %2394
      %2398 = vset.pattern.permute.xlu0 0
      %2399 = vperm.xlu0 %2398, %v2269
      %v2400 = vpop.permute.xlu0 %2399
      %2403 = vset.pattern.permute.xlu0 0
      %2404 = vperm.xlu0 %2403, %v2270
      %v2405 = vpop.permute.xlu0 %2404
      %2408 = vset.pattern.permute.xlu0 0
      %2409 = vperm.xlu0 %2408, %v2271
      %v2410 = vpop.permute.xlu0 %2409
      %2413 = vset.pattern.permute.xlu0 0
      %2414 = vperm.xlu0 %2413, %v2272
      %v2415 = vpop.permute.xlu0 %2414
      %2418 = vset.pattern.permute.xlu0 0
      %2419 = vperm.xlu0 %2418, %v2273
      %v2420 = vpop.permute.xlu0 %2419
      %2423 = vset.pattern.permute.xlu0 0
      %2424 = vperm.xlu0 %2423, %v2274
      %v2425 = vpop.permute.xlu0 %2424
      %2428 = vset.pattern.permute.xlu0 0
      %2429 = vperm.xlu0 %2428, %v2275
      %v2430 = vpop.permute.xlu0 %2429
      %2433 = vset.pattern.permute.xlu0 0
      %2434 = vperm.xlu0 %2433, %v2276
      %v2435 = vpop.permute.xlu0 %2434
      %v2437 = vmul.f32 %v2166, %v2280
      %v2438 = vmul.f32 %v2168, %v2285
      %v2439 = vmul.f32 %v2171, %v2290
      %v2440 = vmul.f32 %v2173, %v2295
      %v2441 = vmul.f32 %v2176, %v2300
      %v2442 = vmul.f32 %v2178, %v2305
      %v2443 = vmul.f32 %v2181, %v2310
      %v2444 = vmul.f32 %v2183, %v2315
      %v2445 = vmul.f32 %v2186, %v2320
      %v2446 = vmul.f32 %v2188, %v2325
      %v2447 = vmul.f32 %v2191, %v2330
      %v2448 = vmul.f32 %v2193, %v2335
      %v2449 = vmul.f32 %v2196, %v2340
      %v2450 = vmul.f32 %v2198, %v2345
      %v2451 = vmul.f32 %v2201, %v2350
      %v2452 = vmul.f32 %v2203, %v2355
      %v2453 = vmul.f32 %v2206, %v2360
      %v2454 = vmul.f32 %v2208, %v2365
      %v2455 = vmul.f32 %v2211, %v2370
      %v2456 = vmul.f32 %v2213, %v2375
      %v2457 = vmul.f32 %v2216, %v2380
      %v2458 = vmul.f32 %v2218, %v2385
      %v2459 = vmul.f32 %v2221, %v2390
      %v2460 = vmul.f32 %v2223, %v2395
      %v2461 = vmul.f32 %v2226, %v2400
      %v2462 = vmul.f32 %v2228, %v2405
      %v2463 = vmul.f32 %v2231, %v2410
      %v2464 = vmul.f32 %v2233, %v2415
      %v2465 = vmul.f32 %v2236, %v2420
      %v2466 = vmul.f32 %v2238, %v2425
      %v2467 = vmul.f32 %v2241, %v2430
      %v2468 = vmul.f32 %v2243, %v2435
      %v2469 = vpack.c.bf16 %v2438, %v2437
      %v2470 = vpack.c.bf16 %v2440, %v2439
      %v2471 = vpack.c.bf16 %v2442, %v2441
      %v2472 = vpack.c.bf16 %v2444, %v2443
      %v2473 = vpack.c.bf16 %v2446, %v2445
      %v2474 = vpack.c.bf16 %v2448, %v2447
      %v2475 = vpack.c.bf16 %v2450, %v2449
      %v2476 = vpack.c.bf16 %v2452, %v2451
      %v2477 = vpack.c.bf16 %v2454, %v2453
      %v2478 = vpack.c.bf16 %v2456, %v2455
      %v2479 = vpack.c.bf16 %v2458, %v2457
      %v2480 = vpack.c.bf16 %v2460, %v2459
      %v2481 = vpack.c.bf16 %v2462, %v2461
      %v2482 = vpack.c.bf16 %v2464, %v2463
      %v2483 = vpack.c.bf16 %v2466, %v2465
      %v2484 = vpack.c.bf16 %v2468, %v2467
      %v2485 = vld [vmem:[%s3] sm:$0xf]
      %v2486 = vld [vmem:[%s3 + $0x4] sm:$0xf]
      %v2487 = vld [vmem:[%s3 + $0x8] sm:$0xf]
      %v2488 = vld [vmem:[%s3 + $0xc] sm:$0xf]
      %v2489 = vld [vmem:[%s3 + $0x10] sm:$0xf]
      %v2490 = vld [vmem:[%s3 + $0x14] sm:$0xf]
      %v2491 = vld [vmem:[%s3 + $0x18] sm:$0xf]
      %v2492 = vld [vmem:[%s3 + $0x1c] sm:$0xf]
      %v2493 = vld [vmem:[%s3 + $0x20] sm:$0xf]
      %v2494 = vld [vmem:[%s3 + $0x24] sm:$0xf]
      %v2495 = vld [vmem:[%s3 + $0x28] sm:$0xf]
      %v2496 = vld [vmem:[%s3 + $0x2c] sm:$0xf]
      %v2497 = vld [vmem:[%s3 + $0x30] sm:$0xf]
      %v2498 = vld [vmem:[%s3 + $0x34] sm:$0xf]
      %v2499 = vld [vmem:[%s3 + $0x38] sm:$0xf]
      %v2500 = vld [vmem:[%s3 + $0x3c] sm:$0xf]
      %v2501 = vld [vmem:[%s4] sm:$0xf]
      %v2502 = vld [vmem:[%s4 + $0x4] sm:$0xf]
      %v2503 = vld [vmem:[%s4 + $0x8] sm:$0xf]
      %v2504 = vld [vmem:[%s4 + $0xc] sm:$0xf]
      %v2505 = vld [vmem:[%s4 + $0x10] sm:$0xf]
      %v2506 = vld [vmem:[%s4 + $0x14] sm:$0xf]
      %v2507 = vld [vmem:[%s4 + $0x18] sm:$0xf]
      %v2508 = vld [vmem:[%s4 + $0x1c] sm:$0xf]
      %v2509 = vld [vmem:[%s4 + $0x20] sm:$0xf]
      %v2510 = vld [vmem:[%s4 + $0x24] sm:$0xf]
      %v2511 = vld [vmem:[%s4 + $0x28] sm:$0xf]
      %v2512 = vld [vmem:[%s4 + $0x2c] sm:$0xf]
      %v2513 = vld [vmem:[%s4 + $0x30] sm:$0xf]
      %v2514 = vld [vmem:[%s4 + $0x34] sm:$0xf]
      %v2515 = vld [vmem:[%s4 + $0x38] sm:$0xf]
      %v2516 = vld [vmem:[%s4 + $0x3c] sm:$0xf]
      %v2533 = vunpack.c.l.b16 %v2501
      %v2534 = vunpack.c.l.b16 %v2502
      %v2535 = vunpack.c.l.b16 %v2503
      %v2536 = vunpack.c.l.b16 %v2504
      %v2537 = vunpack.c.l.b16 %v2505
      %v2538 = vunpack.c.l.b16 %v2506
      %v2539 = vunpack.c.l.b16 %v2507
      %v2540 = vunpack.c.l.b16 %v2508
      %v2541 = vunpack.c.l.b16 %v2509
      %v2542 = vunpack.c.l.b16 %v2510
      %v2543 = vunpack.c.l.b16 %v2511
      %v2544 = vunpack.c.l.b16 %v2512
      %v2545 = vunpack.c.l.b16 %v2513
      %v2546 = vunpack.c.l.b16 %v2514
      %v2547 = vunpack.c.l.b16 %v2515
      %v2548 = vunpack.c.l.b16 %v2516
      %v2549 = vpack.c.b16 %v2534, %v2533
      %v2550 = vpack.c.b16 %v2536, %v2535
      %v2551 = vpack.c.b16 %v2538, %v2537
      %v2552 = vpack.c.b16 %v2540, %v2539
      %v2553 = vpack.c.b16 %v2542, %v2541
      %v2554 = vpack.c.b16 %v2544, %v2543
      %v2555 = vpack.c.b16 %v2546, %v2545
      %v2556 = vpack.c.b16 %v2548, %v2547
      %2565 = vmatpush.bf16.msra.mxu0 %v2556
      %2566 = vmatpush.bf16.msra.mxu0 %v2555
      %2567 = vmatpush.bf16.msra.mxu0 %v2554
      %2568 = vmatpush.bf16.msra.mxu0 %v2553
      %2569 = vmatpush.bf16.msra.mxu0 %v2552
      %2570 = vmatpush.bf16.msra.mxu0 %v2551
      %2571 = vmatpush.bf16.msra.mxu0 %v2550
      %2572 = vmatpush.bf16.msra.mxu0 %v2549
      %2573 = vmatmul.bf16.gmra.mxu0 %v2469
      %v2574 = vpop.f32.mrf.mxu0
      %v2575 = vadd.f32 0.0, %v2574
      %v2576 = vpop.f32.mrf.mxu0
      %v2577 = vadd.f32 0.0, %v2576
      %2578 = vmatmul.bf16.gmra.mxu0 %v2470
      %v2579 = vpop.f32.mrf.mxu0
      %v2580 = vadd.f32 0.0, %v2579
      %v2581 = vpop.f32.mrf.mxu0
      %v2582 = vadd.f32 0.0, %v2581
      %2583 = vmatmul.bf16.gmra.mxu0 %v2471
      %v2584 = vpop.f32.mrf.mxu0
      %v2585 = vadd.f32 0.0, %v2584
      %v2586 = vpop.f32.mrf.mxu0
      %v2587 = vadd.f32 0.0, %v2586
      %2588 = vmatmul.bf16.gmra.mxu0 %v2472
      %v2589 = vpop.f32.mrf.mxu0
      %v2590 = vadd.f32 0.0, %v2589
      %v2591 = vpop.f32.mrf.mxu0
      %v2592 = vadd.f32 0.0, %v2591
      %2593 = vmatmul.bf16.gmra.mxu0 %v2473
      %v2594 = vpop.f32.mrf.mxu0
      %v2595 = vadd.f32 0.0, %v2594
      %v2596 = vpop.f32.mrf.mxu0
      %v2597 = vadd.f32 0.0, %v2596
      %2598 = vmatmul.bf16.gmra.mxu0 %v2474
      %v2599 = vpop.f32.mrf.mxu0
      %v2600 = vadd.f32 0.0, %v2599
      %v2601 = vpop.f32.mrf.mxu0
      %v2602 = vadd.f32 0.0, %v2601
      %2603 = vmatmul.bf16.gmra.mxu0 %v2475
      %v2604 = vpop.f32.mrf.mxu0
      %v2605 = vadd.f32 0.0, %v2604
      %v2606 = vpop.f32.mrf.mxu0
      %v2607 = vadd.f32 0.0, %v2606
      %2608 = vmatmul.bf16.gmra.mxu0 %v2476
      %v2609 = vpop.f32.mrf.mxu0
      %v2610 = vadd.f32 0.0, %v2609
      %v2611 = vpop.f32.mrf.mxu0
      %v2612 = vadd.f32 0.0, %v2611
      %2613 = vmatmul.bf16.gmra.mxu0 %v2477
      %v2614 = vpop.f32.mrf.mxu0
      %v2615 = vadd.f32 0.0, %v2614
      %v2616 = vpop.f32.mrf.mxu0
      %v2617 = vadd.f32 0.0, %v2616
      %2618 = vmatmul.bf16.gmra.mxu0 %v2478
      %v2619 = vpop.f32.mrf.mxu0
      %v2620 = vadd.f32 0.0, %v2619
      %v2621 = vpop.f32.mrf.mxu0
      %v2622 = vadd.f32 0.0, %v2621
      %2623 = vmatmul.bf16.gmra.mxu0 %v2479
      %v2624 = vpop.f32.mrf.mxu0
      %v2625 = vadd.f32 0.0, %v2624
      %v2626 = vpop.f32.mrf.mxu0
      %v2627 = vadd.f32 0.0, %v2626
      %2628 = vmatmul.bf16.gmra.mxu0 %v2480
      %v2629 = vpop.f32.mrf.mxu0
      %v2630 = vadd.f32 0.0, %v2629
      %v2631 = vpop.f32.mrf.mxu0
      %v2632 = vadd.f32 0.0, %v2631
      %2633 = vmatmul.bf16.gmra.mxu0 %v2481
      %v2634 = vpop.f32.mrf.mxu0
      %v2635 = vadd.f32 0.0, %v2634
      %v2636 = vpop.f32.mrf.mxu0
      %v2637 = vadd.f32 0.0, %v2636
      %2638 = vmatmul.bf16.gmra.mxu0 %v2482
      %v2639 = vpop.f32.mrf.mxu0
      %v2640 = vadd.f32 0.0, %v2639
      %v2641 = vpop.f32.mrf.mxu0
      %v2642 = vadd.f32 0.0, %v2641
      %2643 = vmatmul.bf16.gmra.mxu0 %v2483
      %v2644 = vpop.f32.mrf.mxu0
      %v2645 = vadd.f32 0.0, %v2644
      %v2646 = vpop.f32.mrf.mxu0
      %v2647 = vadd.f32 0.0, %v2646
      %2648 = vmatmul.bf16.gmra.mxu0 %v2484
      %v2649 = vpop.f32.mrf.mxu0
      %v2650 = vadd.f32 0.0, %v2649
      %v2651 = vpop.f32.mrf.mxu0
      %v2652 = vadd.f32 0.0, %v2651
      %2653 = vdwg.mxu0
      %v2686 = vunpack.c.l.b16 %v285
      %v2687 = vunpack.c.l.b16 %v286
      %v2688 = vunpack.c.l.b16 %v287
      %v2689 = vunpack.c.l.b16 %v288
      %v2690 = vunpack.c.l.b16 %v289
      %v2691 = vunpack.c.l.b16 %v290
      %v2692 = vunpack.c.l.b16 %v291
      %v2693 = vunpack.c.l.b16 %v292
      %v2694 = vunpack.c.l.b16 %v293
      %v2695 = vunpack.c.l.b16 %v294
      %v2696 = vunpack.c.l.b16 %v295
      %v2697 = vunpack.c.l.b16 %v296
      %v2698 = vunpack.c.l.b16 %v297
      %v2699 = vunpack.c.l.b16 %v298
      %v2700 = vunpack.c.l.b16 %v299
      %v2701 = vunpack.c.l.b16 %v300
      %v2702 = vunpack.c.l.b16 %v301
      %v2703 = vunpack.c.l.b16 %v302
      %v2704 = vunpack.c.l.b16 %v303
      %v2705 = vunpack.c.l.b16 %v304
      %v2706 = vunpack.c.l.b16 %v305
      %v2707 = vunpack.c.l.b16 %v306
      %v2708 = vunpack.c.l.b16 %v307
      %v2709 = vunpack.c.l.b16 %v308
      %v2710 = vunpack.c.l.b16 %v309
      %v2711 = vunpack.c.l.b16 %v310
      %v2712 = vunpack.c.l.b16 %v311
      %v2713 = vunpack.c.l.b16 %v312
      %v2714 = vunpack.c.l.b16 %v313
      %v2715 = vunpack.c.l.b16 %v314
      %v2716 = vunpack.c.l.b16 %v315
      %v2717 = vunpack.c.l.b16 %v316
      %v2718 = vpack.c.b16 %v2687, %v2686
      %v2719 = vpack.c.b16 %v2689, %v2688
      %v2720 = vpack.c.b16 %v2691, %v2690
      %v2721 = vpack.c.b16 %v2693, %v2692
      %v2722 = vpack.c.b16 %v2695, %v2694
      %v2723 = vpack.c.b16 %v2697, %v2696
      %v2724 = vpack.c.b16 %v2699, %v2698
      %v2725 = vpack.c.b16 %v2701, %v2700
      %v2726 = vpack.c.b16 %v2703, %v2702
      %v2727 = vpack.c.b16 %v2705, %v2704
      %v2728 = vpack.c.b16 %v2707, %v2706
      %v2729 = vpack.c.b16 %v2709, %v2708
      %v2730 = vpack.c.b16 %v2711, %v2710
      %v2731 = vpack.c.b16 %v2713, %v2712
      %v2732 = vpack.c.b16 %v2715, %v2714
      %v2733 = vpack.c.b16 %v2717, %v2716
      %v2766 = vunpack.c.l.b16 %v2485
      %v2767 = vunpack.c.l.b16 %v2486
      %v2768 = vunpack.c.l.b16 %v2487
      %v2769 = vunpack.c.l.b16 %v2488
      %v2770 = vunpack.c.l.b16 %v2489
      %v2771 = vunpack.c.l.b16 %v2490
      %v2772 = vunpack.c.l.b16 %v2491
      %v2773 = vunpack.c.l.b16 %v2492
      %v2774 = vunpack.c.l.b16 %v2493
      %v2775 = vunpack.c.l.b16 %v2494
      %v2776 = vunpack.c.l.b16 %v2495
      %v2777 = vunpack.c.l.b16 %v2496
      %v2778 = vunpack.c.l.b16 %v2497
      %v2779 = vunpack.c.l.b16 %v2498
      %v2780 = vunpack.c.l.b16 %v2499
      %v2781 = vunpack.c.l.b16 %v2500
      %v2782 = vpack.c.b16 %v2767, %v2766
      %v2783 = vpack.c.b16 %v2769, %v2768
      %v2784 = vpack.c.b16 %v2771, %v2770
      %v2785 = vpack.c.b16 %v2773, %v2772
      %v2786 = vpack.c.b16 %v2775, %v2774
      %v2787 = vpack.c.b16 %v2777, %v2776
      %v2788 = vpack.c.b16 %v2779, %v2778
      %v2789 = vpack.c.b16 %v2781, %v2780
      %2798 = vmatpush.bf16.msra.mxu0 %v2789
      %2799 = vmatpush.bf16.msra.mxu0 %v2788
      %2800 = vmatpush.bf16.msra.mxu0 %v2787
      %2801 = vmatpush.bf16.msra.mxu0 %v2786
      %2802 = vmatpush.bf16.msra.mxu0 %v2785
      %2803 = vmatpush.bf16.msra.mxu0 %v2784
      %2804 = vmatpush.bf16.msra.mxu0 %v2783
      %2805 = vmatpush.bf16.msra.mxu0 %v2782
      %2806 = vmatmul.bf16.gmra.mxu0 %v2718
      %v2807 = vpop.f32.mrf.mxu0
      %v2808 = vadd.f32 %v2575, %v2807
      %v2809 = vpop.f32.mrf.mxu0
      %v2810 = vadd.f32 %v2577, %v2809
      %2811 = vmatmul.bf16.gmra.mxu0 %v2719
      %v2812 = vpop.f32.mrf.mxu0
      %v2813 = vadd.f32 %v2580, %v2812
      %v2814 = vpop.f32.mrf.mxu0
      %v2815 = vadd.f32 %v2582, %v2814
      %2816 = vmatmul.bf16.gmra.mxu0 %v2720
      %v2817 = vpop.f32.mrf.mxu0
      %v2818 = vadd.f32 %v2585, %v2817
      %v2819 = vpop.f32.mrf.mxu0
      %v2820 = vadd.f32 %v2587, %v2819
      %2821 = vmatmul.bf16.gmra.mxu0 %v2721
      %v2822 = vpop.f32.mrf.mxu0
      %v2823 = vadd.f32 %v2590, %v2822
      %v2824 = vpop.f32.mrf.mxu0
      %v2825 = vadd.f32 %v2592, %v2824
      %2826 = vmatmul.bf16.gmra.mxu0 %v2722
      %v2827 = vpop.f32.mrf.mxu0
      %v2828 = vadd.f32 %v2595, %v2827
      %v2829 = vpop.f32.mrf.mxu0
      %v2830 = vadd.f32 %v2597, %v2829
      %2831 = vmatmul.bf16.gmra.mxu0 %v2723
      %v2832 = vpop.f32.mrf.mxu0
      %v2833 = vadd.f32 %v2600, %v2832
      %v2834 = vpop.f32.mrf.mxu0
      %v2835 = vadd.f32 %v2602, %v2834
      %2836 = vmatmul.bf16.gmra.mxu0 %v2724
      %v2837 = vpop.f32.mrf.mxu0
      %v2838 = vadd.f32 %v2605, %v2837
      %v2839 = vpop.f32.mrf.mxu0
      %v2840 = vadd.f32 %v2607, %v2839
      %2841 = vmatmul.bf16.gmra.mxu0 %v2725
      %v2842 = vpop.f32.mrf.mxu0
      %v2843 = vadd.f32 %v2610, %v2842
      %v2844 = vpop.f32.mrf.mxu0
      %v2845 = vadd.f32 %v2612, %v2844
      %2846 = vmatmul.bf16.gmra.mxu0 %v2726
      %v2847 = vpop.f32.mrf.mxu0
      %v2848 = vadd.f32 %v2615, %v2847
      %v2849 = vpop.f32.mrf.mxu0
      %v2850 = vadd.f32 %v2617, %v2849
      %2851 = vmatmul.bf16.gmra.mxu0 %v2727
      %v2852 = vpop.f32.mrf.mxu0
      %v2853 = vadd.f32 %v2620, %v2852
      %v2854 = vpop.f32.mrf.mxu0
      %v2855 = vadd.f32 %v2622, %v2854
      %2856 = vmatmul.bf16.gmra.mxu0 %v2728
      %v2857 = vpop.f32.mrf.mxu0
      %v2858 = vadd.f32 %v2625, %v2857
      %v2859 = vpop.f32.mrf.mxu0
      %v2860 = vadd.f32 %v2627, %v2859
      %2861 = vmatmul.bf16.gmra.mxu0 %v2729
      %v2862 = vpop.f32.mrf.mxu0
      %v2863 = vadd.f32 %v2630, %v2862
      %v2864 = vpop.f32.mrf.mxu0
      %v2865 = vadd.f32 %v2632, %v2864
      %2866 = vmatmul.bf16.gmra.mxu0 %v2730
      %v2867 = vpop.f32.mrf.mxu0
      %v2868 = vadd.f32 %v2635, %v2867
      %v2869 = vpop.f32.mrf.mxu0
      %v2870 = vadd.f32 %v2637, %v2869
      %2871 = vmatmul.bf16.gmra.mxu0 %v2731
      %v2872 = vpop.f32.mrf.mxu0
      %v2873 = vadd.f32 %v2640, %v2872
      %v2874 = vpop.f32.mrf.mxu0
      %v2875 = vadd.f32 %v2642, %v2874
      %2876 = vmatmul.bf16.gmra.mxu0 %v2732
      %v2877 = vpop.f32.mrf.mxu0
      %v2878 = vadd.f32 %v2645, %v2877
      %v2879 = vpop.f32.mrf.mxu0
      %v2880 = vadd.f32 %v2647, %v2879
      %2881 = vmatmul.bf16.gmra.mxu0 %v2733
      %v2882 = vpop.f32.mrf.mxu0
      %v2883 = vadd.f32 %v2650, %v2882
      %v2884 = vpop.f32.mrf.mxu0
      %v2885 = vadd.f32 %v2652, %v2884
      %2886 = vdwg.mxu0
      %v2887 = vld [vmem:[%s5] sm:$0x1]
      %v2889 = vperm.slane %v2887, 0
      %v2891 = vadd.f32 %v2808, %v2889
      %v2892 = vadd.f32 %v2810, %v2889
      %v2893 = vadd.f32 %v2813, %v2889
      %v2894 = vadd.f32 %v2815, %v2889
      %v2895 = vadd.f32 %v2818, %v2889
      %v2896 = vadd.f32 %v2820, %v2889
      %v2897 = vadd.f32 %v2823, %v2889
      %v2898 = vadd.f32 %v2825, %v2889
      %v2899 = vadd.f32 %v2828, %v2889
      %v2900 = vadd.f32 %v2830, %v2889
      %v2901 = vadd.f32 %v2833, %v2889
      %v2902 = vadd.f32 %v2835, %v2889
      %v2903 = vadd.f32 %v2838, %v2889
      %v2904 = vadd.f32 %v2840, %v2889
      %v2905 = vadd.f32 %v2843, %v2889
      %v2906 = vadd.f32 %v2845, %v2889
      %v2907 = vadd.f32 %v2848, %v2889
      %v2908 = vadd.f32 %v2850, %v2889
      %v2909 = vadd.f32 %v2853, %v2889
      %v2910 = vadd.f32 %v2855, %v2889
      %v2911 = vadd.f32 %v2858, %v2889
      %v2912 = vadd.f32 %v2860, %v2889
      %v2913 = vadd.f32 %v2863, %v2889
      %v2914 = vadd.f32 %v2865, %v2889
      %v2915 = vadd.f32 %v2868, %v2889
      %v2916 = vadd.f32 %v2870, %v2889
      %v2917 = vadd.f32 %v2873, %v2889
      %v2918 = vadd.f32 %v2875, %v2889
      %v2919 = vadd.f32 %v2878, %v2889
      %v2920 = vadd.f32 %v2880, %v2889
      %v2921 = vadd.f32 %v2883, %v2889
      %v2922 = vadd.f32 %v2885, %v2889
      %2923 = vst [vmem:[%s278] sm:$0xff] %v2891
      %2924 = vst [vmem:[%s278 + $0x8] sm:$0xff] %v2892
      %2925 = vst [vmem:[%s278 + $0x10] sm:$0xff] %v2893
      %2926 = vst [vmem:[%s278 + $0x18] sm:$0xff] %v2894
      %2927 = vst [vmem:[%s278 + $0x20] sm:$0xff] %v2895
      %2928 = vst [vmem:[%s278 + $0x28] sm:$0xff] %v2896
      %2929 = vst [vmem:[%s278 + $0x30] sm:$0xff] %v2897
      %2930 = vst [vmem:[%s278 + $0x38] sm:$0xff] %v2898
      %2931 = vst [vmem:[%s278 + $0x40] sm:$0xff] %v2899
      %2932 = vst [vmem:[%s278 + $0x48] sm:$0xff] %v2900
      %2933 = vst [vmem:[%s278 + $0x50] sm:$0xff] %v2901
      %2934 = vst [vmem:[%s278 + $0x58] sm:$0xff] %v2902
      %2935 = vst [vmem:[%s278 + $0x60] sm:$0xff] %v2903
      %2936 = vst [vmem:[%s278 + $0x68] sm:$0xff] %v2904
      %2937 = vst [vmem:[%s278 + $0x70] sm:$0xff] %v2905
      %2938 = vst [vmem:[%s278 + $0x78] sm:$0xff] %v2906
      %2939 = vst [vmem:[%s278 + $0x80] sm:$0xff] %v2907
      %2940 = vst [vmem:[%s278 + $0x88] sm:$0xff] %v2908
      %2941 = vst [vmem:[%s278 + $0x90] sm:$0xff] %v2909
      %2942 = vst [vmem:[%s278 + $0x98] sm:$0xff] %v2910
      %2943 = vst [vmem:[%s278 + $0xa0] sm:$0xff] %v2911
      %2944 = vst [vmem:[%s278 + $0xa8] sm:$0xff] %v2912
      %2945 = vst [vmem:[%s278 + $0xb0] sm:$0xff] %v2913
      %2946 = vst [vmem:[%s278 + $0xb8] sm:$0xff] %v2914
      %2947 = vst [vmem:[%s278 + $0xc0] sm:$0xff] %v2915
      %2948 = vst [vmem:[%s278 + $0xc8] sm:$0xff] %v2916
      %2949 = vst [vmem:[%s278 + $0xd0] sm:$0xff] %v2917
      %2950 = vst [vmem:[%s278 + $0xd8] sm:$0xff] %v2918
      %2951 = vst [vmem:[%s278 + $0xe0] sm:$0xff] %v2919
      %2952 = vst [vmem:[%s278 + $0xe8] sm:$0xff] %v2920
      %2953 = vst [vmem:[%s278 + $0xf0] sm:$0xff] %v2921
      %2954 = vst [vmem:[%s278 + $0xf8] sm:$0xff] %v2922
      %s2955 = smul.u32 32, %s17
      %p2956 = scmp.lt.s32.totalorder %s2955, 127
      %s2957 = scalar_select %p2956, %s2955, 127
      %s2958 = smul.addr %s2957, 8
      %s2959 = scalar_lea.vmem %s6, %s2958
      // Predicated region
      $region45: #{sage_forward.3} parent=43 // pred_check
        %p2960 = pneg %p171
      $region46: #{sage_forward.3} parent=43 // pred_check_branch
        %2962 = sbr.rel (%p2960) target = $region48
      $region47: #{sage_forward.3} parent=43 // pred_region
        %s2963 = smul.u32 32, %s17
      $region48: #{sage_forward.3} parent=43 // pred_fallthru
        _
    $region44: #{sage_forward.3} parent=5 // pred_fallthru
      _
    %p2964 = scmp.le.s32.totalorder 2, %s12
    // Predicated region
    $region49: #{sage_forward.3} parent=5 // pred_check
      %p2965 = pneg %p2964
    $region50: #{sage_forward.3} parent=5 // pred_check_branch
      %2967 = sbr.rel (%p2965) target = $region52
    $region51: #{sage_forward.3} parent=5 // pred_region
      %s2968 = ssub.s32 %s12, 2
      // Predicated region
      $region53: #{sage_forward.3} parent=51 // pred_check
        %p2969 = pneg %p177
      $region54: #{sage_forward.3} parent=51 // pred_check_branch
        %2971 = sbr.rel (%p2969) target = $region56
      $region55: #{sage_forward.3} parent=51 // pred_region
        %s2972 = smul.u32 32, %s18
        %p2973 = scmp.lt.s32.totalorder %s2972, 127
        %s2974 = scalar_select %p2973, %s2972, 127
        %s2975 = smul.addr %s2974, 8
        %s2976 = scalar_lea.vmem %s6, %s2975
      $region56: #{sage_forward.3} parent=51 // pred_fallthru
        _
    $region52: #{sage_forward.3} parent=5 // pred_fallthru
      _
  $region6: #{sage_forward.3} parent=0 // loop_footer
    %s16 = sadd.s32 1, %s12
  $region7: #{sage_forward.3} parent=0 // loop_footer_branch
    %11 = sbr.rel target = $region3
  $region8: #{sage_forward.3} parent=0 // loop_exit
    _

// kernel: sage_forward.2
$region0: #{sage_forward.2}
  #allocation0 [shape = 'u32[]', space=smem, size = 0x4, offset = 0x4, fixed_abs, tag = 'smem constant byte address 0x4 - core index']
  #allocation1 [shape = 'u32[72,128]{1,0:T(1,128)}', space=vmem, size = 0x9000, scoped, tag = 'internal scratch']
  %s0 = inlined_call_operand.vmem [shape: s8[1024,1024], index: 0, kind: input, shape index: {}]
  %s1 = inlined_call_operand.vmem [shape: bf16[1024,128], index: 1, kind: input, shape index: {}]
  %s2 = inlined_call_operand.vmem [shape: f32[1024,1], index: 2, kind: input, shape index: {}]
  %s3 = inlined_call_operand.vmem [shape: bf16[128,128], index: 3, kind: input, shape index: {}]
  %s4 = inlined_call_operand.vmem [shape: bf16[128,128], index: 4, kind: input, shape index: {}]
  %s5 = inlined_call_operand.vmem [shape: f32[1,128], index: 5, kind: input, shape index: {}]
  %s6 = inlined_call_operand.vmem [shape: bf16[1024,128], index: 6, kind: output, shape index: {}]
  %s7 = sld [smem:[#allocation0]]
  $region57: #{sage_forward.2} parent=0
    _
  %s9 = ssub.s32 1, %s7
  %s10 = scalar_select 0, %s9, %s7
  loop: start=0, step=1, limit=6
  $region2: #{sage_forward.2} parent=0 // loop_pre_header
    _
  $region3: #{sage_forward.2} parent=0 // loop_header
    %s12 = sphi 0, %s16
    %p13 = scmp.ge.s32.totalorder %s12, 6
    %s22 = sphi 0, %s24
    %s25 = sphi 0, %s22
    %s26 = sphi 0, %s25
    %s42 = sphi 0, %s26
    %s46 = sphi 0, %s46
    %s48 = sphi 0, %s46
    %s49 = sphi 0, %s48
    %s63 = sphi 0, %s49
    %s69 = sphi 0, %s71
    %s72 = sphi 0, %s69
    %s73 = sphi 0, %s72
    %s89 = sphi 0, %s73
    %s93 = sphi 0, %s93
    %s95 = sphi 0, %s93
    %s96 = sphi 0, %s95
    %s110 = sphi 0, %s96
    %s114 = sphi 0, %s114
    %s116 = sphi 0, %s114
    %s117 = sphi 0, %s116
    %s131 = sphi 0, %s117
    %s135 = sphi 0, %s135
    %s137 = sphi 0, %s135
    %s138 = sphi 0, %s137
    %s152 = sphi 0, %s138
    %s158 = sphi 0, %s160
    %s161 = sphi 0, %s158
    %s162 = sphi 0, %s161
    %s178 = sphi 0, %s162
  $region4: #{sage_forward.2} parent=0 // loop_header_branch
    %15 = sbr.rel (%p13) target = $region8
  $region5: #{sage_forward.2} parent=0 // loop_body
    %s17 = ssub.s32 %s12, 1
    %s18 = ssub.s32 %s12, 2
    %s19 = sadd.s32 %s12, 1
    %s20 = ssub.s32 %s12, %s19
    %p21 = scmp.eq.s32.totalorder %s20, 0
    %s23 = sadd.s32 %s22, 1
    %s24 = scalar_select %p21, %s22, %s23
    %p27 = pneg %p21
    %p28 = scmp.eq.s32.totalorder %s12, 3
    %p29 = por %p27, %p28
    %p30 = scmp.ne.s32.totalorder %s22, %s25
    %p31 = scmp.eq.s32.totalorder %s12, 0
    %p32 = por %p30, %p31
    %p33 = scmp.ne.s32.totalorder %s22, %s25
    %p34 = scmp.eq.s32.totalorder %s17, 3
    %p35 = por %p33, %p34
    %p36 = scmp.ne.s32.totalorder %s25, %s26
    %p37 = scmp.eq.s32.totalorder %s17, 0
    %p38 = por %p36, %p37
    %p39 = scmp.ne.s32.totalorder %s25, %s26
    %p40 = scmp.eq.s32.totalorder %s18, 3
    %p41 = por %p39, %p40
    %p43 = scmp.ne.s32.totalorder %s26, %s42
    %p44 = scmp.eq.s32.totalorder %s18, 0
    %p45 = por %p43, %p44
    %s47 = sadd.s32 %s46, 1
    %p50 = scmp.eq.s32.totalorder %s12, 3
    %p51 = scmp.ne.s32.totalorder %s46, %s48
    %p52 = scmp.eq.s32.totalorder %s12, 0
    %p53 = por %p51, %p52
    %p54 = scmp.ne.s32.totalorder %s46, %s48
    %p55 = scmp.eq.s32.totalorder %s17, 3
    %p56 = por %p54, %p55
    %p57 = scmp.ne.s32.totalorder %s48, %s49
    %p58 = scmp.eq.s32.totalorder %s17, 0
    %p59 = por %p57, %p58
    %p60 = scmp.ne.s32.totalorder %s48, %s49
    %p61 = scmp.eq.s32.totalorder %s18, 3
    %p62 = por %p60, %p61
    %p64 = scmp.ne.s32.totalorder %s49, %s63
    %p65 = scmp.eq.s32.totalorder %s18, 0
    %p66 = por %p64, %p65
    %s67 = ssub.s32 %s12, %s19
    %p68 = scmp.eq.s32.totalorder %s67, 0
    %s70 = sadd.s32 %s69, 1
    %s71 = scalar_select %p68, %s69, %s70
    %p74 = pneg %p68
    %p75 = scmp.eq.s32.totalorder %s12, 3
    %p76 = por %p74, %p75
    %p77 = scmp.ne.s32.totalorder %s69, %s72
    %p78 = scmp.eq.s32.totalorder %s12, 0
    %p79 = por %p77, %p78
    %p80 = scmp.ne.s32.totalorder %s69, %s72
    %p81 = scmp.eq.s32.totalorder %s17, 3
    %p82 = por %p80, %p81
    %p83 = scmp.ne.s32.totalorder %s72, %s73
    %p84 = scmp.eq.s32.totalorder %s17, 0
    %p85 = por %p83, %p84
    %p86 = scmp.ne.s32.totalorder %s72, %s73
    %p87 = scmp.eq.s32.totalorder %s18, 3
    %p88 = por %p86, %p87
    %p90 = scmp.ne.s32.totalorder %s73, %s89
    %p91 = scmp.eq.s32.totalorder %s18, 0
    %p92 = por %p90, %p91
    %s94 = sadd.s32 %s93, 1
    %p97 = scmp.eq.s32.totalorder %s12, 3
    %p98 = scmp.ne.s32.totalorder %s93, %s95
    %p99 = scmp.eq.s32.totalorder %s12, 0
    %p100 = por %p98, %p99
    %p101 = scmp.ne.s32.totalorder %s93, %s95
    %p102 = scmp.eq.s32.totalorder %s17, 3
    %p103 = por %p101, %p102
    %p104 = scmp.ne.s32.totalorder %s95, %s96
    %p105 = scmp.eq.s32.totalorder %s17, 0
    %p106 = por %p104, %p105
    %p107 = scmp.ne.s32.totalorder %s95, %s96
    %p108 = scmp.eq.s32.totalorder %s18, 3
    %p109 = por %p107, %p108
    %p111 = scmp.ne.s32.totalorder %s96, %s110
    %p112 = scmp.eq.s32.totalorder %s18, 0
    %p113 = por %p111, %p112
    %s115 = sadd.s32 %s114, 1
    %p118 = scmp.eq.s32.totalorder %s12, 3
    %p119 = scmp.ne.s32.totalorder %s114, %s116
    %p120 = scmp.eq.s32.totalorder %s12, 0
    %p121 = por %p119, %p120
    %p122 = scmp.ne.s32.totalorder %s114, %s116
    %p123 = scmp.eq.s32.totalorder %s17, 3
    %p124 = por %p122, %p123
    %p125 = scmp.ne.s32.totalorder %s116, %s117
    %p126 = scmp.eq.s32.totalorder %s17, 0
    %p127 = por %p125, %p126
    %p128 = scmp.ne.s32.totalorder %s116, %s117
    %p129 = scmp.eq.s32.totalorder %s18, 3
    %p130 = por %p128, %p129
    %p132 = scmp.ne.s32.totalorder %s117, %s131
    %p133 = scmp.eq.s32.totalorder %s18, 0
    %p134 = por %p132, %p133
    %s136 = sadd.s32 %s135, 1
    %p139 = scmp.eq.s32.totalorder %s12, 3
    %p140 = scmp.ne.s32.totalorder %s135, %s137
    %p141 = scmp.eq.s32.totalorder %s12, 0
    %p142 = por %p140, %p141
    %p143 = scmp.ne.s32.totalorder %s135, %s137
    %p144 = scmp.eq.s32.totalorder %s17, 3
    %p145 = por %p143, %p144
    %p146 = scmp.ne.s32.totalorder %s137, %s138
    %p147 = scmp.eq.s32.totalorder %s17, 0
    %p148 = por %p146, %p147
    %p149 = scmp.ne.s32.totalorder %s137, %s138
    %p150 = scmp.eq.s32.totalorder %s18, 3
    %p151 = por %p149, %p150
    %p153 = scmp.ne.s32.totalorder %s138, %s152
    %p154 = scmp.eq.s32.totalorder %s18, 0
    %p155 = por %p153, %p154
    %s156 = ssub.s32 %s12, %s19
    %p157 = scmp.eq.s32.totalorder %s156, 0
    %s159 = sadd.s32 %s158, 1
    %s160 = scalar_select %p157, %s158, %s159
    %p163 = pneg %p157
    %p164 = scmp.eq.s32.totalorder %s12, 3
    %p165 = por %p163, %p164
    %p166 = scmp.ne.s32.totalorder %s158, %s161
    %p167 = scmp.eq.s32.totalorder %s12, 0
    %p168 = por %p166, %p167
    %p169 = scmp.ne.s32.totalorder %s158, %s161
    %p170 = scmp.eq.s32.totalorder %s17, 3
    %p171 = por %p169, %p170
    %p172 = scmp.ne.s32.totalorder %s161, %s162
    %p173 = scmp.eq.s32.totalorder %s17, 0
    %p174 = por %p172, %p173
    %p175 = scmp.ne.s32.totalorder %s161, %s162
    %p176 = scmp.eq.s32.totalorder %s18, 3
    %p177 = por %p175, %p176
    %p179 = scmp.ne.s32.totalorder %s162, %s178
    %p180 = scmp.eq.s32.totalorder %s18, 0
    %p181 = por %p179, %p180
    %p182 = scmp.le.s32.totalorder 1, %s12
    %p183 = scmp.lt.s32.totalorder %s12, 5
    %p184 = pnand %p182, %p183
    %p185 = pneg %p184
    // Predicated region
    $region9: #{sage_forward.2} parent=5 // pred_check
      _
    $region10: #{sage_forward.2} parent=5 // pred_check_branch
      %187 = sbr.rel (%p184) target = $region12
    $region11: #{sage_forward.2} parent=5 // pred_region
      %s188 = ssub.s32 %s12, 1
      // Predicated region
      $region13: #{sage_forward.2} parent=11 // pred_check
        %p189 = pneg %p59
      $region14: #{sage_forward.2} parent=11 // pred_check_branch
        %191 = sbr.rel (%p189) target = $region16
      $region15: #{sage_forward.2} parent=11 // pred_region
        _
      $region16: #{sage_forward.2} parent=11 // pred_fallthru
        _
      // Predicated region
      $region17: #{sage_forward.2} parent=11 // pred_check
        %p192 = pneg %p106
      $region18: #{sage_forward.2} parent=11 // pred_check_branch
        %194 = sbr.rel (%p192) target = $region20
      $region19: #{sage_forward.2} parent=11 // pred_region
        _
      $region20: #{sage_forward.2} parent=11 // pred_fallthru
        _
      // Predicated region
      $region21: #{sage_forward.2} parent=11 // pred_check
        %p195 = pneg %p127
      $region22: #{sage_forward.2} parent=11 // pred_check_branch
        %197 = sbr.rel (%p195) target = $region24
      $region23: #{sage_forward.2} parent=11 // pred_region
        _
      $region24: #{sage_forward.2} parent=11 // pred_fallthru
        _
      // Predicated region
      $region25: #{sage_forward.2} parent=11 // pred_check
        %p198 = pneg %p148
      $region26: #{sage_forward.2} parent=11 // pred_check_branch
        %200 = sbr.rel (%p198) target = $region28
      $region27: #{sage_forward.2} parent=11 // pred_region
        _
      $region28: #{sage_forward.2} parent=11 // pred_fallthru
        _
    $region12: #{sage_forward.2} parent=5 // pred_fallthru
      _
    %p201 = scmp.lt.s32.totalorder %s12, 4
    // Predicated region
    $region29: #{sage_forward.2} parent=5 // pred_check
      %p202 = pneg %p201
    $region30: #{sage_forward.2} parent=5 // pred_check_branch
      %204 = sbr.rel (%p202) target = $region32
    $region31: #{sage_forward.2} parent=5 // pred_region
      // Predicated region
      $region33: #{sage_forward.2} parent=31 // pred_check
        %p205 = pneg %p32
      $region34: #{sage_forward.2} parent=31 // pred_check_branch
        %207 = sbr.rel (%p205) target = $region36
      $region35: #{sage_forward.2} parent=31 // pred_region
        %s208 = smul.u32 8, %s12
        %p209 = scmp.lt.s32.totalorder %s208, 31
        %s210 = scalar_select %p209, %s208, 31
        %s211 = smul.addr %s210, 8
        %s212 = smul.addr %s211, 8
        %s213 = scalar_lea.vmem %s0, %s212
        %s214 = smul.u32 8, %s12
      $region36: #{sage_forward.2} parent=31 // pred_fallthru
        _
      // Predicated region
      $region37: #{sage_forward.2} parent=31 // pred_check
        %p215 = pneg %p79
      $region38: #{sage_forward.2} parent=31 // pred_check_branch
        %217 = sbr.rel (%p215) target = $region40
      $region39: #{sage_forward.2} parent=31 // pred_region
        %s218 = smul.u32 32, %s12
        %p219 = scmp.lt.s32.totalorder %s218, 127
        %s220 = scalar_select %p219, %s218, 127
        %s221 = smul.addr %s220, 8
        %s222 = scalar_lea.vmem %s2, %s221
        %s223 = smul.u32 32, %s12
      $region40: #{sage_forward.2} parent=31 // pred_fallthru
        _
    $region32: #{sage_forward.2} parent=5 // pred_fallthru
      _
    %p224 = scmp.le.s32.totalorder 1, %s12
    %p225 = scmp.lt.s32.totalorder %s12, 5
    %p226 = pnand %p224, %p225
    %p227 = pneg %p226
    // Predicated region
    $region41: #{sage_forward.2} parent=5 // pred_check
      _
    $region42: #{sage_forward.2} parent=5 // pred_check_branch
      %229 = sbr.rel (%p226) target = $region44
    $region43: #{sage_forward.2} parent=5 // pred_region
      %s230 = ssub.s32 %s12, 1
      %s231 = smul.u32 8, %s17
      %p232 = scmp.lt.s32.totalorder %s231, 31
      %s233 = scalar_select %p232, %s231, 31
      %s234 = smul.addr %s233, 8
      %s235 = smul.addr %s234, 8
      %s236 = scalar_lea.vmem %s0, %s235
      %p237 = pneg %p38
      %p238 = pneg %p35
      %p239 = pneg %p59
      %p240 = pneg %p56
      %s241 = smul.u32 32, %s17
      %p242 = scmp.lt.s32.totalorder %s241, 127
      %s243 = scalar_select %p242, %s241, 127
      %s244 = smul.addr %s243, 8
      %s245 = scalar_lea.vmem %s2, %s244
      %p246 = pneg %p85
      %p247 = pneg %p82
      %p248 = pneg %p106
      %p249 = pneg %p103
      %p250 = pneg %p127
      %p251 = pneg %p124
      %p252 = pneg %p148
      %p253 = pneg %p145
      %p254 = pneg %p174
      %p255 = pneg %p171
      %s256 = smul.u32 32, %s17
      %p257 = scmp.lt.s32.totalorder %s256, 127
      %s258 = scalar_select %p257, %s256, 127
      %s259 = smul.addr %s258, 4
      %s260 = scalar_lea.vmem %s6, %s259
      %s261 = smul.u32 8, %s17
      %p262 = scmp.lt.s32.totalorder %s261, 31
      %s263 = scalar_select %p262, %s261, 31
      %s264 = smul.addr %s263, 8
      %s265 = smul.addr %s264, 8
      %s266 = scalar_lea.vmem %s0, %s265
      %s267 = smul.u32 8, %s17
      %s268 = smul.u32 32, %s17
      %p269 = scmp.lt.s32.totalorder %s268, 127
      %s270 = scalar_select %p269, %s268, 127
      %s271 = smul.addr %s270, 8
      %s272 = scalar_lea.vmem %s2, %s271
      %s273 = smul.u32 32, %s17
      %s274 = smul.u32 32, %s17
      %p275 = scmp.lt.s32.totalorder %s274, 127
      %s276 = scalar_select %p275, %s274, 127
      %s277 = smul.addr %s276, 4
      %s278 = scalar_lea.vmem %s6, %s277
      %s279 = smul.u32 32, %s17
      %s280 = smul.u32 %s17, 256
      %s281 = sshra.s32 %s280, 3
      %s282 = sand.u32 %s280, 7
      %s283 = smul.addr %s281, 4
      %s284 = scalar_lea.vmem %s1, %s283
      %v285 = vld [vmem:[%s284] sm:$0xf]
      %v286 = vld [vmem:[%s284 + $0x4] sm:$0xf]
      %v287 = vld [vmem:[%s284 + $0x8] sm:$0xf]
      %v288 = vld [vmem:[%s284 + $0xc] sm:$0xf]
      %v289 = vld [vmem:[%s284 + $0x10] sm:$0xf]
      %v290 = vld [vmem:[%s284 + $0x14] sm:$0xf]
      %v291 = vld [vmem:[%s284 + $0x18] sm:$0xf]
      %v292 = vld [vmem:[%s284 + $0x1c] sm:$0xf]
      %v293 = vld [vmem:[%s284 + $0x20] sm:$0xf]
      %v294 = vld [vmem:[%s284 + $0x24] sm:$0xf]
      %v295 = vld [vmem:[%s284 + $0x28] sm:$0xf]
      %v296 = vld [vmem:[%s284 + $0x2c] sm:$0xf]
      %v297 = vld [vmem:[%s284 + $0x30] sm:$0xf]
      %v298 = vld [vmem:[%s284 + $0x34] sm:$0xf]
      %v299 = vld [vmem:[%s284 + $0x38] sm:$0xf]
      %v300 = vld [vmem:[%s284 + $0x3c] sm:$0xf]
      %v301 = vld [vmem:[%s284 + $0x40] sm:$0xf]
      %v302 = vld [vmem:[%s284 + $0x44] sm:$0xf]
      %v303 = vld [vmem:[%s284 + $0x48] sm:$0xf]
      %v304 = vld [vmem:[%s284 + $0x4c] sm:$0xf]
      %v305 = vld [vmem:[%s284 + $0x50] sm:$0xf]
      %v306 = vld [vmem:[%s284 + $0x54] sm:$0xf]
      %v307 = vld [vmem:[%s284 + $0x58] sm:$0xf]
      %v308 = vld [vmem:[%s284 + $0x5c] sm:$0xf]
      %v309 = vld [vmem:[%s284 + $0x60] sm:$0xf]
      %v310 = vld [vmem:[%s284 + $0x64] sm:$0xf]
      %v311 = vld [vmem:[%s284 + $0x68] sm:$0xf]
      %v312 = vld [vmem:[%s284 + $0x6c] sm:$0xf]
      %v313 = vld [vmem:[%s284 + $0x70] sm:$0xf]
      %v314 = vld [vmem:[%s284 + $0x74] sm:$0xf]
      %v315 = vld [vmem:[%s284 + $0x78] sm:$0xf]
      %v316 = vld [vmem:[%s284 + $0x7c] sm:$0xf]
      %v317 = vld [vmem:[%s266] sm:$0xff]
      %v318 = vld [vmem:[%s266 + $0x8] sm:$0xff]
      %v319 = vld [vmem:[%s266 + $0x10] sm:$0xff]
      %v320 = vld [vmem:[%s266 + $0x18] sm:$0xff]
      %v321 = vld [vmem:[%s266 + $0x20] sm:$0xff]
      %v322 = vld [vmem:[%s266 + $0x28] sm:$0xff]
      %v323 = vld [vmem:[%s266 + $0x30] sm:$0xff]
      %v324 = vld [vmem:[%s266 + $0x38] sm:$0xff]
      %v325 = vld [vmem:[%s266 + $0x40] sm:$0xff]
      %v326 = vld [vmem:[%s266 + $0x48] sm:$0xff]
      %v327 = vld [vmem:[%s266 + $0x50] sm:$0xff]
      %v328 = vld [vmem:[%s266 + $0x58] sm:$0xff]
      %v329 = vld [vmem:[%s266 + $0x60] sm:$0xff]
      %v330 = vld [vmem:[%s266 + $0x68] sm:$0xff]
      %v331 = vld [vmem:[%s266 + $0x70] sm:$0xff]
      %v332 = vld [vmem:[%s266 + $0x78] sm:$0xff]
      %v333 = vld [vmem:[%s266 + $0x80] sm:$0xff]
      %v334 = vld [vmem:[%s266 + $0x88] sm:$0xff]
      %v335 = vld [vmem:[%s266 + $0x90] sm:$0xff]
      %v336 = vld [vmem:[%s266 + $0x98] sm:$0xff]
      %v337 = vld [vmem:[%s266 + $0xa0] sm:$0xff]
      %v338 = vld [vmem:[%s266 + $0xa8] sm:$0xff]
      %v339 = vld [vmem:[%s266 + $0xb0] sm:$0xff]
      %v340 = vld [vmem:[%s266 + $0xb8] sm:$0xff]
      %v341 = vld [vmem:[%s266 + $0xc0] sm:$0xff]
      %v342 = vld [vmem:[%s266 + $0xc8] sm:$0xff]
      %v343 = vld [vmem:[%s266 + $0xd0] sm:$0xff]
      %v344 = vld [vmem:[%s266 + $0xd8] sm:$0xff]
      %v345 = vld [vmem:[%s266 + $0xe0] sm:$0xff]
      %v346 = vld [vmem:[%s266 + $0xe8] sm:$0xff]
      %v347 = vld [vmem:[%s266 + $0xf0] sm:$0xff]
      %v348 = vld [vmem:[%s266 + $0xf8] sm:$0xff]
      %v349 = vld [vmem:[%s266 + $0x100] sm:$0xff]
      %v350 = vld [vmem:[%s266 + $0x108] sm:$0xff]
      %v351 = vld [vmem:[%s266 + $0x110] sm:$0xff]
      %v352 = vld [vmem:[%s266 + $0x118] sm:$0xff]
      %v353 = vld [vmem:[%s266 + $0x120] sm:$0xff]
      %v354 = vld [vmem:[%s266 + $0x128] sm:$0xff]
      %v355 = vld [vmem:[%s266 + $0x130] sm:$0xff]
      %v356 = vld [vmem:[%s266 + $0x138] sm:$0xff]
      %v357 = vld [vmem:[%s266 + $0x140] sm:$0xff]
      %v358 = vld [vmem:[%s266 + $0x148] sm:$0xff]
      %v359 = vld [vmem:[%s266 + $0x150] sm:$0xff]
      %v360 = vld [vmem:[%s266 + $0x158] sm:$0xff]
      %v361 = vld [vmem:[%s266 + $0x160] sm:$0xff]
      %v362 = vld [vmem:[%s266 + $0x168] sm:$0xff]
      %v363 = vld [vmem:[%s266 + $0x170] sm:$0xff]
      %v364 = vld [vmem:[%s266 + $0x178] sm:$0xff]
      %v365 = vld [vmem:[%s266 + $0x180] sm:$0xff]
      %v366 = vld [vmem:[%s266 + $0x188] sm:$0xff]
      %v367 = vld [vmem:[%s266 + $0x190] sm:$0xff]
      %v368 = vld [vmem:[%s266 + $0x198] sm:$0xff]
      %v369 = vld [vmem:[%s266 + $0x1a0] sm:$0xff]
      %v370 = vld [vmem:[%s266 + $0x1a8] sm:$0xff]
      %v371 = vld [vmem:[%s266 + $0x1b0] sm:$0xff]
      %v372 = vld [vmem:[%s266 + $0x1b8] sm:$0xff]
      %v373 = vld [vmem:[%s266 + $0x1c0] sm:$0xff]
      %v374 = vld [vmem:[%s266 + $0x1c8] sm:$0xff]
      %v375 = vld [vmem:[%s266 + $0x1d0] sm:$0xff]
      %v376 = vld [vmem:[%s266 + $0x1d8] sm:$0xff]
      %v377 = vld [vmem:[%s266 + $0x1e0] sm:$0xff]
      %v378 = vld [vmem:[%s266 + $0x1e8] sm:$0xff]
      %v379 = vld [vmem:[%s266 + $0x1f0] sm:$0xff]
      %v380 = vld [vmem:[%s266 + $0x1f8] sm:$0xff]
      %v381 = vunpack.c.0.s8 %v317
      %v382 = vunpack.c.0.s8 %v318
      %v383 = vunpack.c.0.s8 %v319
      %v384 = vunpack.c.0.s8 %v320
      %v385 = vunpack.c.0.s8 %v321
      %v386 = vunpack.c.0.s8 %v322
      %v387 = vunpack.c.0.s8 %v323
      %v388 = vunpack.c.0.s8 %v324
      %v389 = vunpack.c.1.s8 %v317
      %v390 = vunpack.c.1.s8 %v318
      %v391 = vunpack.c.1.s8 %v319
      %v392 = vunpack.c.1.s8 %v320
      %v393 = vunpack.c.1.s8 %v321
      %v394 = vunpack.c.1.s8 %v322
      %v395 = vunpack.c.1.s8 %v323
      %v396 = vunpack.c.1.s8 %v324
      %v397 = vunpack.c.2.s8 %v317
      %v398 = vunpack.c.2.s8 %v318
      %v399 = vunpack.c.2.s8 %v319
      %v400 = vunpack.c.2.s8 %v320
      %v401 = vunpack.c.2.s8 %v321
      %v402 = vunpack.c.2.s8 %v322
      %v403 = vunpack.c.2.s8 %v323
      %v404 = vunpack.c.2.s8 %v324
      %v405 = vunpack.c.3.s8 %v317
      %v406 = vunpack.c.3.s8 %v318
      %v407 = vunpack.c.3.s8 %v319
      %v408 = vunpack.c.3.s8 %v320
      %v409 = vunpack.c.3.s8 %v321
      %v410 = vunpack.c.3.s8 %v322
      %v411 = vunpack.c.3.s8 %v323
      %v412 = vunpack.c.3.s8 %v324
      %v413 = vunpack.c.0.s8 %v325
      %v414 = vunpack.c.0.s8 %v326
      %v415 = vunpack.c.0.s8 %v327
      %v416 = vunpack.c.0.s8 %v328
      %v417 = vunpack.c.0.s8 %v329
      %v418 = vunpack.c.0.s8 %v330
      %v419 = vunpack.c.0.s8 %v331
      %v420 = vunpack.c.0.s8 %v332
      %v421 = vunpack.c.1.s8 %v325
      %v422 = vunpack.c.1.s8 %v326
      %v423 = vunpack.c.1.s8 %v327
      %v424 = vunpack.c.1.s8 %v328
      %v425 = vunpack.c.1.s8 %v329
      %v426 = vunpack.c.1.s8 %v330
      %v427 = vunpack.c.1.s8 %v331
      %v428 = vunpack.c.1.s8 %v332
      %v429 = vunpack.c.2.s8 %v325
      %v430 = vunpack.c.2.s8 %v326
      %v431 = vunpack.c.2.s8 %v327
      %v432 = vunpack.c.2.s8 %v328
      %v433 = vunpack.c.2.s8 %v329
      %v434 = vunpack.c.2.s8 %v330
      %v435 = vunpack.c.2.s8 %v331
      %v436 = vunpack.c.2.s8 %v332
      %v437 = vunpack.c.3.s8 %v325
      %v438 = vunpack.c.3.s8 %v326
      %v439 = vunpack.c.3.s8 %v327
      %v440 = vunpack.c.3.s8 %v328
      %v441 = vunpack.c.3.s8 %v329
      %v442 = vunpack.c.3.s8 %v330
      %v443 = vunpack.c.3.s8 %v331
      %v444 = vunpack.c.3.s8 %v332
      %v445 = vunpack.c.0.s8 %v333
      %v446 = vunpack.c.0.s8 %v334
      %v447 = vunpack.c.0.s8 %v335
      %v448 = vunpack.c.0.s8 %v336
      %v449 = vunpack.c.0.s8 %v337
      %v450 = vunpack.c.0.s8 %v338
      %v451 = vunpack.c.0.s8 %v339
      %v452 = vunpack.c.0.s8 %v340
      %v453 = vunpack.c.1.s8 %v333
      %v454 = vunpack.c.1.s8 %v334
      %v455 = vunpack.c.1.s8 %v335
      %v456 = vunpack.c.1.s8 %v336
      %v457 = vunpack.c.1.s8 %v337
      %v458 = vunpack.c.1.s8 %v338
      %v459 = vunpack.c.1.s8 %v339
      %v460 = vunpack.c.1.s8 %v340
      %v461 = vunpack.c.2.s8 %v333
      %v462 = vunpack.c.2.s8 %v334
      %v463 = vunpack.c.2.s8 %v335
      %v464 = vunpack.c.2.s8 %v336
      %v465 = vunpack.c.2.s8 %v337
      %v466 = vunpack.c.2.s8 %v338
      %v467 = vunpack.c.2.s8 %v339
      %v468 = vunpack.c.2.s8 %v340
      %v469 = vunpack.c.3.s8 %v333
      %v470 = vunpack.c.3.s8 %v334
      %v471 = vunpack.c.3.s8 %v335
      %v472 = vunpack.c.3.s8 %v336
      %v473 = vunpack.c.3.s8 %v337
      %v474 = vunpack.c.3.s8 %v338
      %v475 = vunpack.c.3.s8 %v339
      %v476 = vunpack.c.3.s8 %v340
      %v477 = vunpack.c.0.s8 %v341
      %v478 = vunpack.c.0.s8 %v342
      %v479 = vunpack.c.0.s8 %v343
      %v480 = vunpack.c.0.s8 %v344
      %v481 = vunpack.c.0.s8 %v345
      %v482 = vunpack.c.0.s8 %v346
      %v483 = vunpack.c.0.s8 %v347
      %v484 = vunpack.c.0.s8 %v348
      %v485 = vunpack.c.1.s8 %v341
      %v486 = vunpack.c.1.s8 %v342
      %v487 = vunpack.c.1.s8 %v343
      %v488 = vunpack.c.1.s8 %v344
      %v489 = vunpack.c.1.s8 %v345
      %v490 = vunpack.c.1.s8 %v346
      %v491 = vunpack.c.1.s8 %v347
      %v492 = vunpack.c.1.s8 %v348
      %v493 = vunpack.c.2.s8 %v341
      %v494 = vunpack.c.2.s8 %v342
      %v495 = vunpack.c.2.s8 %v343
      %v496 = vunpack.c.2.s8 %v344
      %v497 = vunpack.c.2.s8 %v345
      %v498 = vunpack.c.2.s8 %v346
      %v499 = vunpack.c.2.s8 %v347
      %v500 = vunpack.c.2.s8 %v348
      %v501 = vunpack.c.3.s8 %v341
      %v502 = vunpack.c.3.s8 %v342
      %v503 = vunpack.c.3.s8 %v343
      %v504 = vunpack.c.3.s8 %v344
      %v505 = vunpack.c.3.s8 %v345
      %v506 = vunpack.c.3.s8 %v346
      %v507 = vunpack.c.3.s8 %v347
      %v508 = vunpack.c.3.s8 %v348
      %v509 = vunpack.c.0.s8 %v349
      %v510 = vunpack.c.0.s8 %v350
      %v511 = vunpack.c.0.s8 %v351
      %v512 = vunpack.c.0.s8 %v352
      %v513 = vunpack.c.0.s8 %v353
      %v514 = vunpack.c.0.s8 %v354
      %v515 = vunpack.c.0.s8 %v355
      %v516 = vunpack.c.0.s8 %v356
      %v517 = vunpack.c.1.s8 %v349
      %v518 = vunpack.c.1.s8 %v350
      %v519 = vunpack.c.1.s8 %v351
      %v520 = vunpack.c.1.s8 %v352
      %v521 = vunpack.c.1.s8 %v353
      %v522 = vunpack.c.1.s8 %v354
      %v523 = vunpack.c.1.s8 %v355
      %v524 = vunpack.c.1.s8 %v356
      %v525 = vunpack.c.2.s8 %v349
      %v526 = vunpack.c.2.s8 %v350
      %v527 = vunpack.c.2.s8 %v351
      %v528 = vunpack.c.2.s8 %v352
      %v529 = vunpack.c.2.s8 %v353
      %v530 = vunpack.c.2.s8 %v354
      %v531 = vunpack.c.2.s8 %v355
      %v532 = vunpack.c.2.s8 %v356
      %v533 = vunpack.c.3.s8 %v349
      %v534 = vunpack.c.3.s8 %v350
      %v535 = vunpack.c.3.s8 %v351
      %v536 = vunpack.c.3.s8 %v352
      %v537 = vunpack.c.3.s8 %v353
      %v538 = vunpack.c.3.s8 %v354
      %v539 = vunpack.c.3.s8 %v355
      %v540 = vunpack.c.3.s8 %v356
      %v541 = vunpack.c.0.s8 %v357
      %v542 = vunpack.c.0.s8 %v358
      %v543 = vunpack.c.0.s8 %v359
      %v544 = vunpack.c.0.s8 %v360
      %v545 = vunpack.c.0.s8 %v361
      %v546 = vunpack.c.0.s8 %v362
      %v547 = vunpack.c.0.s8 %v363
      %v548 = vunpack.c.0.s8 %v364
      %v549 = vunpack.c.1.s8 %v357
      %v550 = vunpack.c.1.s8 %v358
      %v551 = vunpack.c.1.s8 %v359
      %v552 = vunpack.c.1.s8 %v360
      %v553 = vunpack.c.1.s8 %v361
      %v554 = vunpack.c.1.s8 %v362
      %v555 = vunpack.c.1.s8 %v363
      %v556 = vunpack.c.1.s8 %v364
      %v557 = vunpack.c.2.s8 %v357
      %v558 = vunpack.c.2.s8 %v358
      %v559 = vunpack.c.2.s8 %v359
      %v560 = vunpack.c.2.s8 %v360
      %v561 = vunpack.c.2.s8 %v361
      %v562 = vunpack.c.2.s8 %v362
      %v563 = vunpack.c.2.s8 %v363
      %v564 = vunpack.c.2.s8 %v364
      %v565 = vunpack.c.3.s8 %v357
      %v566 = vunpack.c.3.s8 %v358
      %v567 = vunpack.c.3.s8 %v359
      %v568 = vunpack.c.3.s8 %v360
      %v569 = vunpack.c.3.s8 %v361
      %v570 = vunpack.c.3.s8 %v362
      %v571 = vunpack.c.3.s8 %v363
      %v572 = vunpack.c.3.s8 %v364
      %v573 = vunpack.c.0.s8 %v365
      %v574 = vunpack.c.0.s8 %v366
      %v575 = vunpack.c.0.s8 %v367
      %v576 = vunpack.c.0.s8 %v368
      %v577 = vunpack.c.0.s8 %v369
      %v578 = vunpack.c.0.s8 %v370
      %v579 = vunpack.c.0.s8 %v371
      %v580 = vunpack.c.0.s8 %v372
      %v581 = vunpack.c.1.s8 %v365
      %v582 = vunpack.c.1.s8 %v366
      %v583 = vunpack.c.1.s8 %v367
      %v584 = vunpack.c.1.s8 %v368
      %v585 = vunpack.c.1.s8 %v369
      %v586 = vunpack.c.1.s8 %v370
      %v587 = vunpack.c.1.s8 %v371
      %v588 = vunpack.c.1.s8 %v372
      %v589 = vunpack.c.2.s8 %v365
      %v590 = vunpack.c.2.s8 %v366
      %v591 = vunpack.c.2.s8 %v367
      %v592 = vunpack.c.2.s8 %v368
      %v593 = vunpack.c.2.s8 %v369
      %v594 = vunpack.c.2.s8 %v370
      %v595 = vunpack.c.2.s8 %v371
      %v596 = vunpack.c.2.s8 %v372
      %v597 = vunpack.c.3.s8 %v365
      %v598 = vunpack.c.3.s8 %v366
      %v599 = vunpack.c.3.s8 %v367
      %v600 = vunpack.c.3.s8 %v368
      %v601 = vunpack.c.3.s8 %v369
      %v602 = vunpack.c.3.s8 %v370
      %v603 = vunpack.c.3.s8 %v371
      %v604 = vunpack.c.3.s8 %v372
      %v605 = vunpack.c.0.s8 %v373
      %v606 = vunpack.c.0.s8 %v374
      %v607 = vunpack.c.0.s8 %v375
      %v608 = vunpack.c.0.s8 %v376
      %v609 = vunpack.c.0.s8 %v377
      %v610 = vunpack.c.0.s8 %v378
      %v611 = vunpack.c.0.s8 %v379
      %v612 = vunpack.c.0.s8 %v380
      %v613 = vunpack.c.1.s8 %v373
      %v614 = vunpack.c.1.s8 %v374
      %v615 = vunpack.c.1.s8 %v375
      %v616 = vunpack.c.1.s8 %v376
      %v617 = vunpack.c.1.s8 %v377
      %v618 = vunpack.c.1.s8 %v378
      %v619 = vunpack.c.1.s8 %v379
      %v620 = vunpack.c.1.s8 %v380
      %v621 = vunpack.c.2.s8 %v373
      %v622 = vunpack.c.2.s8 %v374
      %v623 = vunpack.c.2.s8 %v375
      %v624 = vunpack.c.2.s8 %v376
      %v625 = vunpack.c.2.s8 %v377
      %v626 = vunpack.c.2.s8 %v378
      %v627 = vunpack.c.2.s8 %v379
      %v628 = vunpack.c.2.s8 %v380
      %v629 = vunpack.c.3.s8 %v373
      %v630 = vunpack.c.3.s8 %v374
      %v631 = vunpack.c.3.s8 %v375
      %v632 = vunpack.c.3.s8 %v376
      %v633 = vunpack.c.3.s8 %v377
      %v634 = vunpack.c.3.s8 %v378
      %v635 = vunpack.c.3.s8 %v379
      %v636 = vunpack.c.3.s8 %v380
      %v637 = vcvt.s32.f32 %v381
      %v638 = vcvt.s32.f32 %v382
      %v639 = vcvt.s32.f32 %v383
      %v640 = vcvt.s32.f32 %v384
      %v641 = vcvt.s32.f32 %v385
      %v642 = vcvt.s32.f32 %v386
      %v643 = vcvt.s32.f32 %v387
      %v644 = vcvt.s32.f32 %v388
      %v645 = vcvt.s32.f32 %v389
      %v646 = vcvt.s32.f32 %v390
      %v647 = vcvt.s32.f32 %v391
      %v648 = vcvt.s32.f32 %v392
      %v649 = vcvt.s32.f32 %v393
      %v650 = vcvt.s32.f32 %v394
      %v651 = vcvt.s32.f32 %v395
      %v652 = vcvt.s32.f32 %v396
      %v653 = vcvt.s32.f32 %v397
      %v654 = vcvt.s32.f32 %v398
      %v655 = vcvt.s32.f32 %v399
      %v656 = vcvt.s32.f32 %v400
      %v657 = vcvt.s32.f32 %v401
      %v658 = vcvt.s32.f32 %v402
      %v659 = vcvt.s32.f32 %v403
      %v660 = vcvt.s32.f32 %v404
      %v661 = vcvt.s32.f32 %v405
      %v662 = vcvt.s32.f32 %v406
      %v663 = vcvt.s32.f32 %v407
      %v664 = vcvt.s32.f32 %v408
      %v665 = vcvt.s32.f32 %v409
      %v666 = vcvt.s32.f32 %v410
      %v667 = vcvt.s32.f32 %v411
      %v668 = vcvt.s32.f32 %v412
      %v669 = vcvt.s32.f32 %v413
      %v670 = vcvt.s32.f32 %v414
      %v671 = vcvt.s32.f32 %v415
      %v672 = vcvt.s32.f32 %v416
      %v673 = vcvt.s32.f32 %v417
      %v674 = vcvt.s32.f32 %v418
      %v675 = vcvt.s32.f32 %v419
      %v676 = vcvt.s32.f32 %v420
      %v677 = vcvt.s32.f32 %v421
      %v678 = vcvt.s32.f32 %v422
      %v679 = vcvt.s32.f32 %v423
      %v680 = vcvt.s32.f32 %v424
      %v681 = vcvt.s32.f32 %v425
      %v682 = vcvt.s32.f32 %v426
      %v683 = vcvt.s32.f32 %v427
      %v684 = vcvt.s32.f32 %v428
      %v685 = vcvt.s32.f32 %v429
      %v686 = vcvt.s32.f32 %v430
      %v687 = vcvt.s32.f32 %v431
      %v688 = vcvt.s32.f32 %v432
      %v689 = vcvt.s32.f32 %v433
      %v690 = vcvt.s32.f32 %v434
      %v691 = vcvt.s32.f32 %v435
      %v692 = vcvt.s32.f32 %v436
      %v693 = vcvt.s32.f32 %v437
      %v694 = vcvt.s32.f32 %v438
      %v695 = vcvt.s32.f32 %v439
      %v696 = vcvt.s32.f32 %v440
      %v697 = vcvt.s32.f32 %v441
      %v698 = vcvt.s32.f32 %v442
      %v699 = vcvt.s32.f32 %v443
      %v700 = vcvt.s32.f32 %v444
      %v701 = vcvt.s32.f32 %v445
      %v702 = vcvt.s32.f32 %v446
      %v703 = vcvt.s32.f32 %v447
      %v704 = vcvt.s32.f32 %v448
      %v705 = vcvt.s32.f32 %v449
      %v706 = vcvt.s32.f32 %v450
      %v707 = vcvt.s32.f32 %v451
      %v708 = vcvt.s32.f32 %v452
      %v709 = vcvt.s32.f32 %v453
      %v710 = vcvt.s32.f32 %v454
      %v711 = vcvt.s32.f32 %v455
      %v712 = vcvt.s32.f32 %v456
      %v713 = vcvt.s32.f32 %v457
      %v714 = vcvt.s32.f32 %v458
      %v715 = vcvt.s32.f32 %v459
      %v716 = vcvt.s32.f32 %v460
      %v717 = vcvt.s32.f32 %v461
      %v718 = vcvt.s32.f32 %v462
      %v719 = vcvt.s32.f32 %v463
      %v720 = vcvt.s32.f32 %v464
      %v721 = vcvt.s32.f32 %v465
      %v722 = vcvt.s32.f32 %v466
      %v723 = vcvt.s32.f32 %v467
      %v724 = vcvt.s32.f32 %v468
      %v725 = vcvt.s32.f32 %v469
      %v726 = vcvt.s32.f32 %v470
      %v727 = vcvt.s32.f32 %v471
      %v728 = vcvt.s32.f32 %v472
      %v729 = vcvt.s32.f32 %v473
      %v730 = vcvt.s32.f32 %v474
      %v731 = vcvt.s32.f32 %v475
      %v732 = vcvt.s32.f32 %v476
      %v733 = vcvt.s32.f32 %v477
      %v734 = vcvt.s32.f32 %v478
      %v735 = vcvt.s32.f32 %v479
      %v736 = vcvt.s32.f32 %v480
      %v737 = vcvt.s32.f32 %v481
      %v738 = vcvt.s32.f32 %v482
      %v739 = vcvt.s32.f32 %v483
      %v740 = vcvt.s32.f32 %v484
      %v741 = vcvt.s32.f32 %v485
      %v742 = vcvt.s32.f32 %v486
      %v743 = vcvt.s32.f32 %v487
      %v744 = vcvt.s32.f32 %v488
      %v745 = vcvt.s32.f32 %v489
      %v746 = vcvt.s32.f32 %v490
      %v747 = vcvt.s32.f32 %v491
      %v748 = vcvt.s32.f32 %v492
      %v749 = vcvt.s32.f32 %v493
      %v750 = vcvt.s32.f32 %v494
      %v751 = vcvt.s32.f32 %v495
      %v752 = vcvt.s32.f32 %v496
      %v753 = vcvt.s32.f32 %v497
      %v754 = vcvt.s32.f32 %v498
      %v755 = vcvt.s32.f32 %v499
      %v756 = vcvt.s32.f32 %v500
      %v757 = vcvt.s32.f32 %v501
      %v758 = vcvt.s32.f32 %v502
      %v759 = vcvt.s32.f32 %v503
      %v760 = vcvt.s32.f32 %v504
      %v761 = vcvt.s32.f32 %v505
      %v762 = vcvt.s32.f32 %v506
      %v763 = vcvt.s32.f32 %v507
      %v764 = vcvt.s32.f32 %v508
      %v765 = vcvt.s32.f32 %v509
      %v766 = vcvt.s32.f32 %v510
      %v767 = vcvt.s32.f32 %v511
      %v768 = vcvt.s32.f32 %v512
      %v769 = vcvt.s32.f32 %v513
      %v770 = vcvt.s32.f32 %v514
      %v771 = vcvt.s32.f32 %v515
      %v772 = vcvt.s32.f32 %v516
      %v773 = vcvt.s32.f32 %v517
      %v774 = vcvt.s32.f32 %v518
      %v775 = vcvt.s32.f32 %v519
      %v776 = vcvt.s32.f32 %v520
      %v777 = vcvt.s32.f32 %v521
      %v778 = vcvt.s32.f32 %v522
      %v779 = vcvt.s32.f32 %v523
      %v780 = vcvt.s32.f32 %v524
      %v781 = vcvt.s32.f32 %v525
      %v782 = vcvt.s32.f32 %v526
      %v783 = vcvt.s32.f32 %v527
      %v784 = vcvt.s32.f32 %v528
      %v785 = vcvt.s32.f32 %v529
      %v786 = vcvt.s32.f32 %v530
      %v787 = vcvt.s32.f32 %v531
      %v788 = vcvt.s32.f32 %v532
      %v789 = vcvt.s32.f32 %v533
      %v790 = vcvt.s32.f32 %v534
      %v791 = vcvt.s32.f32 %v535
      %v792 = vcvt.s32.f32 %v536
      %v793 = vcvt.s32.f32 %v537
      %v794 = vcvt.s32.f32 %v538
      %v795 = vcvt.s32.f32 %v539
      %v796 = vcvt.s32.f32 %v540
      %v797 = vcvt.s32.f32 %v541
      %v798 = vcvt.s32.f32 %v542
      %v799 = vcvt.s32.f32 %v543
      %v800 = vcvt.s32.f32 %v544
      %v801 = vcvt.s32.f32 %v545
      %v802 = vcvt.s32.f32 %v546
      %v803 = vcvt.s32.f32 %v547
      %v804 = vcvt.s32.f32 %v548
      %v805 = vcvt.s32.f32 %v549
      %v806 = vcvt.s32.f32 %v550
      %v807 = vcvt.s32.f32 %v551
      %v808 = vcvt.s32.f32 %v552
      %v809 = vcvt.s32.f32 %v553
      %v810 = vcvt.s32.f32 %v554
      %v811 = vcvt.s32.f32 %v555
      %v812 = vcvt.s32.f32 %v556
      %v813 = vcvt.s32.f32 %v557
      %v814 = vcvt.s32.f32 %v558
      %v815 = vcvt.s32.f32 %v559
      %v816 = vcvt.s32.f32 %v560
      %v817 = vcvt.s32.f32 %v561
      %v818 = vcvt.s32.f32 %v562
      %v819 = vcvt.s32.f32 %v563
      %v820 = vcvt.s32.f32 %v564
      %v821 = vcvt.s32.f32 %v565
      %v822 = vcvt.s32.f32 %v566
      %v823 = vcvt.s32.f32 %v567
      %v824 = vcvt.s32.f32 %v568
      %v825 = vcvt.s32.f32 %v569
      %v826 = vcvt.s32.f32 %v570
      %v827 = vcvt.s32.f32 %v571
      %v828 = vcvt.s32.f32 %v572
      %v829 = vcvt.s32.f32 %v573
      %v830 = vcvt.s32.f32 %v574
      %v831 = vcvt.s32.f32 %v575
      %v832 = vcvt.s32.f32 %v576
      %v833 = vcvt.s32.f32 %v577
      %v834 = vcvt.s32.f32 %v578
      %v835 = vcvt.s32.f32 %v579
      %v836 = vcvt.s32.f32 %v580
      %v837 = vcvt.s32.f32 %v581
      %v838 = vcvt.s32.f32 %v582
      %v839 = vcvt.s32.f32 %v583
      %v840 = vcvt.s32.f32 %v584
      %v841 = vcvt.s32.f32 %v585
      %v842 = vcvt.s32.f32 %v586
      %v843 = vcvt.s32.f32 %v587
      %v844 = vcvt.s32.f32 %v588
      %v845 = vcvt.s32.f32 %v589
      %v846 = vcvt.s32.f32 %v590
      %v847 = vcvt.s32.f32 %v591
      %v848 = vcvt.s32.f32 %v592
      %v849 = vcvt.s32.f32 %v593
      %v850 = vcvt.s32.f32 %v594
      %v851 = vcvt.s32.f32 %v595
      %v852 = vcvt.s32.f32 %v596
      %v853 = vcvt.s32.f32 %v597
      %v854 = vcvt.s32.f32 %v598
      %v855 = vcvt.s32.f32 %v599
      %v856 = vcvt.s32.f32 %v600
      %v857 = vcvt.s32.f32 %v601
      %v858 = vcvt.s32.f32 %v602
      %v859 = vcvt.s32.f32 %v603
      %v860 = vcvt.s32.f32 %v604
      %v861 = vcvt.s32.f32 %v605
      %v862 = vcvt.s32.f32 %v606
      %v863 = vcvt.s32.f32 %v607
      %v864 = vcvt.s32.f32 %v608
      %v865 = vcvt.s32.f32 %v609
      %v866 = vcvt.s32.f32 %v610
      %v867 = vcvt.s32.f32 %v611
      %v868 = vcvt.s32.f32 %v612
      %v869 = vcvt.s32.f32 %v613
      %v870 = vcvt.s32.f32 %v614
      %v871 = vcvt.s32.f32 %v615
      %v872 = vcvt.s32.f32 %v616
      %v873 = vcvt.s32.f32 %v617
      %v874 = vcvt.s32.f32 %v618
      %v875 = vcvt.s32.f32 %v619
      %v876 = vcvt.s32.f32 %v620
      %v877 = vcvt.s32.f32 %v621
      %v878 = vcvt.s32.f32 %v622
      %v879 = vcvt.s32.f32 %v623
      %v880 = vcvt.s32.f32 %v624
      %v881 = vcvt.s32.f32 %v625
      %v882 = vcvt.s32.f32 %v626
      %v883 = vcvt.s32.f32 %v627
      %v884 = vcvt.s32.f32 %v628
      %v885 = vcvt.s32.f32 %v629
      %v886 = vcvt.s32.f32 %v630
      %v887 = vcvt.s32.f32 %v631
      %v888 = vcvt.s32.f32 %v632
      %v889 = vcvt.s32.f32 %v633
      %v890 = vcvt.s32.f32 %v634
      %v891 = vcvt.s32.f32 %v635
      %v892 = vcvt.s32.f32 %v636
      %v893 = vpack.c.bf16 %v645, %v637
      %v894 = vpack.c.bf16 %v646, %v638
      %v895 = vpack.c.bf16 %v647, %v639
      %v896 = vpack.c.bf16 %v648, %v640
      %v897 = vpack.c.bf16 %v649, %v641
      %v898 = vpack.c.bf16 %v650, %v642
      %v899 = vpack.c.bf16 %v651, %v643
      %v900 = vpack.c.bf16 %v652, %v644
      %v901 = vpack.c.bf16 %v661, %v653
      %v902 = vpack.c.bf16 %v662, %v654
      %v903 = vpack.c.bf16 %v663, %v655
      %v904 = vpack.c.bf16 %v664, %v656
      %v905 = vpack.c.bf16 %v665, %v657
      %v906 = vpack.c.bf16 %v666, %v658
      %v907 = vpack.c.bf16 %v667, %v659
      %v908 = vpack.c.bf16 %v668, %v660
      %v909 = vpack.c.bf16 %v677, %v669
      %v910 = vpack.c.bf16 %v678, %v670
      %v911 = vpack.c.bf16 %v679, %v671
      %v912 = vpack.c.bf16 %v680, %v672
      %v913 = vpack.c.bf16 %v681, %v673
      %v914 = vpack.c.bf16 %v682, %v674
      %v915 = vpack.c.bf16 %v683, %v675
      %v916 = vpack.c.bf16 %v684, %v676
      %v917 = vpack.c.bf16 %v693, %v685
      %v918 = vpack.c.bf16 %v694, %v686
      %v919 = vpack.c.bf16 %v695, %v687
      %v920 = vpack.c.bf16 %v696, %v688
      %v921 = vpack.c.bf16 %v697, %v689
      %v922 = vpack.c.bf16 %v698, %v690
      %v923 = vpack.c.bf16 %v699, %v691
      %v924 = vpack.c.bf16 %v700, %v692
      %v925 = vpack.c.bf16 %v709, %v701
      %v926 = vpack.c.bf16 %v710, %v702
      %v927 = vpack.c.bf16 %v711, %v703
      %v928 = vpack.c.bf16 %v712, %v704
      %v929 = vpack.c.bf16 %v713, %v705
      %v930 = vpack.c.bf16 %v714, %v706
      %v931 = vpack.c.bf16 %v715, %v707
      %v932 = vpack.c.bf16 %v716, %v708
      %v933 = vpack.c.bf16 %v725, %v717
      %v934 = vpack.c.bf16 %v726, %v718
      %v935 = vpack.c.bf16 %v727, %v719
      %v936 = vpack.c.bf16 %v728, %v720
      %v937 = vpack.c.bf16 %v729, %v721
      %v938 = vpack.c.bf16 %v730, %v722
      %v939 = vpack.c.bf16 %v731, %v723
      %v940 = vpack.c.bf16 %v732, %v724
      %v941 = vpack.c.bf16 %v741, %v733
      %v942 = vpack.c.bf16 %v742, %v734
      %v943 = vpack.c.bf16 %v743, %v735
      %v944 = vpack.c.bf16 %v744, %v736
      %v945 = vpack.c.bf16 %v745, %v737
      %v946 = vpack.c.bf16 %v746, %v738
      %v947 = vpack.c.bf16 %v747, %v739
      %v948 = vpack.c.bf16 %v748, %v740
      %v949 = vpack.c.bf16 %v757, %v749
      %v950 = vpack.c.bf16 %v758, %v750
      %v951 = vpack.c.bf16 %v759, %v751
      %v952 = vpack.c.bf16 %v760, %v752
      %v953 = vpack.c.bf16 %v761, %v753
      %v954 = vpack.c.bf16 %v762, %v754
      %v955 = vpack.c.bf16 %v763, %v755
      %v956 = vpack.c.bf16 %v764, %v756
      %v957 = vpack.c.bf16 %v773, %v765
      %v958 = vpack.c.bf16 %v774, %v766
      %v959 = vpack.c.bf16 %v775, %v767
      %v960 = vpack.c.bf16 %v776, %v768
      %v961 = vpack.c.bf16 %v777, %v769
      %v962 = vpack.c.bf16 %v778, %v770
      %v963 = vpack.c.bf16 %v779, %v771
      %v964 = vpack.c.bf16 %v780, %v772
      %v965 = vpack.c.bf16 %v789, %v781
      %v966 = vpack.c.bf16 %v790, %v782
      %v967 = vpack.c.bf16 %v791, %v783
      %v968 = vpack.c.bf16 %v792, %v784
      %v969 = vpack.c.bf16 %v793, %v785
      %v970 = vpack.c.bf16 %v794, %v786
      %v971 = vpack.c.bf16 %v795, %v787
      %v972 = vpack.c.bf16 %v796, %v788
      %v973 = vpack.c.bf16 %v805, %v797
      %v974 = vpack.c.bf16 %v806, %v798
      %v975 = vpack.c.bf16 %v807, %v799
      %v976 = vpack.c.bf16 %v808, %v800
      %v977 = vpack.c.bf16 %v809, %v801
      %v978 = vpack.c.bf16 %v810, %v802
      %v979 = vpack.c.bf16 %v811, %v803
      %v980 = vpack.c.bf16 %v812, %v804
      %v981 = vpack.c.bf16 %v821, %v813
      %v982 = vpack.c.bf16 %v822, %v814
      %v983 = vpack.c.bf16 %v823, %v815
      %v984 = vpack.c.bf16 %v824, %v816
      %v985 = vpack.c.bf16 %v825, %v817
      %v986 = vpack.c.bf16 %v826, %v818
      %v987 = vpack.c.bf16 %v827, %v819
      %v988 = vpack.c.bf16 %v828, %v820
      %v989 = vpack.c.bf16 %v837, %v829
      %v990 = vpack.c.bf16 %v838, %v830
      %v991 = vpack.c.bf16 %v839, %v831
      %v992 = vpack.c.bf16 %v840, %v832
      %v993 = vpack.c.bf16 %v841, %v833
      %v994 = vpack.c.bf16 %v842, %v834
      %v995 = vpack.c.bf16 %v843, %v835
      %v996 = vpack.c.bf16 %v844, %v836
      %v997 = vpack.c.bf16 %v853, %v845
      %v998 = vpack.c.bf16 %v854, %v846
      %v999 = vpack.c.bf16 %v855, %v847
      %v1000 = vpack.c.bf16 %v856, %v848
      %v1001 = vpack.c.bf16 %v857, %v849
      %v1002 = vpack.c.bf16 %v858, %v850
      %v1003 = vpack.c.bf16 %v859, %v851
      %v1004 = vpack.c.bf16 %v860, %v852
      %v1005 = vpack.c.bf16 %v869, %v861
      %v1006 = vpack.c.bf16 %v870, %v862
      %v1007 = vpack.c.bf16 %v871, %v863
      %v1008 = vpack.c.bf16 %v872, %v864
      %v1009 = vpack.c.bf16 %v873, %v865
      %v1010 = vpack.c.bf16 %v874, %v866
      %v1011 = vpack.c.bf16 %v875, %v867
      %v1012 = vpack.c.bf16 %v876, %v868
      %v1013 = vpack.c.bf16 %v885, %v877
      %v1014 = vpack.c.bf16 %v886, %v878
      %v1015 = vpack.c.bf16 %v887, %v879
      %v1016 = vpack.c.bf16 %v888, %v880
      %v1017 = vpack.c.bf16 %v889, %v881
      %v1018 = vpack.c.bf16 %v890, %v882
      %v1019 = vpack.c.bf16 %v891, %v883
      %v1020 = vpack.c.bf16 %v892, %v884
      %v1021 = vld [vmem:[%s1] sm:$0xf]
      %v1022 = vld [vmem:[%s1 + $0x4] sm:$0xf]
      %v1023 = vld [vmem:[%s1 + $0x8] sm:$0xf]
      %v1024 = vld [vmem:[%s1 + $0xc] sm:$0xf]
      %v1025 = vld [vmem:[%s1 + $0x10] sm:$0xf]
      %v1026 = vld [vmem:[%s1 + $0x14] sm:$0xf]
      %v1027 = vld [vmem:[%s1 + $0x18] sm:$0xf]
      %v1028 = vld [vmem:[%s1 + $0x1c] sm:$0xf]
      %v1029 = vld [vmem:[%s1 + $0x20] sm:$0xf]
      %v1030 = vld [vmem:[%s1 + $0x24] sm:$0xf]
      %v1031 = vld [vmem:[%s1 + $0x28] sm:$0xf]
      %v1032 = vld [vmem:[%s1 + $0x2c] sm:$0xf]
      %v1033 = vld [vmem:[%s1 + $0x30] sm:$0xf]
      %v1034 = vld [vmem:[%s1 + $0x34] sm:$0xf]
      %v1035 = vld [vmem:[%s1 + $0x38] sm:$0xf]
      %v1036 = vld [vmem:[%s1 + $0x3c] sm:$0xf]
      %v1037 = vld [vmem:[%s1 + $0x40] sm:$0xf]
      %v1038 = vld [vmem:[%s1 + $0x44] sm:$0xf]
      %v1039 = vld [vmem:[%s1 + $0x48] sm:$0xf]
      %v1040 = vld [vmem:[%s1 + $0x4c] sm:$0xf]
      %v1041 = vld [vmem:[%s1 + $0x50] sm:$0xf]
      %v1042 = vld [vmem:[%s1 + $0x54] sm:$0xf]
      %v1043 = vld [vmem:[%s1 + $0x58] sm:$0xf]
      %v1044 = vld [vmem:[%s1 + $0x5c] sm:$0xf]
      %v1045 = vld [vmem:[%s1 + $0x60] sm:$0xf]
      %v1046 = vld [vmem:[%s1 + $0x64] sm:$0xf]
      %v1047 = vld [vmem:[%s1 + $0x68] sm:$0xf]
      %v1048 = vld [vmem:[%s1 + $0x6c] sm:$0xf]
      %v1049 = vld [vmem:[%s1 + $0x70] sm:$0xf]
      %v1050 = vld [vmem:[%s1 + $0x74] sm:$0xf]
      %v1051 = vld [vmem:[%s1 + $0x78] sm:$0xf]
      %v1052 = vld [vmem:[%s1 + $0x7c] sm:$0xf]
      %v1053 = vld [vmem:[%s1 + $0x80] sm:$0xf]
      %v1054 = vld [vmem:[%s1 + $0x84] sm:$0xf]
      %v1055 = vld [vmem:[%s1 + $0x88] sm:$0xf]
      %v1056 = vld [vmem:[%s1 + $0x8c] sm:$0xf]
      %v1057 = vld [vmem:[%s1 + $0x90] sm:$0xf]
      %v1058 = vld [vmem:[%s1 + $0x94] sm:$0xf]
      %v1059 = vld [vmem:[%s1 + $0x98] sm:$0xf]
      %v1060 = vld [vmem:[%s1 + $0x9c] sm:$0xf]
      %v1061 = vld [vmem:[%s1 + $0xa0] sm:$0xf]
      %v1062 = vld [vmem:[%s1 + $0xa4] sm:$0xf]
      %v1063 = vld [vmem:[%s1 + $0xa8] sm:$0xf]
      %v1064 = vld [vmem:[%s1 + $0xac] sm:$0xf]
      %v1065 = vld [vmem:[%s1 + $0xb0] sm:$0xf]
      %v1066 = vld [vmem:[%s1 + $0xb4] sm:$0xf]
      %v1067 = vld [vmem:[%s1 + $0xb8] sm:$0xf]
      %v1068 = vld [vmem:[%s1 + $0xbc] sm:$0xf]
      %v1069 = vld [vmem:[%s1 + $0xc0] sm:$0xf]
      %v1070 = vld [vmem:[%s1 + $0xc4] sm:$0xf]
      %v1071 = vld [vmem:[%s1 + $0xc8] sm:$0xf]
      %v1072 = vld [vmem:[%s1 + $0xcc] sm:$0xf]
      %v1073 = vld [vmem:[%s1 + $0xd0] sm:$0xf]
      %v1074 = vld [vmem:[%s1 + $0xd4] sm:$0xf]
      %v1075 = vld [vmem:[%s1 + $0xd8] sm:$0xf]
      %v1076 = vld [vmem:[%s1 + $0xdc] sm:$0xf]
      %v1077 = vld [vmem:[%s1 + $0xe0] sm:$0xf]
      %v1078 = vld [vmem:[%s1 + $0xe4] sm:$0xf]
      %v1079 = vld [vmem:[%s1 + $0xe8] sm:$0xf]
      %v1080 = vld [vmem:[%s1 + $0xec] sm:$0xf]
      %v1081 = vld [vmem:[%s1 + $0xf0] sm:$0xf]
      %v1082 = vld [vmem:[%s1 + $0xf4] sm:$0xf]
      %v1083 = vld [vmem:[%s1 + $0xf8] sm:$0xf]
      %v1084 = vld [vmem:[%s1 + $0xfc] sm:$0xf]
      %v1085 = vld [vmem:[%s1 + $0x100] sm:$0xf]
      %v1086 = vld [vmem:[%s1 + $0x104] sm:$0xf]
      %v1087 = vld [vmem:[%s1 + $0x108] sm:$0xf]
      %v1088 = vld [vmem:[%s1 + $0x10c] sm:$0xf]
      %v1089 = vld [vmem:[%s1 + $0x110] sm:$0xf]
      %v1090 = vld [vmem:[%s1 + $0x114] sm:$0xf]
      %v1091 = vld [vmem:[%s1 + $0x118] sm:$0xf]
      %v1092 = vld [vmem:[%s1 + $0x11c] sm:$0xf]
      %v1093 = vld [vmem:[%s1 + $0x120] sm:$0xf]
      %v1094 = vld [vmem:[%s1 + $0x124] sm:$0xf]
      %v1095 = vld [vmem:[%s1 + $0x128] sm:$0xf]
      %v1096 = vld [vmem:[%s1 + $0x12c] sm:$0xf]
      %v1097 = vld [vmem:[%s1 + $0x130] sm:$0xf]
      %v1098 = vld [vmem:[%s1 + $0x134] sm:$0xf]
      %v1099 = vld [vmem:[%s1 + $0x138] sm:$0xf]
      %v1100 = vld [vmem:[%s1 + $0x13c] sm:$0xf]
      %v1101 = vld [vmem:[%s1 + $0x140] sm:$0xf]
      %v1102 = vld [vmem:[%s1 + $0x144] sm:$0xf]
      %v1103 = vld [vmem:[%s1 + $0x148] sm:$0xf]
      %v1104 = vld [vmem:[%s1 + $0x14c] sm:$0xf]
      %v1105 = vld [vmem:[%s1 + $0x150] sm:$0xf]
      %v1106 = vld [vmem:[%s1 + $0x154] sm:$0xf]
      %v1107 = vld [vmem:[%s1 + $0x158] sm:$0xf]
      %v1108 = vld [vmem:[%s1 + $0x15c] sm:$0xf]
      %v1109 = vld [vmem:[%s1 + $0x160] sm:$0xf]
      %v1110 = vld [vmem:[%s1 + $0x164] sm:$0xf]
      %v1111 = vld [vmem:[%s1 + $0x168] sm:$0xf]
      %v1112 = vld [vmem:[%s1 + $0x16c] sm:$0xf]
      %v1113 = vld [vmem:[%s1 + $0x170] sm:$0xf]
      %v1114 = vld [vmem:[%s1 + $0x174] sm:$0xf]
      %v1115 = vld [vmem:[%s1 + $0x178] sm:$0xf]
      %v1116 = vld [vmem:[%s1 + $0x17c] sm:$0xf]
      %v1117 = vld [vmem:[%s1 + $0x180] sm:$0xf]
      %v1118 = vld [vmem:[%s1 + $0x184] sm:$0xf]
      %v1119 = vld [vmem:[%s1 + $0x188] sm:$0xf]
      %v1120 = vld [vmem:[%s1 + $0x18c] sm:$0xf]
      %v1121 = vld [vmem:[%s1 + $0x190] sm:$0xf]
      %v1122 = vld [vmem:[%s1 + $0x194] sm:$0xf]
      %v1123 = vld [vmem:[%s1 + $0x198] sm:$0xf]
      %v1124 = vld [vmem:[%s1 + $0x19c] sm:$0xf]
      %v1125 = vld [vmem:[%s1 + $0x1a0] sm:$0xf]
      %v1126 = vld [vmem:[%s1 + $0x1a4] sm:$0xf]
      %v1127 = vld [vmem:[%s1 + $0x1a8] sm:$0xf]
      %v1128 = vld [vmem:[%s1 + $0x1ac] sm:$0xf]
      %v1129 = vld [vmem:[%s1 + $0x1b0] sm:$0xf]
      %v1130 = vld [vmem:[%s1 + $0x1b4] sm:$0xf]
      %v1131 = vld [vmem:[%s1 + $0x1b8] sm:$0xf]
      %v1132 = vld [vmem:[%s1 + $0x1bc] sm:$0xf]
      %v1133 = vld [vmem:[%s1 + $0x1c0] sm:$0xf]
      %v1134 = vld [vmem:[%s1 + $0x1c4] sm:$0xf]
      %v1135 = vld [vmem:[%s1 + $0x1c8] sm:$0xf]
      %v1136 = vld [vmem:[%s1 + $0x1cc] sm:$0xf]
      %v1137 = vld [vmem:[%s1 + $0x1d0] sm:$0xf]
      %v1138 = vld [vmem:[%s1 + $0x1d4] sm:$0xf]
      %v1139 = vld [vmem:[%s1 + $0x1d8] sm:$0xf]
      %v1140 = vld [vmem:[%s1 + $0x1dc] sm:$0xf]
      %v1141 = vld [vmem:[%s1 + $0x1e0] sm:$0xf]
      %v1142 = vld [vmem:[%s1 + $0x1e4] sm:$0xf]
      %v1143 = vld [vmem:[%s1 + $0x1e8] sm:$0xf]
      %v1144 = vld [vmem:[%s1 + $0x1ec] sm:$0xf]
      %v1145 = vld [vmem:[%s1 + $0x1f0] sm:$0xf]
      %v1146 = vld [vmem:[%s1 + $0x1f4] sm:$0xf]
      %v1147 = vld [vmem:[%s1 + $0x1f8] sm:$0xf]
      %v1148 = vld [vmem:[%s1 + $0x1fc] sm:$0xf]
      %v1277 = vunpack.c.l.b16 %v1021
      %v1278 = vunpack.c.l.b16 %v1022
      %v1279 = vunpack.c.l.b16 %v1023
      %v1280 = vunpack.c.l.b16 %v1024
      %v1281 = vunpack.c.l.b16 %v1025
      %v1282 = vunpack.c.l.b16 %v1026
      %v1283 = vunpack.c.l.b16 %v1027
      %v1284 = vunpack.c.l.b16 %v1028
      %v1285 = vunpack.c.l.b16 %v1029
      %v1286 = vunpack.c.l.b16 %v1030
      %v1287 = vunpack.c.l.b16 %v1031
      %v1288 = vunpack.c.l.b16 %v1032
      %v1289 = vunpack.c.l.b16 %v1033
      %v1290 = vunpack.c.l.b16 %v1034
      %v1291 = vunpack.c.l.b16 %v1035
      %v1292 = vunpack.c.l.b16 %v1036
      %v1293 = vunpack.c.l.b16 %v1037
      %v1294 = vunpack.c.l.b16 %v1038
      %v1295 = vunpack.c.l.b16 %v1039
      %v1296 = vunpack.c.l.b16 %v1040
      %v1297 = vunpack.c.l.b16 %v1041
      %v1298 = vunpack.c.l.b16 %v1042
      %v1299 = vunpack.c.l.b16 %v1043
      %v1300 = vunpack.c.l.b16 %v1044
      %v1301 = vunpack.c.l.b16 %v1045
      %v1302 = vunpack.c.l.b16 %v1046
      %v1303 = vunpack.c.l.b16 %v1047
      %v1304 = vunpack.c.l.b16 %v1048
      %v1305 = vunpack.c.l.b16 %v1049
      %v1306 = vunpack.c.l.b16 %v1050
      %v1307 = vunpack.c.l.b16 %v1051
      %v1308 = vunpack.c.l.b16 %v1052
      %v1309 = vunpack.c.l.b16 %v1053
      %v1310 = vunpack.c.l.b16 %v1054
      %v1311 = vunpack.c.l.b16 %v1055
      %v1312 = vunpack.c.l.b16 %v1056
      %v1313 = vunpack.c.l.b16 %v1057
      %v1314 = vunpack.c.l.b16 %v1058
      %v1315 = vunpack.c.l.b16 %v1059
      %v1316 = vunpack.c.l.b16 %v1060
      %v1317 = vunpack.c.l.b16 %v1061
      %v1318 = vunpack.c.l.b16 %v1062
      %v1319 = vunpack.c.l.b16 %v1063
      %v1320 = vunpack.c.l.b16 %v1064
      %v1321 = vunpack.c.l.b16 %v1065
      %v1322 = vunpack.c.l.b16 %v1066
      %v1323 = vunpack.c.l.b16 %v1067
      %v1324 = vunpack.c.l.b16 %v1068
      %v1325 = vunpack.c.l.b16 %v1069
      %v1326 = vunpack.c.l.b16 %v1070
      %v1327 = vunpack.c.l.b16 %v1071
      %v1328 = vunpack.c.l.b16 %v1072
      %v1329 = vunpack.c.l.b16 %v1073
      %v1330 = vunpack.c.l.b16 %v1074
      %v1331 = vunpack.c.l.b16 %v1075
      %v1332 = vunpack.c.l.b16 %v1076
      %v1333 = vunpack.c.l.b16 %v1077
      %v1334 = vunpack.c.l.b16 %v1078
      %v1335 = vunpack.c.l.b16 %v1079
      %v1336 = vunpack.c.l.b16 %v1080
      %v1337 = vunpack.c.l.b16 %v1081
      %v1338 = vunpack.c.l.b16 %v1082
      %v1339 = vunpack.c.l.b16 %v1083
      %v1340 = vunpack.c.l.b16 %v1084
      %v1341 = vunpack.c.l.b16 %v1085
      %v1342 = vunpack.c.l.b16 %v1086
      %v1343 = vunpack.c.l.b16 %v1087
      %v1344 = vunpack.c.l.b16 %v1088
      %v1345 = vunpack.c.l.b16 %v1089
      %v1346 = vunpack.c.l.b16 %v1090
      %v1347 = vunpack.c.l.b16 %v1091
      %v1348 = vunpack.c.l.b16 %v1092
      %v1349 = vunpack.c.l.b16 %v1093
      %v1350 = vunpack.c.l.b16 %v1094
      %v1351 = vunpack.c.l.b16 %v1095
      %v1352 = vunpack.c.l.b16 %v1096
      %v1353 = vunpack.c.l.b16 %v1097
      %v1354 = vunpack.c.l.b16 %v1098
      %v1355 = vunpack.c.l.b16 %v1099
      %v1356 = vunpack.c.l.b16 %v1100
      %v1357 = vunpack.c.l.b16 %v1101
      %v1358 = vunpack.c.l.b16 %v1102
      %v1359 = vunpack.c.l.b16 %v1103
      %v1360 = vunpack.c.l.b16 %v1104
      %v1361 = vunpack.c.l.b16 %v1105
      %v1362 = vunpack.c.l.b16 %v1106
      %v1363 = vunpack.c.l.b16 %v1107
      %v1364 = vunpack.c.l.b16 %v1108
      %v1365 = vunpack.c.l.b16 %v1109
      %v1366 = vunpack.c.l.b16 %v1110
      %v1367 = vunpack.c.l.b16 %v1111
      %v1368 = vunpack.c.l.b16 %v1112
      %v1369 = vunpack.c.l.b16 %v1113
      %v1370 = vunpack.c.l.b16 %v1114
      %v1371 = vunpack.c.l.b16 %v1115
      %v1372 = vunpack.c.l.b16 %v1116
      %v1373 = vunpack.c.l.b16 %v1117
      %v1374 = vunpack.c.l.b16 %v1118
      %v1375 = vunpack.c.l.b16 %v1119
      %v1376 = vunpack.c.l.b16 %v1120
      %v1377 = vunpack.c.l.b16 %v1121
      %v1378 = vunpack.c.l.b16 %v1122
      %v1379 = vunpack.c.l.b16 %v1123
      %v1380 = vunpack.c.l.b16 %v1124
      %v1381 = vunpack.c.l.b16 %v1125
      %v1382 = vunpack.c.l.b16 %v1126
      %v1383 = vunpack.c.l.b16 %v1127
      %v1384 = vunpack.c.l.b16 %v1128
      %v1385 = vunpack.c.l.b16 %v1129
      %v1386 = vunpack.c.l.b16 %v1130
      %v1387 = vunpack.c.l.b16 %v1131
      %v1388 = vunpack.c.l.b16 %v1132
      %v1389 = vunpack.c.l.b16 %v1133
      %v1390 = vunpack.c.l.b16 %v1134
      %v1391 = vunpack.c.l.b16 %v1135
      %v1392 = vunpack.c.l.b16 %v1136
      %v1393 = vunpack.c.l.b16 %v1137
      %v1394 = vunpack.c.l.b16 %v1138
      %v1395 = vunpack.c.l.b16 %v1139
      %v1396 = vunpack.c.l.b16 %v1140
      %v1397 = vunpack.c.l.b16 %v1141
      %v1398 = vunpack.c.l.b16 %v1142
      %v1399 = vunpack.c.l.b16 %v1143
      %v1400 = vunpack.c.l.b16 %v1144
      %v1401 = vunpack.c.l.b16 %v1145
      %v1402 = vunpack.c.l.b16 %v1146
      %v1403 = vunpack.c.l.b16 %v1147
      %v1404 = vunpack.c.l.b16 %v1148
      %v1405 = vpack.c.b16 %v1278, %v1277
      %v1406 = vpack.c.b16 %v1280, %v1279
      %v1407 = vpack.c.b16 %v1282, %v1281
      %v1408 = vpack.c.b16 %v1284, %v1283
      %v1409 = vpack.c.b16 %v1286, %v1285
      %v1410 = vpack.c.b16 %v1288, %v1287
      %v1411 = vpack.c.b16 %v1290, %v1289
      %v1412 = vpack.c.b16 %v1292, %v1291
      %v1413 = vpack.c.b16 %v1294, %v1293
      %v1414 = vpack.c.b16 %v1296, %v1295
      %v1415 = vpack.c.b16 %v1298, %v1297
      %v1416 = vpack.c.b16 %v1300, %v1299
      %v1417 = vpack.c.b16 %v1302, %v1301
      %v1418 = vpack.c.b16 %v1304, %v1303
      %v1419 = vpack.c.b16 %v1306, %v1305
      %v1420 = vpack.c.b16 %v1308, %v1307
      %v1421 = vpack.c.b16 %v1310, %v1309
      %v1422 = vpack.c.b16 %v1312, %v1311
      %v1423 = vpack.c.b16 %v1314, %v1313
      %v1424 = vpack.c.b16 %v1316, %v1315
      %v1425 = vpack.c.b16 %v1318, %v1317
      %v1426 = vpack.c.b16 %v1320, %v1319
      %v1427 = vpack.c.b16 %v1322, %v1321
      %v1428 = vpack.c.b16 %v1324, %v1323
      %v1429 = vpack.c.b16 %v1326, %v1325
      %v1430 = vpack.c.b16 %v1328, %v1327
      %v1431 = vpack.c.b16 %v1330, %v1329
      %v1432 = vpack.c.b16 %v1332, %v1331
      %v1433 = vpack.c.b16 %v1334, %v1333
      %v1434 = vpack.c.b16 %v1336, %v1335
      %v1435 = vpack.c.b16 %v1338, %v1337
      %v1436 = vpack.c.b16 %v1340, %v1339
      %v1437 = vpack.c.b16 %v1342, %v1341
      %v1438 = vpack.c.b16 %v1344, %v1343
      %v1439 = vpack.c.b16 %v1346, %v1345
      %v1440 = vpack.c.b16 %v1348, %v1347
      %v1441 = vpack.c.b16 %v1350, %v1349
      %v1442 = vpack.c.b16 %v1352, %v1351
      %v1443 = vpack.c.b16 %v1354, %v1353
      %v1444 = vpack.c.b16 %v1356, %v1355
      %v1445 = vpack.c.b16 %v1358, %v1357
      %v1446 = vpack.c.b16 %v1360, %v1359
      %v1447 = vpack.c.b16 %v1362, %v1361
      %v1448 = vpack.c.b16 %v1364, %v1363
      %v1449 = vpack.c.b16 %v1366, %v1365
      %v1450 = vpack.c.b16 %v1368, %v1367
      %v1451 = vpack.c.b16 %v1370, %v1369
      %v1452 = vpack.c.b16 %v1372, %v1371
      %v1453 = vpack.c.b16 %v1374, %v1373
      %v1454 = vpack.c.b16 %v1376, %v1375
      %v1455 = vpack.c.b16 %v1378, %v1377
      %v1456 = vpack.c.b16 %v1380, %v1379
      %v1457 = vpack.c.b16 %v1382, %v1381
      %v1458 = vpack.c.b16 %v1384, %v1383
      %v1459 = vpack.c.b16 %v1386, %v1385
      %v1460 = vpack.c.b16 %v1388, %v1387
      %v1461 = vpack.c.b16 %v1390, %v1389
      %v1462 = vpack.c.b16 %v1392, %v1391
      %v1463 = vpack.c.b16 %v1394, %v1393
      %v1464 = vpack.c.b16 %v1396, %v1395
      %v1465 = vpack.c.b16 %v1398, %v1397
      %v1466 = vpack.c.b16 %v1400, %v1399
      %v1467 = vpack.c.b16 %v1402, %v1401
      %v1468 = vpack.c.b16 %v1404, %v1403
      %1533 = vmatpush.bf16.msra.mxu0 %v1412
      %1534 = vmatpush.bf16.msra.mxu0 %v1411
      %1535 = vmatpush.bf16.msra.mxu0 %v1410
      %1536 = vmatpush.bf16.msra.mxu0 %v1409
      %1537 = vmatpush.bf16.msra.mxu0 %v1408
      %1538 = vmatpush.bf16.msra.mxu0 %v1407
      %1539 = vmatpush.bf16.msra.mxu0 %v1406
      %1540 = vmatpush.bf16.msra.mxu0 %v1405
      %1541 = vmatmul.bf16.gmra.mxu0 %v893
      %v1542 = vpop.f32.mrf.mxu0
      %v1543 = vadd.f32 0.0, %v1542
      %v1544 = vpop.f32.mrf.mxu0
      %v1545 = vadd.f32 0.0, %v1544
      %1546 = vmatmul.bf16.gmra.mxu0 %v901
      %v1547 = vpop.f32.mrf.mxu0
      %v1548 = vadd.f32 0.0, %v1547
      %v1549 = vpop.f32.mrf.mxu0
      %v1550 = vadd.f32 0.0, %v1549
      %1551 = vmatmul.bf16.gmra.mxu0 %v909
      %v1552 = vpop.f32.mrf.mxu0
      %v1553 = vadd.f32 0.0, %v1552
      %v1554 = vpop.f32.mrf.mxu0
      %v1555 = vadd.f32 0.0, %v1554
      %1556 = vmatmul.bf16.gmra.mxu0 %v917
      %v1557 = vpop.f32.mrf.mxu0
      %v1558 = vadd.f32 0.0, %v1557
      %v1559 = vpop.f32.mrf.mxu0
      %v1560 = vadd.f32 0.0, %v1559
      %1561 = vmatmul.bf16.gmra.mxu0 %v925
      %v1562 = vpop.f32.mrf.mxu0
      %v1563 = vadd.f32 0.0, %v1562
      %v1564 = vpop.f32.mrf.mxu0
      %v1565 = vadd.f32 0.0, %v1564
      %1566 = vmatmul.bf16.gmra.mxu0 %v933
      %v1567 = vpop.f32.mrf.mxu0
      %v1568 = vadd.f32 0.0, %v1567
      %v1569 = vpop.f32.mrf.mxu0
      %v1570 = vadd.f32 0.0, %v1569
      %1571 = vmatmul.bf16.gmra.mxu0 %v941
      %v1572 = vpop.f32.mrf.mxu0
      %v1573 = vadd.f32 0.0, %v1572
      %v1574 = vpop.f32.mrf.mxu0
      %v1575 = vadd.f32 0.0, %v1574
      %1576 = vmatmul.bf16.gmra.mxu0 %v949
      %v1577 = vpop.f32.mrf.mxu0
      %v1578 = vadd.f32 0.0, %v1577
      %v1579 = vpop.f32.mrf.mxu0
      %v1580 = vadd.f32 0.0, %v1579
      %1581 = vmatmul.bf16.gmra.mxu0 %v957
      %v1582 = vpop.f32.mrf.mxu0
      %v1583 = vadd.f32 0.0, %v1582
      %v1584 = vpop.f32.mrf.mxu0
      %v1585 = vadd.f32 0.0, %v1584
      %1586 = vmatmul.bf16.gmra.mxu0 %v965
      %v1587 = vpop.f32.mrf.mxu0
      %v1588 = vadd.f32 0.0, %v1587
      %v1589 = vpop.f32.mrf.mxu0
      %v1590 = vadd.f32 0.0, %v1589
      %1591 = vmatmul.bf16.gmra.mxu0 %v973
      %v1592 = vpop.f32.mrf.mxu0
      %v1593 = vadd.f32 0.0, %v1592
      %v1594 = vpop.f32.mrf.mxu0
      %v1595 = vadd.f32 0.0, %v1594
      %1596 = vmatmul.bf16.gmra.mxu0 %v981
      %v1597 = vpop.f32.mrf.mxu0
      %v1598 = vadd.f32 0.0, %v1597
      %v1599 = vpop.f32.mrf.mxu0
      %v1600 = vadd.f32 0.0, %v1599
      %1601 = vmatmul.bf16.gmra.mxu0 %v989
      %v1602 = vpop.f32.mrf.mxu0
      %v1603 = vadd.f32 0.0, %v1602
      %v1604 = vpop.f32.mrf.mxu0
      %v1605 = vadd.f32 0.0, %v1604
      %1606 = vmatmul.bf16.gmra.mxu0 %v997
      %v1607 = vpop.f32.mrf.mxu0
      %v1608 = vadd.f32 0.0, %v1607
      %v1609 = vpop.f32.mrf.mxu0
      %v1610 = vadd.f32 0.0, %v1609
      %1611 = vmatmul.bf16.gmra.mxu0 %v1005
      %v1612 = vpop.f32.mrf.mxu0
      %v1613 = vadd.f32 0.0, %v1612
      %v1614 = vpop.f32.mrf.mxu0
      %v1615 = vadd.f32 0.0, %v1614
      %1616 = vmatmul.bf16.gmra.mxu0 %v1013
      %v1617 = vpop.f32.mrf.mxu0
      %v1618 = vadd.f32 0.0, %v1617
      %v1619 = vpop.f32.mrf.mxu0
      %v1620 = vadd.f32 0.0, %v1619
      %1621 = vdwg.mxu0
      %1622 = vmatpush.bf16.msra.mxu0 %v1420
      %1623 = vmatpush.bf16.msra.mxu0 %v1419
      %1624 = vmatpush.bf16.msra.mxu0 %v1418
      %1625 = vmatpush.bf16.msra.mxu0 %v1417
      %1626 = vmatpush.bf16.msra.mxu0 %v1416
      %1627 = vmatpush.bf16.msra.mxu0 %v1415
      %1628 = vmatpush.bf16.msra.mxu0 %v1414
      %1629 = vmatpush.bf16.msra.mxu0 %v1413
      %1630 = vmatmul.bf16.gmra.mxu0 %v894
      %v1631 = vpop.f32.mrf.mxu0
      %v1632 = vadd.f32 %v1543, %v1631
      %v1633 = vpop.f32.mrf.mxu0
      %v1634 = vadd.f32 %v1545, %v1633
      %1635 = vmatmul.bf16.gmra.mxu0 %v902
      %v1636 = vpop.f32.mrf.mxu0
      %v1637 = vadd.f32 %v1548, %v1636
      %v1638 = vpop.f32.mrf.mxu0
      %v1639 = vadd.f32 %v1550, %v1638
      %1640 = vmatmul.bf16.gmra.mxu0 %v910
      %v1641 = vpop.f32.mrf.mxu0
      %v1642 = vadd.f32 %v1553, %v1641
      %v1643 = vpop.f32.mrf.mxu0
      %v1644 = vadd.f32 %v1555, %v1643
      %1645 = vmatmul.bf16.gmra.mxu0 %v918
      %v1646 = vpop.f32.mrf.mxu0
      %v1647 = vadd.f32 %v1558, %v1646
      %v1648 = vpop.f32.mrf.mxu0
      %v1649 = vadd.f32 %v1560, %v1648
      %1650 = vmatmul.bf16.gmra.mxu0 %v926
      %v1651 = vpop.f32.mrf.mxu0
      %v1652 = vadd.f32 %v1563, %v1651
      %v1653 = vpop.f32.mrf.mxu0
      %v1654 = vadd.f32 %v1565, %v1653
      %1655 = vmatmul.bf16.gmra.mxu0 %v934
      %v1656 = vpop.f32.mrf.mxu0
      %v1657 = vadd.f32 %v1568, %v1656
      %v1658 = vpop.f32.mrf.mxu0
      %v1659 = vadd.f32 %v1570, %v1658
      %1660 = vmatmul.bf16.gmra.mxu0 %v942
      %v1661 = vpop.f32.mrf.mxu0
      %v1662 = vadd.f32 %v1573, %v1661
      %v1663 = vpop.f32.mrf.mxu0
      %v1664 = vadd.f32 %v1575, %v1663
      %1665 = vmatmul.bf16.gmra.mxu0 %v950
      %v1666 = vpop.f32.mrf.mxu0
      %v1667 = vadd.f32 %v1578, %v1666
      %v1668 = vpop.f32.mrf.mxu0
      %v1669 = vadd.f32 %v1580, %v1668
      %1670 = vmatmul.bf16.gmra.mxu0 %v958
      %v1671 = vpop.f32.mrf.mxu0
      %v1672 = vadd.f32 %v1583, %v1671
      %v1673 = vpop.f32.mrf.mxu0
      %v1674 = vadd.f32 %v1585, %v1673
      %1675 = vmatmul.bf16.gmra.mxu0 %v966
      %v1676 = vpop.f32.mrf.mxu0
      %v1677 = vadd.f32 %v1588, %v1676
      %v1678 = vpop.f32.mrf.mxu0
      %v1679 = vadd.f32 %v1590, %v1678
      %1680 = vmatmul.bf16.gmra.mxu0 %v974
      %v1681 = vpop.f32.mrf.mxu0
      %v1682 = vadd.f32 %v1593, %v1681
      %v1683 = vpop.f32.mrf.mxu0
      %v1684 = vadd.f32 %v1595, %v1683
      %1685 = vmatmul.bf16.gmra.mxu0 %v982
      %v1686 = vpop.f32.mrf.mxu0
      %v1687 = vadd.f32 %v1598, %v1686
      %v1688 = vpop.f32.mrf.mxu0
      %v1689 = vadd.f32 %v1600, %v1688
      %1690 = vmatmul.bf16.gmra.mxu0 %v990
      %v1691 = vpop.f32.mrf.mxu0
      %v1692 = vadd.f32 %v1603, %v1691
      %v1693 = vpop.f32.mrf.mxu0
      %v1694 = vadd.f32 %v1605, %v1693
      %1695 = vmatmul.bf16.gmra.mxu0 %v998
      %v1696 = vpop.f32.mrf.mxu0
      %v1697 = vadd.f32 %v1608, %v1696
      %v1698 = vpop.f32.mrf.mxu0
      %v1699 = vadd.f32 %v1610, %v1698
      %1700 = vmatmul.bf16.gmra.mxu0 %v1006
      %v1701 = vpop.f32.mrf.mxu0
      %v1702 = vadd.f32 %v1613, %v1701
      %v1703 = vpop.f32.mrf.mxu0
      %v1704 = vadd.f32 %v1615, %v1703
      %1705 = vmatmul.bf16.gmra.mxu0 %v1014
      %v1706 = vpop.f32.mrf.mxu0
      %v1707 = vadd.f32 %v1618, %v1706
      %v1708 = vpop.f32.mrf.mxu0
      %v1709 = vadd.f32 %v1620, %v1708
      %1710 = vdwg.mxu0
      %1711 = vmatpush.bf16.msra.mxu0 %v1428
      %1712 = vmatpush.bf16.msra.mxu0 %v1427
      %1713 = vmatpush.bf16.msra.mxu0 %v1426
      %1714 = vmatpush.bf16.msra.mxu0 %v1425
      %1715 = vmatpush.bf16.msra.mxu0 %v1424
      %1716 = vmatpush.bf16.msra.mxu0 %v1423
      %1717 = vmatpush.bf16.msra.mxu0 %v1422
      %1718 = vmatpush.bf16.msra.mxu0 %v1421
      %1719 = vmatmul.bf16.gmra.mxu0 %v895
      %v1720 = vpop.f32.mrf.mxu0
      %v1721 = vadd.f32 %v1632, %v1720
      %v1722 = vpop.f32.mrf.mxu0
      %v1723 = vadd.f32 %v1634, %v1722
      %1724 = vmatmul.bf16.gmra.mxu0 %v903
      %v1725 = vpop.f32.mrf.mxu0
      %v1726 = vadd.f32 %v1637, %v1725
      %v1727 = vpop.f32.mrf.mxu0
      %v1728 = vadd.f32 %v1639, %v1727
      %1729 = vmatmul.bf16.gmra.mxu0 %v911
      %v1730 = vpop.f32.mrf.mxu0
      %v1731 = vadd.f32 %v1642, %v1730
      %v1732 = vpop.f32.mrf.mxu0
      %v1733 = vadd.f32 %v1644, %v1732
      %1734 = vmatmul.bf16.gmra.mxu0 %v919
      %v1735 = vpop.f32.mrf.mxu0
      %v1736 = vadd.f32 %v1647, %v1735
      %v1737 = vpop.f32.mrf.mxu0
      %v1738 = vadd.f32 %v1649, %v1737
      %1739 = vmatmul.bf16.gmra.mxu0 %v927
      %v1740 = vpop.f32.mrf.mxu0
      %v1741 = vadd.f32 %v1652, %v1740
      %v1742 = vpop.f32.mrf.mxu0
      %v1743 = vadd.f32 %v1654, %v1742
      %1744 = vmatmul.bf16.gmra.mxu0 %v935
      %v1745 = vpop.f32.mrf.mxu0
      %v1746 = vadd.f32 %v1657, %v1745
      %v1747 = vpop.f32.mrf.mxu0
      %v1748 = vadd.f32 %v1659, %v1747
      %1749 = vmatmul.bf16.gmra.mxu0 %v943
      %v1750 = vpop.f32.mrf.mxu0
      %v1751 = vadd.f32 %v1662, %v1750
      %v1752 = vpop.f32.mrf.mxu0
      %v1753 = vadd.f32 %v1664, %v1752
      %1754 = vmatmul.bf16.gmra.mxu0 %v951
      %v1755 = vpop.f32.mrf.mxu0
      %v1756 = vadd.f32 %v1667, %v1755
      %v1757 = vpop.f32.mrf.mxu0
      %v1758 = vadd.f32 %v1669, %v1757
      %1759 = vmatmul.bf16.gmra.mxu0 %v959
      %v1760 = vpop.f32.mrf.mxu0
      %v1761 = vadd.f32 %v1672, %v1760
      %v1762 = vpop.f32.mrf.mxu0
      %v1763 = vadd.f32 %v1674, %v1762
      %1764 = vmatmul.bf16.gmra.mxu0 %v967
      %v1765 = vpop.f32.mrf.mxu0
      %v1766 = vadd.f32 %v1677, %v1765
      %v1767 = vpop.f32.mrf.mxu0
      %v1768 = vadd.f32 %v1679, %v1767
      %1769 = vmatmul.bf16.gmra.mxu0 %v975
      %v1770 = vpop.f32.mrf.mxu0
      %v1771 = vadd.f32 %v1682, %v1770
      %v1772 = vpop.f32.mrf.mxu0
      %v1773 = vadd.f32 %v1684, %v1772
      %1774 = vmatmul.bf16.gmra.mxu0 %v983
      %v1775 = vpop.f32.mrf.mxu0
      %v1776 = vadd.f32 %v1687, %v1775
      %v1777 = vpop.f32.mrf.mxu0
      %v1778 = vadd.f32 %v1689, %v1777
      %1779 = vmatmul.bf16.gmra.mxu0 %v991
      %v1780 = vpop.f32.mrf.mxu0
      %v1781 = vadd.f32 %v1692, %v1780
      %v1782 = vpop.f32.mrf.mxu0
      %v1783 = vadd.f32 %v1694, %v1782
      %1784 = vmatmul.bf16.gmra.mxu0 %v999
      %v1785 = vpop.f32.mrf.mxu0
      %v1786 = vadd.f32 %v1697, %v1785
      %v1787 = vpop.f32.mrf.mxu0
      %v1788 = vadd.f32 %v1699, %v1787
      %1789 = vmatmul.bf16.gmra.mxu0 %v1007
      %v1790 = vpop.f32.mrf.mxu0
      %v1791 = vadd.f32 %v1702, %v1790
      %v1792 = vpop.f32.mrf.mxu0
      %v1793 = vadd.f32 %v1704, %v1792
      %1794 = vmatmul.bf16.gmra.mxu0 %v1015
      %v1795 = vpop.f32.mrf.mxu0
      %v1796 = vadd.f32 %v1707, %v1795
      %v1797 = vpop.f32.mrf.mxu0
      %v1798 = vadd.f32 %v1709, %v1797
      %1799 = vdwg.mxu0
      %1800 = vmatpush.bf16.msra.mxu0 %v1436
      %1801 = vmatpush.bf16.msra.mxu0 %v1435
      %1802 = vmatpush.bf16.msra.mxu0 %v1434
      %1803 = vmatpush.bf16.msra.mxu0 %v1433
      %1804 = vmatpush.bf16.msra.mxu0 %v1432
      %1805 = vmatpush.bf16.msra.mxu0 %v1431
      %1806 = vmatpush.bf16.msra.mxu0 %v1430
      %1807 = vmatpush.bf16.msra.mxu0 %v1429
      %1808 = vmatmul.bf16.gmra.mxu0 %v896
      %v1809 = vpop.f32.mrf.mxu0
      %v1810 = vadd.f32 %v1721, %v1809
      %v1811 = vpop.f32.mrf.mxu0
      %v1812 = vadd.f32 %v1723, %v1811
      %1813 = vmatmul.bf16.gmra.mxu0 %v904
      %v1814 = vpop.f32.mrf.mxu0
      %v1815 = vadd.f32 %v1726, %v1814
      %v1816 = vpop.f32.mrf.mxu0
      %v1817 = vadd.f32 %v1728, %v1816
      %1818 = vmatmul.bf16.gmra.mxu0 %v912
      %v1819 = vpop.f32.mrf.mxu0
      %v1820 = vadd.f32 %v1731, %v1819
      %v1821 = vpop.f32.mrf.mxu0
      %v1822 = vadd.f32 %v1733, %v1821
      %1823 = vmatmul.bf16.gmra.mxu0 %v920
      %v1824 = vpop.f32.mrf.mxu0
      %v1825 = vadd.f32 %v1736, %v1824
      %v1826 = vpop.f32.mrf.mxu0
      %v1827 = vadd.f32 %v1738, %v1826
      %1828 = vmatmul.bf16.gmra.mxu0 %v928
      %v1829 = vpop.f32.mrf.mxu0
      %v1830 = vadd.f32 %v1741, %v1829
      %v1831 = vpop.f32.mrf.mxu0
      %v1832 = vadd.f32 %v1743, %v1831
      %1833 = vmatmul.bf16.gmra.mxu0 %v936
      %v1834 = vpop.f32.mrf.mxu0
      %v1835 = vadd.f32 %v1746, %v1834
      %v1836 = vpop.f32.mrf.mxu0
      %v1837 = vadd.f32 %v1748, %v1836
      %1838 = vmatmul.bf16.gmra.mxu0 %v944
      %v1839 = vpop.f32.mrf.mxu0
      %v1840 = vadd.f32 %v1751, %v1839
      %v1841 = vpop.f32.mrf.mxu0
      %v1842 = vadd.f32 %v1753, %v1841
      %1843 = vmatmul.bf16.gmra.mxu0 %v952
      %v1844 = vpop.f32.mrf.mxu0
      %v1845 = vadd.f32 %v1756, %v1844
      %v1846 = vpop.f32.mrf.mxu0
      %v1847 = vadd.f32 %v1758, %v1846
      %1848 = vmatmul.bf16.gmra.mxu0 %v960
      %v1849 = vpop.f32.mrf.mxu0
      %v1850 = vadd.f32 %v1761, %v1849
      %v1851 = vpop.f32.mrf.mxu0
      %v1852 = vadd.f32 %v1763, %v1851
      %1853 = vmatmul.bf16.gmra.mxu0 %v968
      %v1854 = vpop.f32.mrf.mxu0
      %v1855 = vadd.f32 %v1766, %v1854
      %v1856 = vpop.f32.mrf.mxu0
      %v1857 = vadd.f32 %v1768, %v1856
      %1858 = vmatmul.bf16.gmra.mxu0 %v976
      %v1859 = vpop.f32.mrf.mxu0
      %v1860 = vadd.f32 %v1771, %v1859
      %v1861 = vpop.f32.mrf.mxu0
      %v1862 = vadd.f32 %v1773, %v1861
      %1863 = vmatmul.bf16.gmra.mxu0 %v984
      %v1864 = vpop.f32.mrf.mxu0
      %v1865 = vadd.f32 %v1776, %v1864
      %v1866 = vpop.f32.mrf.mxu0
      %v1867 = vadd.f32 %v1778, %v1866
      %1868 = vmatmul.bf16.gmra.mxu0 %v992
      %v1869 = vpop.f32.mrf.mxu0
      %v1870 = vadd.f32 %v1781, %v1869
      %v1871 = vpop.f32.mrf.mxu0
      %v1872 = vadd.f32 %v1783, %v1871
      %1873 = vmatmul.bf16.gmra.mxu0 %v1000
      %v1874 = vpop.f32.mrf.mxu0
      %v1875 = vadd.f32 %v1786, %v1874
      %v1876 = vpop.f32.mrf.mxu0
      %v1877 = vadd.f32 %v1788, %v1876
      %1878 = vmatmul.bf16.gmra.mxu0 %v1008
      %v1879 = vpop.f32.mrf.mxu0
      %v1880 = vadd.f32 %v1791, %v1879
      %v1881 = vpop.f32.mrf.mxu0
      %v1882 = vadd.f32 %v1793, %v1881
      %1883 = vmatmul.bf16.gmra.mxu0 %v1016
      %v1884 = vpop.f32.mrf.mxu0
      %v1885 = vadd.f32 %v1796, %v1884
      %v1886 = vpop.f32.mrf.mxu0
      %v1887 = vadd.f32 %v1798, %v1886
      %1888 = vdwg.mxu0
      %1889 = vmatpush.bf16.msra.mxu0 %v1444
      %1890 = vmatpush.bf16.msra.mxu0 %v1443
      %1891 = vmatpush.bf16.msra.mxu0 %v1442
      %1892 = vmatpush.bf16.msra.mxu0 %v1441
      %1893 = vmatpush.bf16.msra.mxu0 %v1440
      %1894 = vmatpush.bf16.msra.mxu0 %v1439
      %1895 = vmatpush.bf16.msra.mxu0 %v1438
      %1896 = vmatpush.bf16.msra.mxu0 %v1437
      %1897 = vmatmul.bf16.gmra.mxu0 %v897
      %v1898 = vpop.f32.mrf.mxu0
      %v1899 = vadd.f32 %v1810, %v1898
      %v1900 = vpop.f32.mrf.mxu0
      %v1901 = vadd.f32 %v1812, %v1900
      %1902 = vmatmul.bf16.gmra.mxu0 %v905
      %v1903 = vpop.f32.mrf.mxu0
      %v1904 = vadd.f32 %v1815, %v1903
      %v1905 = vpop.f32.mrf.mxu0
      %v1906 = vadd.f32 %v1817, %v1905
      %1907 = vmatmul.bf16.gmra.mxu0 %v913
      %v1908 = vpop.f32.mrf.mxu0
      %v1909 = vadd.f32 %v1820, %v1908
      %v1910 = vpop.f32.mrf.mxu0
      %v1911 = vadd.f32 %v1822, %v1910
      %1912 = vmatmul.bf16.gmra.mxu0 %v921
      %v1913 = vpop.f32.mrf.mxu0
      %v1914 = vadd.f32 %v1825, %v1913
      %v1915 = vpop.f32.mrf.mxu0
      %v1916 = vadd.f32 %v1827, %v1915
      %1917 = vmatmul.bf16.gmra.mxu0 %v929
      %v1918 = vpop.f32.mrf.mxu0
      %v1919 = vadd.f32 %v1830, %v1918
      %v1920 = vpop.f32.mrf.mxu0
      %v1921 = vadd.f32 %v1832, %v1920
      %1922 = vmatmul.bf16.gmra.mxu0 %v937
      %v1923 = vpop.f32.mrf.mxu0
      %v1924 = vadd.f32 %v1835, %v1923
      %v1925 = vpop.f32.mrf.mxu0
      %v1926 = vadd.f32 %v1837, %v1925
      %1927 = vmatmul.bf16.gmra.mxu0 %v945
      %v1928 = vpop.f32.mrf.mxu0
      %v1929 = vadd.f32 %v1840, %v1928
      %v1930 = vpop.f32.mrf.mxu0
      %v1931 = vadd.f32 %v1842, %v1930
      %1932 = vmatmul.bf16.gmra.mxu0 %v953
      %v1933 = vpop.f32.mrf.mxu0
      %v1934 = vadd.f32 %v1845, %v1933
      %v1935 = vpop.f32.mrf.mxu0
      %v1936 = vadd.f32 %v1847, %v1935
      %1937 = vmatmul.bf16.gmra.mxu0 %v961
      %v1938 = vpop.f32.mrf.mxu0
      %v1939 = vadd.f32 %v1850, %v1938
      %v1940 = vpop.f32.mrf.mxu0
      %v1941 = vadd.f32 %v1852, %v1940
      %1942 = vmatmul.bf16.gmra.mxu0 %v969
      %v1943 = vpop.f32.mrf.mxu0
      %v1944 = vadd.f32 %v1855, %v1943
      %v1945 = vpop.f32.mrf.mxu0
      %v1946 = vadd.f32 %v1857, %v1945
      %1947 = vmatmul.bf16.gmra.mxu0 %v977
      %v1948 = vpop.f32.mrf.mxu0
      %v1949 = vadd.f32 %v1860, %v1948
      %v1950 = vpop.f32.mrf.mxu0
      %v1951 = vadd.f32 %v1862, %v1950
      %1952 = vmatmul.bf16.gmra.mxu0 %v985
      %v1953 = vpop.f32.mrf.mxu0
      %v1954 = vadd.f32 %v1865, %v1953
      %v1955 = vpop.f32.mrf.mxu0
      %v1956 = vadd.f32 %v1867, %v1955
      %1957 = vmatmul.bf16.gmra.mxu0 %v993
      %v1958 = vpop.f32.mrf.mxu0
      %v1959 = vadd.f32 %v1870, %v1958
      %v1960 = vpop.f32.mrf.mxu0
      %v1961 = vadd.f32 %v1872, %v1960
      %1962 = vmatmul.bf16.gmra.mxu0 %v1001
      %v1963 = vpop.f32.mrf.mxu0
      %v1964 = vadd.f32 %v1875, %v1963
      %v1965 = vpop.f32.mrf.mxu0
      %v1966 = vadd.f32 %v1877, %v1965
      %1967 = vmatmul.bf16.gmra.mxu0 %v1009
      %v1968 = vpop.f32.mrf.mxu0
      %v1969 = vadd.f32 %v1880, %v1968
      %v1970 = vpop.f32.mrf.mxu0
      %v1971 = vadd.f32 %v1882, %v1970
      %1972 = vmatmul.bf16.gmra.mxu0 %v1017
      %v1973 = vpop.f32.mrf.mxu0
      %v1974 = vadd.f32 %v1885, %v1973
      %v1975 = vpop.f32.mrf.mxu0
      %v1976 = vadd.f32 %v1887, %v1975
      %1977 = vdwg.mxu0
      %1978 = vmatpush.bf16.msra.mxu0 %v1452
      %1979 = vmatpush.bf16.msra.mxu0 %v1451
      %1980 = vmatpush.bf16.msra.mxu0 %v1450
      %1981 = vmatpush.bf16.msra.mxu0 %v1449
      %1982 = vmatpush.bf16.msra.mxu0 %v1448
      %1983 = vmatpush.bf16.msra.mxu0 %v1447
      %1984 = vmatpush.bf16.msra.mxu0 %v1446
      %1985 = vmatpush.bf16.msra.mxu0 %v1445
      %1986 = vmatmul.bf16.gmra.mxu0 %v898
      %v1987 = vpop.f32.mrf.mxu0
      %v1988 = vadd.f32 %v1899, %v1987
      %v1989 = vpop.f32.mrf.mxu0
      %v1990 = vadd.f32 %v1901, %v1989
      %1991 = vmatmul.bf16.gmra.mxu0 %v906
      %v1992 = vpop.f32.mrf.mxu0
      %v1993 = vadd.f32 %v1904, %v1992
      %v1994 = vpop.f32.mrf.mxu0
      %v1995 = vadd.f32 %v1906, %v1994
      %1996 = vmatmul.bf16.gmra.mxu0 %v914
      %v1997 = vpop.f32.mrf.mxu0
      %v1998 = vadd.f32 %v1909, %v1997
      %v1999 = vpop.f32.mrf.mxu0
      %v2000 = vadd.f32 %v1911, %v1999
      %2001 = vmatmul.bf16.gmra.mxu0 %v922
      %v2002 = vpop.f32.mrf.mxu0
      %v2003 = vadd.f32 %v1914, %v2002
      %v2004 = vpop.f32.mrf.mxu0
      %v2005 = vadd.f32 %v1916, %v2004
      %2006 = vmatmul.bf16.gmra.mxu0 %v930
      %v2007 = vpop.f32.mrf.mxu0
      %v2008 = vadd.f32 %v1919, %v2007
      %v2009 = vpop.f32.mrf.mxu0
      %v2010 = vadd.f32 %v1921, %v2009
      %2011 = vmatmul.bf16.gmra.mxu0 %v938
      %v2012 = vpop.f32.mrf.mxu0
      %v2013 = vadd.f32 %v1924, %v2012
      %v2014 = vpop.f32.mrf.mxu0
      %v2015 = vadd.f32 %v1926, %v2014
      %2016 = vmatmul.bf16.gmra.mxu0 %v946
      %v2017 = vpop.f32.mrf.mxu0
      %v2018 = vadd.f32 %v1929, %v2017
      %v2019 = vpop.f32.mrf.mxu0
      %v2020 = vadd.f32 %v1931, %v2019
      %2021 = vmatmul.bf16.gmra.mxu0 %v954
      %v2022 = vpop.f32.mrf.mxu0
      %v2023 = vadd.f32 %v1934, %v2022
      %v2024 = vpop.f32.mrf.mxu0
      %v2025 = vadd.f32 %v1936, %v2024
      %2026 = vmatmul.bf16.gmra.mxu0 %v962
      %v2027 = vpop.f32.mrf.mxu0
      %v2028 = vadd.f32 %v1939, %v2027
      %v2029 = vpop.f32.mrf.mxu0
      %v2030 = vadd.f32 %v1941, %v2029
      %2031 = vmatmul.bf16.gmra.mxu0 %v970
      %v2032 = vpop.f32.mrf.mxu0
      %v2033 = vadd.f32 %v1944, %v2032
      %v2034 = vpop.f32.mrf.mxu0
      %v2035 = vadd.f32 %v1946, %v2034
      %2036 = vmatmul.bf16.gmra.mxu0 %v978
      %v2037 = vpop.f32.mrf.mxu0
      %v2038 = vadd.f32 %v1949, %v2037
      %v2039 = vpop.f32.mrf.mxu0
      %v2040 = vadd.f32 %v1951, %v2039
      %2041 = vmatmul.bf16.gmra.mxu0 %v986
      %v2042 = vpop.f32.mrf.mxu0
      %v2043 = vadd.f32 %v1954, %v2042
      %v2044 = vpop.f32.mrf.mxu0
      %v2045 = vadd.f32 %v1956, %v2044
      %2046 = vmatmul.bf16.gmra.mxu0 %v994
      %v2047 = vpop.f32.mrf.mxu0
      %v2048 = vadd.f32 %v1959, %v2047
      %v2049 = vpop.f32.mrf.mxu0
      %v2050 = vadd.f32 %v1961, %v2049
      %2051 = vmatmul.bf16.gmra.mxu0 %v1002
      %v2052 = vpop.f32.mrf.mxu0
      %v2053 = vadd.f32 %v1964, %v2052
      %v2054 = vpop.f32.mrf.mxu0
      %v2055 = vadd.f32 %v1966, %v2054
      %2056 = vmatmul.bf16.gmra.mxu0 %v1010
      %v2057 = vpop.f32.mrf.mxu0
      %v2058 = vadd.f32 %v1969, %v2057
      %v2059 = vpop.f32.mrf.mxu0
      %v2060 = vadd.f32 %v1971, %v2059
      %2061 = vmatmul.bf16.gmra.mxu0 %v1018
      %v2062 = vpop.f32.mrf.mxu0
      %v2063 = vadd.f32 %v1974, %v2062
      %v2064 = vpop.f32.mrf.mxu0
      %v2065 = vadd.f32 %v1976, %v2064
      %2066 = vdwg.mxu0
      %2067 = vmatpush.bf16.msra.mxu0 %v1460
      %2068 = vmatpush.bf16.msra.mxu0 %v1459
      %2069 = vmatpush.bf16.msra.mxu0 %v1458
      %2070 = vmatpush.bf16.msra.mxu0 %v1457
      %2071 = vmatpush.bf16.msra.mxu0 %v1456
      %2072 = vmatpush.bf16.msra.mxu0 %v1455
      %2073 = vmatpush.bf16.msra.mxu0 %v1454
      %2074 = vmatpush.bf16.msra.mxu0 %v1453
      %2075 = vmatmul.bf16.gmra.mxu0 %v899
      %v2076 = vpop.f32.mrf.mxu0
      %v2077 = vadd.f32 %v1988, %v2076
      %v2078 = vpop.f32.mrf.mxu0
      %v2079 = vadd.f32 %v1990, %v2078
      %2080 = vmatmul.bf16.gmra.mxu0 %v907
      %v2081 = vpop.f32.mrf.mxu0
      %v2082 = vadd.f32 %v1993, %v2081
      %v2083 = vpop.f32.mrf.mxu0
      %v2084 = vadd.f32 %v1995, %v2083
      %2085 = vmatmul.bf16.gmra.mxu0 %v915
      %v2086 = vpop.f32.mrf.mxu0
      %v2087 = vadd.f32 %v1998, %v2086
      %v2088 = vpop.f32.mrf.mxu0
      %v2089 = vadd.f32 %v2000, %v2088
      %2090 = vmatmul.bf16.gmra.mxu0 %v923
      %v2091 = vpop.f32.mrf.mxu0
      %v2092 = vadd.f32 %v2003, %v2091
      %v2093 = vpop.f32.mrf.mxu0
      %v2094 = vadd.f32 %v2005, %v2093
      %2095 = vmatmul.bf16.gmra.mxu0 %v931
      %v2096 = vpop.f32.mrf.mxu0
      %v2097 = vadd.f32 %v2008, %v2096
      %v2098 = vpop.f32.mrf.mxu0
      %v2099 = vadd.f32 %v2010, %v2098
      %2100 = vmatmul.bf16.gmra.mxu0 %v939
      %v2101 = vpop.f32.mrf.mxu0
      %v2102 = vadd.f32 %v2013, %v2101
      %v2103 = vpop.f32.mrf.mxu0
      %v2104 = vadd.f32 %v2015, %v2103
      %2105 = vmatmul.bf16.gmra.mxu0 %v947
      %v2106 = vpop.f32.mrf.mxu0
      %v2107 = vadd.f32 %v2018, %v2106
      %v2108 = vpop.f32.mrf.mxu0
      %v2109 = vadd.f32 %v2020, %v2108
      %2110 = vmatmul.bf16.gmra.mxu0 %v955
      %v2111 = vpop.f32.mrf.mxu0
      %v2112 = vadd.f32 %v2023, %v2111
      %v2113 = vpop.f32.mrf.mxu0
      %v2114 = vadd.f32 %v2025, %v2113
      %2115 = vmatmul.bf16.gmra.mxu0 %v963
      %v2116 = vpop.f32.mrf.mxu0
      %v2117 = vadd.f32 %v2028, %v2116
      %v2118 = vpop.f32.mrf.mxu0
      %v2119 = vadd.f32 %v2030, %v2118
      %2120 = vmatmul.bf16.gmra.mxu0 %v971
      %v2121 = vpop.f32.mrf.mxu0
      %v2122 = vadd.f32 %v2033, %v2121
      %v2123 = vpop.f32.mrf.mxu0
      %v2124 = vadd.f32 %v2035, %v2123
      %2125 = vmatmul.bf16.gmra.mxu0 %v979
      %v2126 = vpop.f32.mrf.mxu0
      %v2127 = vadd.f32 %v2038, %v2126
      %v2128 = vpop.f32.mrf.mxu0
      %v2129 = vadd.f32 %v2040, %v2128
      %2130 = vmatmul.bf16.gmra.mxu0 %v987
      %v2131 = vpop.f32.mrf.mxu0
      %v2132 = vadd.f32 %v2043, %v2131
      %v2133 = vpop.f32.mrf.mxu0
      %v2134 = vadd.f32 %v2045, %v2133
      %2135 = vmatmul.bf16.gmra.mxu0 %v995
      %v2136 = vpop.f32.mrf.mxu0
      %v2137 = vadd.f32 %v2048, %v2136
      %v2138 = vpop.f32.mrf.mxu0
      %v2139 = vadd.f32 %v2050, %v2138
      %2140 = vmatmul.bf16.gmra.mxu0 %v1003
      %v2141 = vpop.f32.mrf.mxu0
      %v2142 = vadd.f32 %v2053, %v2141
      %v2143 = vpop.f32.mrf.mxu0
      %v2144 = vadd.f32 %v2055, %v2143
      %2145 = vmatmul.bf16.gmra.mxu0 %v1011
      %v2146 = vpop.f32.mrf.mxu0
      %v2147 = vadd.f32 %v2058, %v2146
      %v2148 = vpop.f32.mrf.mxu0
      %v2149 = vadd.f32 %v2060, %v2148
      %2150 = vmatmul.bf16.gmra.mxu0 %v1019
      %v2151 = vpop.f32.mrf.mxu0
      %v2152 = vadd.f32 %v2063, %v2151
      %v2153 = vpop.f32.mrf.mxu0
      %v2154 = vadd.f32 %v2065, %v2153
      %2155 = vdwg.mxu0
      %2156 = vmatpush.bf16.msra.mxu0 %v1468
      %2157 = vmatpush.bf16.msra.mxu0 %v1467
      %2158 = vmatpush.bf16.msra.mxu0 %v1466
      %2159 = vmatpush.bf16.msra.mxu0 %v1465
      %2160 = vmatpush.bf16.msra.mxu0 %v1464
      %2161 = vmatpush.bf16.msra.mxu0 %v1463
      %2162 = vmatpush.bf16.msra.mxu0 %v1462
      %2163 = vmatpush.bf16.msra.mxu0 %v1461
      %2164 = vmatmul.bf16.gmra.mxu0 %v900
      %v2165 = vpop.f32.mrf.mxu0
      %v2166 = vadd.f32 %v2077, %v2165
      %v2167 = vpop.f32.mrf.mxu0
      %v2168 = vadd.f32 %v2079, %v2167
      %2169 = vmatmul.bf16.gmra.mxu0 %v908
      %v2170 = vpop.f32.mrf.mxu0
      %v2171 = vadd.f32 %v2082, %v2170
      %v2172 = vpop.f32.mrf.mxu0
      %v2173 = vadd.f32 %v2084, %v2172
      %2174 = vmatmul.bf16.gmra.mxu0 %v916
      %v2175 = vpop.f32.mrf.mxu0
      %v2176 = vadd.f32 %v2087, %v2175
      %v2177 = vpop.f32.mrf.mxu0
      %v2178 = vadd.f32 %v2089, %v2177
      %2179 = vmatmul.bf16.gmra.mxu0 %v924
      %v2180 = vpop.f32.mrf.mxu0
      %v2181 = vadd.f32 %v2092, %v2180
      %v2182 = vpop.f32.mrf.mxu0
      %v2183 = vadd.f32 %v2094, %v2182
      %2184 = vmatmul.bf16.gmra.mxu0 %v932
      %v2185 = vpop.f32.mrf.mxu0
      %v2186 = vadd.f32 %v2097, %v2185
      %v2187 = vpop.f32.mrf.mxu0
      %v2188 = vadd.f32 %v2099, %v2187
      %2189 = vmatmul.bf16.gmra.mxu0 %v940
      %v2190 = vpop.f32.mrf.mxu0
      %v2191 = vadd.f32 %v2102, %v2190
      %v2192 = vpop.f32.mrf.mxu0
      %v2193 = vadd.f32 %v2104, %v2192
      %2194 = vmatmul.bf16.gmra.mxu0 %v948
      %v2195 = vpop.f32.mrf.mxu0
      %v2196 = vadd.f32 %v2107, %v2195
      %v2197 = vpop.f32.mrf.mxu0
      %v2198 = vadd.f32 %v2109, %v2197
      %2199 = vmatmul.bf16.gmra.mxu0 %v956
      %v2200 = vpop.f32.mrf.mxu0
      %v2201 = vadd.f32 %v2112, %v2200
      %v2202 = vpop.f32.mrf.mxu0
      %v2203 = vadd.f32 %v2114, %v2202
      %2204 = vmatmul.bf16.gmra.mxu0 %v964
      %v2205 = vpop.f32.mrf.mxu0
      %v2206 = vadd.f32 %v2117, %v2205
      %v2207 = vpop.f32.mrf.mxu0
      %v2208 = vadd.f32 %v2119, %v2207
      %2209 = vmatmul.bf16.gmra.mxu0 %v972
      %v2210 = vpop.f32.mrf.mxu0
      %v2211 = vadd.f32 %v2122, %v2210
      %v2212 = vpop.f32.mrf.mxu0
      %v2213 = vadd.f32 %v2124, %v2212
      %2214 = vmatmul.bf16.gmra.mxu0 %v980
      %v2215 = vpop.f32.mrf.mxu0
      %v2216 = vadd.f32 %v2127, %v2215
      %v2217 = vpop.f32.mrf.mxu0
      %v2218 = vadd.f32 %v2129, %v2217
      %2219 = vmatmul.bf16.gmra.mxu0 %v988
      %v2220 = vpop.f32.mrf.mxu0
      %v2221 = vadd.f32 %v2132, %v2220
      %v2222 = vpop.f32.mrf.mxu0
      %v2223 = vadd.f32 %v2134, %v2222
      %2224 = vmatmul.bf16.gmra.mxu0 %v996
      %v2225 = vpop.f32.mrf.mxu0
      %v2226 = vadd.f32 %v2137, %v2225
      %v2227 = vpop.f32.mrf.mxu0
      %v2228 = vadd.f32 %v2139, %v2227
      %2229 = vmatmul.bf16.gmra.mxu0 %v1004
      %v2230 = vpop.f32.mrf.mxu0
      %v2231 = vadd.f32 %v2142, %v2230
      %v2232 = vpop.f32.mrf.mxu0
      %v2233 = vadd.f32 %v2144, %v2232
      %2234 = vmatmul.bf16.gmra.mxu0 %v1012
      %v2235 = vpop.f32.mrf.mxu0
      %v2236 = vadd.f32 %v2147, %v2235
      %v2237 = vpop.f32.mrf.mxu0
      %v2238 = vadd.f32 %v2149, %v2237
      %2239 = vmatmul.bf16.gmra.mxu0 %v1020
      %v2240 = vpop.f32.mrf.mxu0
      %v2241 = vadd.f32 %v2152, %v2240
      %v2242 = vpop.f32.mrf.mxu0
      %v2243 = vadd.f32 %v2154, %v2242
      %2244 = vdwg.mxu0
      %v2245 = vld [vmem:[%s272] sm:$0xff]
      %v2246 = vld [vmem:[%s272 + $0x8] sm:$0xff]
      %v2247 = vld [vmem:[%s272 + $0x10] sm:$0xff]
      %v2248 = vld [vmem:[%s272 + $0x18] sm:$0xff]
      %v2249 = vld [vmem:[%s272 + $0x20] sm:$0xff]
      %v2250 = vld [vmem:[%s272 + $0x28] sm:$0xff]
      %v2251 = vld [vmem:[%s272 + $0x30] sm:$0xff]
      %v2252 = vld [vmem:[%s272 + $0x38] sm:$0xff]
      %v2253 = vld [vmem:[%s272 + $0x40] sm:$0xff]
      %v2254 = vld [vmem:[%s272 + $0x48] sm:$0xff]
      %v2255 = vld [vmem:[%s272 + $0x50] sm:$0xff]
      %v2256 = vld [vmem:[%s272 + $0x58] sm:$0xff]
      %v2257 = vld [vmem:[%s272 + $0x60] sm:$0xff]
      %v2258 = vld [vmem:[%s272 + $0x68] sm:$0xff]
      %v2259 = vld [vmem:[%s272 + $0x70] sm:$0xff]
      %v2260 = vld [vmem:[%s272 + $0x78] sm:$0xff]
      %v2261 = vld [vmem:[%s272 + $0x80] sm:$0xff]
      %v2262 = vld [vmem:[%s272 + $0x88] sm:$0xff]
      %v2263 = vld [vmem:[%s272 + $0x90] sm:$0xff]
      %v2264 = vld [vmem:[%s272 + $0x98] sm:$0xff]
      %v2265 = vld [vmem:[%s272 + $0xa0] sm:$0xff]
      %v2266 = vld [vmem:[%s272 + $0xa8] sm:$0xff]
      %v2267 = vld [vmem:[%s272 + $0xb0] sm:$0xff]
      %v2268 = vld [vmem:[%s272 + $0xb8] sm:$0xff]
      %v2269 = vld [vmem:[%s272 + $0xc0] sm:$0xff]
      %v2270 = vld [vmem:[%s272 + $0xc8] sm:$0xff]
      %v2271 = vld [vmem:[%s272 + $0xd0] sm:$0xff]
      %v2272 = vld [vmem:[%s272 + $0xd8] sm:$0xff]
      %v2273 = vld [vmem:[%s272 + $0xe0] sm:$0xff]
      %v2274 = vld [vmem:[%s272 + $0xe8] sm:$0xff]
      %v2275 = vld [vmem:[%s272 + $0xf0] sm:$0xff]
      %v2276 = vld [vmem:[%s272 + $0xf8] sm:$0xff]
      %2278 = vset.pattern.permute.xlu0 0
      %2279 = vperm.xlu0 %2278, %v2245
      %v2280 = vpop.permute.xlu0 %2279
      %2283 = vset.pattern.permute.xlu0 0
      %2284 = vperm.xlu0 %2283, %v2246
      %v2285 = vpop.permute.xlu0 %2284
      %2288 = vset.pattern.permute.xlu0 0
      %2289 = vperm.xlu0 %2288, %v2247
      %v2290 = vpop.permute.xlu0 %2289
      %2293 = vset.pattern.permute.xlu0 0
      %2294 = vperm.xlu0 %2293, %v2248
      %v2295 = vpop.permute.xlu0 %2294
      %2298 = vset.pattern.permute.xlu0 0
      %2299 = vperm.xlu0 %2298, %v2249
      %v2300 = vpop.permute.xlu0 %2299
      %2303 = vset.pattern.permute.xlu0 0
      %2304 = vperm.xlu0 %2303, %v2250
      %v2305 = vpop.permute.xlu0 %2304
      %2308 = vset.pattern.permute.xlu0 0
      %2309 = vperm.xlu0 %2308, %v2251
      %v2310 = vpop.permute.xlu0 %2309
      %2313 = vset.pattern.permute.xlu0 0
      %2314 = vperm.xlu0 %2313, %v2252
      %v2315 = vpop.permute.xlu0 %2314
      %2318 = vset.pattern.permute.xlu0 0
      %2319 = vperm.xlu0 %2318, %v2253
      %v2320 = vpop.permute.xlu0 %2319
      %2323 = vset.pattern.permute.xlu0 0
      %2324 = vperm.xlu0 %2323, %v2254
      %v2325 = vpop.permute.xlu0 %2324
      %2328 = vset.pattern.permute.xlu0 0
      %2329 = vperm.xlu0 %2328, %v2255
      %v2330 = vpop.permute.xlu0 %2329
      %2333 = vset.pattern.permute.xlu0 0
      %2334 = vperm.xlu0 %2333, %v2256
      %v2335 = vpop.permute.xlu0 %2334
      %2338 = vset.pattern.permute.xlu0 0
      %2339 = vperm.xlu0 %2338, %v2257
      %v2340 = vpop.permute.xlu0 %2339
      %2343 = vset.pattern.permute.xlu0 0
      %2344 = vperm.xlu0 %2343, %v2258
      %v2345 = vpop.permute.xlu0 %2344
      %2348 = vset.pattern.permute.xlu0 0
      %2349 = vperm.xlu0 %2348, %v2259
      %v2350 = vpop.permute.xlu0 %2349
      %2353 = vset.pattern.permute.xlu0 0
      %2354 = vperm.xlu0 %2353, %v2260
      %v2355 = vpop.permute.xlu0 %2354
      %2358 = vset.pattern.permute.xlu0 0
      %2359 = vperm.xlu0 %2358, %v2261
      %v2360 = vpop.permute.xlu0 %2359
      %2363 = vset.pattern.permute.xlu0 0
      %2364 = vperm.xlu0 %2363, %v2262
      %v2365 = vpop.permute.xlu0 %2364
      %2368 = vset.pattern.permute.xlu0 0
      %2369 = vperm.xlu0 %2368, %v2263
      %v2370 = vpop.permute.xlu0 %2369
      %2373 = vset.pattern.permute.xlu0 0
      %2374 = vperm.xlu0 %2373, %v2264
      %v2375 = vpop.permute.xlu0 %2374
      %2378 = vset.pattern.permute.xlu0 0
      %2379 = vperm.xlu0 %2378, %v2265
      %v2380 = vpop.permute.xlu0 %2379
      %2383 = vset.pattern.permute.xlu0 0
      %2384 = vperm.xlu0 %2383, %v2266
      %v2385 = vpop.permute.xlu0 %2384
      %2388 = vset.pattern.permute.xlu0 0
      %2389 = vperm.xlu0 %2388, %v2267
      %v2390 = vpop.permute.xlu0 %2389
      %2393 = vset.pattern.permute.xlu0 0
      %2394 = vperm.xlu0 %2393, %v2268
      %v2395 = vpop.permute.xlu0 %2394
      %2398 = vset.pattern.permute.xlu0 0
      %2399 = vperm.xlu0 %2398, %v2269
      %v2400 = vpop.permute.xlu0 %2399
      %2403 = vset.pattern.permute.xlu0 0
      %2404 = vperm.xlu0 %2403, %v2270
      %v2405 = vpop.permute.xlu0 %2404
      %2408 = vset.pattern.permute.xlu0 0
      %2409 = vperm.xlu0 %2408, %v2271
      %v2410 = vpop.permute.xlu0 %2409
      %2413 = vset.pattern.permute.xlu0 0
      %2414 = vperm.xlu0 %2413, %v2272
      %v2415 = vpop.permute.xlu0 %2414
      %2418 = vset.pattern.permute.xlu0 0
      %2419 = vperm.xlu0 %2418, %v2273
      %v2420 = vpop.permute.xlu0 %2419
      %2423 = vset.pattern.permute.xlu0 0
      %2424 = vperm.xlu0 %2423, %v2274
      %v2425 = vpop.permute.xlu0 %2424
      %2428 = vset.pattern.permute.xlu0 0
      %2429 = vperm.xlu0 %2428, %v2275
      %v2430 = vpop.permute.xlu0 %2429
      %2433 = vset.pattern.permute.xlu0 0
      %2434 = vperm.xlu0 %2433, %v2276
      %v2435 = vpop.permute.xlu0 %2434
      %v2437 = vmul.f32 %v2166, %v2280
      %v2438 = vmul.f32 %v2168, %v2285
      %v2439 = vmul.f32 %v2171, %v2290
      %v2440 = vmul.f32 %v2173, %v2295
      %v2441 = vmul.f32 %v2176, %v2300
      %v2442 = vmul.f32 %v2178, %v2305
      %v2443 = vmul.f32 %v2181, %v2310
      %v2444 = vmul.f32 %v2183, %v2315
      %v2445 = vmul.f32 %v2186, %v2320
      %v2446 = vmul.f32 %v2188, %v2325
      %v2447 = vmul.f32 %v2191, %v2330
      %v2448 = vmul.f32 %v2193, %v2335
      %v2449 = vmul.f32 %v2196, %v2340
      %v2450 = vmul.f32 %v2198, %v2345
      %v2451 = vmul.f32 %v2201, %v2350
      %v2452 = vmul.f32 %v2203, %v2355
      %v2453 = vmul.f32 %v2206, %v2360
      %v2454 = vmul.f32 %v2208, %v2365
      %v2455 = vmul.f32 %v2211, %v2370
      %v2456 = vmul.f32 %v2213, %v2375
      %v2457 = vmul.f32 %v2216, %v2380
      %v2458 = vmul.f32 %v2218, %v2385
      %v2459 = vmul.f32 %v2221, %v2390
      %v2460 = vmul.f32 %v2223, %v2395
      %v2461 = vmul.f32 %v2226, %v2400
      %v2462 = vmul.f32 %v2228, %v2405
      %v2463 = vmul.f32 %v2231, %v2410
      %v2464 = vmul.f32 %v2233, %v2415
      %v2465 = vmul.f32 %v2236, %v2420
      %v2466 = vmul.f32 %v2238, %v2425
      %v2467 = vmul.f32 %v2241, %v2430
      %v2468 = vmul.f32 %v2243, %v2435
      %v2469 = vpack.c.bf16 %v2438, %v2437
      %v2470 = vpack.c.bf16 %v2440, %v2439
      %v2471 = vpack.c.bf16 %v2442, %v2441
      %v2472 = vpack.c.bf16 %v2444, %v2443
      %v2473 = vpack.c.bf16 %v2446, %v2445
      %v2474 = vpack.c.bf16 %v2448, %v2447
      %v2475 = vpack.c.bf16 %v2450, %v2449
      %v2476 = vpack.c.bf16 %v2452, %v2451
      %v2477 = vpack.c.bf16 %v2454, %v2453
      %v2478 = vpack.c.bf16 %v2456, %v2455
      %v2479 = vpack.c.bf16 %v2458, %v2457
      %v2480 = vpack.c.bf16 %v2460, %v2459
      %v2481 = vpack.c.bf16 %v2462, %v2461
      %v2482 = vpack.c.bf16 %v2464, %v2463
      %v2483 = vpack.c.bf16 %v2466, %v2465
      %v2484 = vpack.c.bf16 %v2468, %v2467
      %v2485 = vld [vmem:[%s3] sm:$0xf]
      %v2486 = vld [vmem:[%s3 + $0x4] sm:$0xf]
      %v2487 = vld [vmem:[%s3 + $0x8] sm:$0xf]
      %v2488 = vld [vmem:[%s3 + $0xc] sm:$0xf]
      %v2489 = vld [vmem:[%s3 + $0x10] sm:$0xf]
      %v2490 = vld [vmem:[%s3 + $0x14] sm:$0xf]
      %v2491 = vld [vmem:[%s3 + $0x18] sm:$0xf]
      %v2492 = vld [vmem:[%s3 + $0x1c] sm:$0xf]
      %v2493 = vld [vmem:[%s3 + $0x20] sm:$0xf]
      %v2494 = vld [vmem:[%s3 + $0x24] sm:$0xf]
      %v2495 = vld [vmem:[%s3 + $0x28] sm:$0xf]
      %v2496 = vld [vmem:[%s3 + $0x2c] sm:$0xf]
      %v2497 = vld [vmem:[%s3 + $0x30] sm:$0xf]
      %v2498 = vld [vmem:[%s3 + $0x34] sm:$0xf]
      %v2499 = vld [vmem:[%s3 + $0x38] sm:$0xf]
      %v2500 = vld [vmem:[%s3 + $0x3c] sm:$0xf]
      %v2501 = vld [vmem:[%s4] sm:$0xf]
      %v2502 = vld [vmem:[%s4 + $0x4] sm:$0xf]
      %v2503 = vld [vmem:[%s4 + $0x8] sm:$0xf]
      %v2504 = vld [vmem:[%s4 + $0xc] sm:$0xf]
      %v2505 = vld [vmem:[%s4 + $0x10] sm:$0xf]
      %v2506 = vld [vmem:[%s4 + $0x14] sm:$0xf]
      %v2507 = vld [vmem:[%s4 + $0x18] sm:$0xf]
      %v2508 = vld [vmem:[%s4 + $0x1c] sm:$0xf]
      %v2509 = vld [vmem:[%s4 + $0x20] sm:$0xf]
      %v2510 = vld [vmem:[%s4 + $0x24] sm:$0xf]
      %v2511 = vld [vmem:[%s4 + $0x28] sm:$0xf]
      %v2512 = vld [vmem:[%s4 + $0x2c] sm:$0xf]
      %v2513 = vld [vmem:[%s4 + $0x30] sm:$0xf]
      %v2514 = vld [vmem:[%s4 + $0x34] sm:$0xf]
      %v2515 = vld [vmem:[%s4 + $0x38] sm:$0xf]
      %v2516 = vld [vmem:[%s4 + $0x3c] sm:$0xf]
      %v2533 = vunpack.c.l.b16 %v2501
      %v2534 = vunpack.c.l.b16 %v2502
      %v2535 = vunpack.c.l.b16 %v2503
      %v2536 = vunpack.c.l.b16 %v2504
      %v2537 = vunpack.c.l.b16 %v2505
      %v2538 = vunpack.c.l.b16 %v2506
      %v2539 = vunpack.c.l.b16 %v2507
      %v2540 = vunpack.c.l.b16 %v2508
      %v2541 = vunpack.c.l.b16 %v2509
      %v2542 = vunpack.c.l.b16 %v2510
      %v2543 = vunpack.c.l.b16 %v2511
      %v2544 = vunpack.c.l.b16 %v2512
      %v2545 = vunpack.c.l.b16 %v2513
      %v2546 = vunpack.c.l.b16 %v2514
      %v2547 = vunpack.c.l.b16 %v2515
      %v2548 = vunpack.c.l.b16 %v2516
      %v2549 = vpack.c.b16 %v2534, %v2533
      %v2550 = vpack.c.b16 %v2536, %v2535
      %v2551 = vpack.c.b16 %v2538, %v2537
      %v2552 = vpack.c.b16 %v2540, %v2539
      %v2553 = vpack.c.b16 %v2542, %v2541
      %v2554 = vpack.c.b16 %v2544, %v2543
      %v2555 = vpack.c.b16 %v2546, %v2545
      %v2556 = vpack.c.b16 %v2548, %v2547
      %2565 = vmatpush.bf16.msra.mxu0 %v2556
      %2566 = vmatpush.bf16.msra.mxu0 %v2555
      %2567 = vmatpush.bf16.msra.mxu0 %v2554
      %2568 = vmatpush.bf16.msra.mxu0 %v2553
      %2569 = vmatpush.bf16.msra.mxu0 %v2552
      %2570 = vmatpush.bf16.msra.mxu0 %v2551
      %2571 = vmatpush.bf16.msra.mxu0 %v2550
      %2572 = vmatpush.bf16.msra.mxu0 %v2549
      %2573 = vmatmul.bf16.gmra.mxu0 %v2469
      %v2574 = vpop.f32.mrf.mxu0
      %v2575 = vadd.f32 0.0, %v2574
      %v2576 = vpop.f32.mrf.mxu0
      %v2577 = vadd.f32 0.0, %v2576
      %2578 = vmatmul.bf16.gmra.mxu0 %v2470
      %v2579 = vpop.f32.mrf.mxu0
      %v2580 = vadd.f32 0.0, %v2579
      %v2581 = vpop.f32.mrf.mxu0
      %v2582 = vadd.f32 0.0, %v2581
      %2583 = vmatmul.bf16.gmra.mxu0 %v2471
      %v2584 = vpop.f32.mrf.mxu0
      %v2585 = vadd.f32 0.0, %v2584
      %v2586 = vpop.f32.mrf.mxu0
      %v2587 = vadd.f32 0.0, %v2586
      %2588 = vmatmul.bf16.gmra.mxu0 %v2472
      %v2589 = vpop.f32.mrf.mxu0
      %v2590 = vadd.f32 0.0, %v2589
      %v2591 = vpop.f32.mrf.mxu0
      %v2592 = vadd.f32 0.0, %v2591
      %2593 = vmatmul.bf16.gmra.mxu0 %v2473
      %v2594 = vpop.f32.mrf.mxu0
      %v2595 = vadd.f32 0.0, %v2594
      %v2596 = vpop.f32.mrf.mxu0
      %v2597 = vadd.f32 0.0, %v2596
      %2598 = vmatmul.bf16.gmra.mxu0 %v2474
      %v2599 = vpop.f32.mrf.mxu0
      %v2600 = vadd.f32 0.0, %v2599
      %v2601 = vpop.f32.mrf.mxu0
      %v2602 = vadd.f32 0.0, %v2601
      %2603 = vmatmul.bf16.gmra.mxu0 %v2475
      %v2604 = vpop.f32.mrf.mxu0
      %v2605 = vadd.f32 0.0, %v2604
      %v2606 = vpop.f32.mrf.mxu0
      %v2607 = vadd.f32 0.0, %v2606
      %2608 = vmatmul.bf16.gmra.mxu0 %v2476
      %v2609 = vpop.f32.mrf.mxu0
      %v2610 = vadd.f32 0.0, %v2609
      %v2611 = vpop.f32.mrf.mxu0
      %v2612 = vadd.f32 0.0, %v2611
      %2613 = vmatmul.bf16.gmra.mxu0 %v2477
      %v2614 = vpop.f32.mrf.mxu0
      %v2615 = vadd.f32 0.0, %v2614
      %v2616 = vpop.f32.mrf.mxu0
      %v2617 = vadd.f32 0.0, %v2616
      %2618 = vmatmul.bf16.gmra.mxu0 %v2478
      %v2619 = vpop.f32.mrf.mxu0
      %v2620 = vadd.f32 0.0, %v2619
      %v2621 = vpop.f32.mrf.mxu0
      %v2622 = vadd.f32 0.0, %v2621
      %2623 = vmatmul.bf16.gmra.mxu0 %v2479
      %v2624 = vpop.f32.mrf.mxu0
      %v2625 = vadd.f32 0.0, %v2624
      %v2626 = vpop.f32.mrf.mxu0
      %v2627 = vadd.f32 0.0, %v2626
      %2628 = vmatmul.bf16.gmra.mxu0 %v2480
      %v2629 = vpop.f32.mrf.mxu0
      %v2630 = vadd.f32 0.0, %v2629
      %v2631 = vpop.f32.mrf.mxu0
      %v2632 = vadd.f32 0.0, %v2631
      %2633 = vmatmul.bf16.gmra.mxu0 %v2481
      %v2634 = vpop.f32.mrf.mxu0
      %v2635 = vadd.f32 0.0, %v2634
      %v2636 = vpop.f32.mrf.mxu0
      %v2637 = vadd.f32 0.0, %v2636
      %2638 = vmatmul.bf16.gmra.mxu0 %v2482
      %v2639 = vpop.f32.mrf.mxu0
      %v2640 = vadd.f32 0.0, %v2639
      %v2641 = vpop.f32.mrf.mxu0
      %v2642 = vadd.f32 0.0, %v2641
      %2643 = vmatmul.bf16.gmra.mxu0 %v2483
      %v2644 = vpop.f32.mrf.mxu0
      %v2645 = vadd.f32 0.0, %v2644
      %v2646 = vpop.f32.mrf.mxu0
      %v2647 = vadd.f32 0.0, %v2646
      %2648 = vmatmul.bf16.gmra.mxu0 %v2484
      %v2649 = vpop.f32.mrf.mxu0
      %v2650 = vadd.f32 0.0, %v2649
      %v2651 = vpop.f32.mrf.mxu0
      %v2652 = vadd.f32 0.0, %v2651
      %2653 = vdwg.mxu0
      %v2686 = vunpack.c.l.b16 %v285
      %v2687 = vunpack.c.l.b16 %v286
      %v2688 = vunpack.c.l.b16 %v287
      %v2689 = vunpack.c.l.b16 %v288
      %v2690 = vunpack.c.l.b16 %v289
      %v2691 = vunpack.c.l.b16 %v290
      %v2692 = vunpack.c.l.b16 %v291
      %v2693 = vunpack.c.l.b16 %v292
      %v2694 = vunpack.c.l.b16 %v293
      %v2695 = vunpack.c.l.b16 %v294
      %v2696 = vunpack.c.l.b16 %v295
      %v2697 = vunpack.c.l.b16 %v296
      %v2698 = vunpack.c.l.b16 %v297
      %v2699 = vunpack.c.l.b16 %v298
      %v2700 = vunpack.c.l.b16 %v299
      %v2701 = vunpack.c.l.b16 %v300
      %v2702 = vunpack.c.l.b16 %v301
      %v2703 = vunpack.c.l.b16 %v302
      %v2704 = vunpack.c.l.b16 %v303
      %v2705 = vunpack.c.l.b16 %v304
      %v2706 = vunpack.c.l.b16 %v305
      %v2707 = vunpack.c.l.b16 %v306
      %v2708 = vunpack.c.l.b16 %v307
      %v2709 = vunpack.c.l.b16 %v308
      %v2710 = vunpack.c.l.b16 %v309
      %v2711 = vunpack.c.l.b16 %v310
      %v2712 = vunpack.c.l.b16 %v311
      %v2713 = vunpack.c.l.b16 %v312
      %v2714 = vunpack.c.l.b16 %v313
      %v2715 = vunpack.c.l.b16 %v314
      %v2716 = vunpack.c.l.b16 %v315
      %v2717 = vunpack.c.l.b16 %v316
      %v2718 = vpack.c.b16 %v2687, %v2686
      %v2719 = vpack.c.b16 %v2689, %v2688
      %v2720 = vpack.c.b16 %v2691, %v2690
      %v2721 = vpack.c.b16 %v2693, %v2692
      %v2722 = vpack.c.b16 %v2695, %v2694
      %v2723 = vpack.c.b16 %v2697, %v2696
      %v2724 = vpack.c.b16 %v2699, %v2698
      %v2725 = vpack.c.b16 %v2701, %v2700
      %v2726 = vpack.c.b16 %v2703, %v2702
      %v2727 = vpack.c.b16 %v2705, %v2704
      %v2728 = vpack.c.b16 %v2707, %v2706
      %v2729 = vpack.c.b16 %v2709, %v2708
      %v2730 = vpack.c.b16 %v2711, %v2710
      %v2731 = vpack.c.b16 %v2713, %v2712
      %v2732 = vpack.c.b16 %v2715, %v2714
      %v2733 = vpack.c.b16 %v2717, %v2716
      %v2766 = vunpack.c.l.b16 %v2485
      %v2767 = vunpack.c.l.b16 %v2486
      %v2768 = vunpack.c.l.b16 %v2487
      %v2769 = vunpack.c.l.b16 %v2488
      %v2770 = vunpack.c.l.b16 %v2489
      %v2771 = vunpack.c.l.b16 %v2490
      %v2772 = vunpack.c.l.b16 %v2491
      %v2773 = vunpack.c.l.b16 %v2492
      %v2774 = vunpack.c.l.b16 %v2493
      %v2775 = vunpack.c.l.b16 %v2494
      %v2776 = vunpack.c.l.b16 %v2495
      %v2777 = vunpack.c.l.b16 %v2496
      %v2778 = vunpack.c.l.b16 %v2497
      %v2779 = vunpack.c.l.b16 %v2498
      %v2780 = vunpack.c.l.b16 %v2499
      %v2781 = vunpack.c.l.b16 %v2500
      %v2782 = vpack.c.b16 %v2767, %v2766
      %v2783 = vpack.c.b16 %v2769, %v2768
      %v2784 = vpack.c.b16 %v2771, %v2770
      %v2785 = vpack.c.b16 %v2773, %v2772
      %v2786 = vpack.c.b16 %v2775, %v2774
      %v2787 = vpack.c.b16 %v2777, %v2776
      %v2788 = vpack.c.b16 %v2779, %v2778
      %v2789 = vpack.c.b16 %v2781, %v2780
      %2798 = vmatpush.bf16.msra.mxu0 %v2789
      %2799 = vmatpush.bf16.msra.mxu0 %v2788
      %2800 = vmatpush.bf16.msra.mxu0 %v2787
      %2801 = vmatpush.bf16.msra.mxu0 %v2786
      %2802 = vmatpush.bf16.msra.mxu0 %v2785
      %2803 = vmatpush.bf16.msra.mxu0 %v2784
      %2804 = vmatpush.bf16.msra.mxu0 %v2783
      %2805 = vmatpush.bf16.msra.mxu0 %v2782
      %2806 = vmatmul.bf16.gmra.mxu0 %v2718
      %v2807 = vpop.f32.mrf.mxu0
      %v2808 = vadd.f32 %v2575, %v2807
      %v2809 = vpop.f32.mrf.mxu0
      %v2810 = vadd.f32 %v2577, %v2809
      %2811 = vmatmul.bf16.gmra.mxu0 %v2719
      %v2812 = vpop.f32.mrf.mxu0
      %v2813 = vadd.f32 %v2580, %v2812
      %v2814 = vpop.f32.mrf.mxu0
      %v2815 = vadd.f32 %v2582, %v2814
      %2816 = vmatmul.bf16.gmra.mxu0 %v2720
      %v2817 = vpop.f32.mrf.mxu0
      %v2818 = vadd.f32 %v2585, %v2817
      %v2819 = vpop.f32.mrf.mxu0
      %v2820 = vadd.f32 %v2587, %v2819
      %2821 = vmatmul.bf16.gmra.mxu0 %v2721
      %v2822 = vpop.f32.mrf.mxu0
      %v2823 = vadd.f32 %v2590, %v2822
      %v2824 = vpop.f32.mrf.mxu0
      %v2825 = vadd.f32 %v2592, %v2824
      %2826 = vmatmul.bf16.gmra.mxu0 %v2722
      %v2827 = vpop.f32.mrf.mxu0
      %v2828 = vadd.f32 %v2595, %v2827
      %v2829 = vpop.f32.mrf.mxu0
      %v2830 = vadd.f32 %v2597, %v2829
      %2831 = vmatmul.bf16.gmra.mxu0 %v2723
      %v2832 = vpop.f32.mrf.mxu0
      %v2833 = vadd.f32 %v2600, %v2832
      %v2834 = vpop.f32.mrf.mxu0
      %v2835 = vadd.f32 %v2602, %v2834
      %2836 = vmatmul.bf16.gmra.mxu0 %v2724
      %v2837 = vpop.f32.mrf.mxu0
      %v2838 = vadd.f32 %v2605, %v2837
      %v2839 = vpop.f32.mrf.mxu0
      %v2840 = vadd.f32 %v2607, %v2839
      %2841 = vmatmul.bf16.gmra.mxu0 %v2725
      %v2842 = vpop.f32.mrf.mxu0
      %v2843 = vadd.f32 %v2610, %v2842
      %v2844 = vpop.f32.mrf.mxu0
      %v2845 = vadd.f32 %v2612, %v2844
      %2846 = vmatmul.bf16.gmra.mxu0 %v2726
      %v2847 = vpop.f32.mrf.mxu0
      %v2848 = vadd.f32 %v2615, %v2847
      %v2849 = vpop.f32.mrf.mxu0
      %v2850 = vadd.f32 %v2617, %v2849
      %2851 = vmatmul.bf16.gmra.mxu0 %v2727
      %v2852 = vpop.f32.mrf.mxu0
      %v2853 = vadd.f32 %v2620, %v2852
      %v2854 = vpop.f32.mrf.mxu0
      %v2855 = vadd.f32 %v2622, %v2854
      %2856 = vmatmul.bf16.gmra.mxu0 %v2728
      %v2857 = vpop.f32.mrf.mxu0
      %v2858 = vadd.f32 %v2625, %v2857
      %v2859 = vpop.f32.mrf.mxu0
      %v2860 = vadd.f32 %v2627, %v2859
      %2861 = vmatmul.bf16.gmra.mxu0 %v2729
      %v2862 = vpop.f32.mrf.mxu0
      %v2863 = vadd.f32 %v2630, %v2862
      %v2864 = vpop.f32.mrf.mxu0
      %v2865 = vadd.f32 %v2632, %v2864
      %2866 = vmatmul.bf16.gmra.mxu0 %v2730
      %v2867 = vpop.f32.mrf.mxu0
      %v2868 = vadd.f32 %v2635, %v2867
      %v2869 = vpop.f32.mrf.mxu0
      %v2870 = vadd.f32 %v2637, %v2869
      %2871 = vmatmul.bf16.gmra.mxu0 %v2731
      %v2872 = vpop.f32.mrf.mxu0
      %v2873 = vadd.f32 %v2640, %v2872
      %v2874 = vpop.f32.mrf.mxu0
      %v2875 = vadd.f32 %v2642, %v2874
      %2876 = vmatmul.bf16.gmra.mxu0 %v2732
      %v2877 = vpop.f32.mrf.mxu0
      %v2878 = vadd.f32 %v2645, %v2877
      %v2879 = vpop.f32.mrf.mxu0
      %v2880 = vadd.f32 %v2647, %v2879
      %2881 = vmatmul.bf16.gmra.mxu0 %v2733
      %v2882 = vpop.f32.mrf.mxu0
      %v2883 = vadd.f32 %v2650, %v2882
      %v2884 = vpop.f32.mrf.mxu0
      %v2885 = vadd.f32 %v2652, %v2884
      %2886 = vdwg.mxu0
      %v2887 = vld [vmem:[%s5] sm:$0x1]
      %v2889 = vperm.slane %v2887, 0
      %v2891 = vadd.f32 %v2808, %v2889
      %v2892 = vadd.f32 %v2810, %v2889
      %v2893 = vadd.f32 %v2813, %v2889
      %v2894 = vadd.f32 %v2815, %v2889
      %v2895 = vadd.f32 %v2818, %v2889
      %v2896 = vadd.f32 %v2820, %v2889
      %v2897 = vadd.f32 %v2823, %v2889
      %v2898 = vadd.f32 %v2825, %v2889
      %v2899 = vadd.f32 %v2828, %v2889
      %v2900 = vadd.f32 %v2830, %v2889
      %v2901 = vadd.f32 %v2833, %v2889
      %v2902 = vadd.f32 %v2835, %v2889
      %v2903 = vadd.f32 %v2838, %v2889
      %v2904 = vadd.f32 %v2840, %v2889
      %v2905 = vadd.f32 %v2843, %v2889
      %v2906 = vadd.f32 %v2845, %v2889
      %v2907 = vadd.f32 %v2848, %v2889
      %v2908 = vadd.f32 %v2850, %v2889
      %v2909 = vadd.f32 %v2853, %v2889
      %v2910 = vadd.f32 %v2855, %v2889
      %v2911 = vadd.f32 %v2858, %v2889
      %v2912 = vadd.f32 %v2860, %v2889
      %v2913 = vadd.f32 %v2863, %v2889
      %v2914 = vadd.f32 %v2865, %v2889
      %v2915 = vadd.f32 %v2868, %v2889
      %v2916 = vadd.f32 %v2870, %v2889
      %v2917 = vadd.f32 %v2873, %v2889
      %v2918 = vadd.f32 %v2875, %v2889
      %v2919 = vadd.f32 %v2878, %v2889
      %v2920 = vadd.f32 %v2880, %v2889
      %v2921 = vadd.f32 %v2883, %v2889
      %v2922 = vadd.f32 %v2885, %v2889
      %v2923 = vmax.f32 %v2891, 0.0
      %v2924 = vmax.f32 %v2892, 0.0
      %v2925 = vmax.f32 %v2893, 0.0
      %v2926 = vmax.f32 %v2894, 0.0
      %v2927 = vmax.f32 %v2895, 0.0
      %v2928 = vmax.f32 %v2896, 0.0
      %v2929 = vmax.f32 %v2897, 0.0
      %v2930 = vmax.f32 %v2898, 0.0
      %v2931 = vmax.f32 %v2899, 0.0
      %v2932 = vmax.f32 %v2900, 0.0
      %v2933 = vmax.f32 %v2901, 0.0
      %v2934 = vmax.f32 %v2902, 0.0
      %v2935 = vmax.f32 %v2903, 0.0
      %v2936 = vmax.f32 %v2904, 0.0
      %v2937 = vmax.f32 %v2905, 0.0
      %v2938 = vmax.f32 %v2906, 0.0
      %v2939 = vmax.f32 %v2907, 0.0
      %v2940 = vmax.f32 %v2908, 0.0
      %v2941 = vmax.f32 %v2909, 0.0
      %v2942 = vmax.f32 %v2910, 0.0
      %v2943 = vmax.f32 %v2911, 0.0
      %v2944 = vmax.f32 %v2912, 0.0
      %v2945 = vmax.f32 %v2913, 0.0
      %v2946 = vmax.f32 %v2914, 0.0
      %v2947 = vmax.f32 %v2915, 0.0
      %v2948 = vmax.f32 %v2916, 0.0
      %v2949 = vmax.f32 %v2917, 0.0
      %v2950 = vmax.f32 %v2918, 0.0
      %v2951 = vmax.f32 %v2919, 0.0
      %v2952 = vmax.f32 %v2920, 0.0
      %v2953 = vmax.f32 %v2921, 0.0
      %v2954 = vmax.f32 %v2922, 0.0
      %v2955 = vpack.c.bf16 %v2923, %v2923
      %v2956 = vpack.c.bf16 %v2924, %v2924
      %v2957 = vpack.c.bf16 %v2925, %v2925
      %v2958 = vpack.c.bf16 %v2926, %v2926
      %v2959 = vpack.c.bf16 %v2927, %v2927
      %v2960 = vpack.c.bf16 %v2928, %v2928
      %v2961 = vpack.c.bf16 %v2929, %v2929
      %v2962 = vpack.c.bf16 %v2930, %v2930
      %v2963 = vpack.c.bf16 %v2931, %v2931
      %v2964 = vpack.c.bf16 %v2932, %v2932
      %v2965 = vpack.c.bf16 %v2933, %v2933
      %v2966 = vpack.c.bf16 %v2934, %v2934
      %v2967 = vpack.c.bf16 %v2935, %v2935
      %v2968 = vpack.c.bf16 %v2936, %v2936
      %v2969 = vpack.c.bf16 %v2937, %v2937
      %v2970 = vpack.c.bf16 %v2938, %v2938
      %v2971 = vpack.c.bf16 %v2939, %v2939
      %v2972 = vpack.c.bf16 %v2940, %v2940
      %v2973 = vpack.c.bf16 %v2941, %v2941
      %v2974 = vpack.c.bf16 %v2942, %v2942
      %v2975 = vpack.c.bf16 %v2943, %v2943
      %v2976 = vpack.c.bf16 %v2944, %v2944
      %v2977 = vpack.c.bf16 %v2945, %v2945
      %v2978 = vpack.c.bf16 %v2946, %v2946
      %v2979 = vpack.c.bf16 %v2947, %v2947
      %v2980 = vpack.c.bf16 %v2948, %v2948
      %v2981 = vpack.c.bf16 %v2949, %v2949
      %v2982 = vpack.c.bf16 %v2950, %v2950
      %v2983 = vpack.c.bf16 %v2951, %v2951
      %v2984 = vpack.c.bf16 %v2952, %v2952
      %v2985 = vpack.c.bf16 %v2953, %v2953
      %v2986 = vpack.c.bf16 %v2954, %v2954
      %2987 = vst [vmem:[%s278] sm:$0xf] %v2955
      %2988 = vst [vmem:[%s278 + $0x4] sm:$0xf] %v2956
      %2989 = vst [vmem:[%s278 + $0x8] sm:$0xf] %v2957
      %2990 = vst [vmem:[%s278 + $0xc] sm:$0xf] %v2958
      %2991 = vst [vmem:[%s278 + $0x10] sm:$0xf] %v2959
      %2992 = vst [vmem:[%s278 + $0x14] sm:$0xf] %v2960
      %2993 = vst [vmem:[%s278 + $0x18] sm:$0xf] %v2961
      %2994 = vst [vmem:[%s278 + $0x1c] sm:$0xf] %v2962
      %2995 = vst [vmem:[%s278 + $0x20] sm:$0xf] %v2963
      %2996 = vst [vmem:[%s278 + $0x24] sm:$0xf] %v2964
      %2997 = vst [vmem:[%s278 + $0x28] sm:$0xf] %v2965
      %2998 = vst [vmem:[%s278 + $0x2c] sm:$0xf] %v2966
      %2999 = vst [vmem:[%s278 + $0x30] sm:$0xf] %v2967
      %3000 = vst [vmem:[%s278 + $0x34] sm:$0xf] %v2968
      %3001 = vst [vmem:[%s278 + $0x38] sm:$0xf] %v2969
      %3002 = vst [vmem:[%s278 + $0x3c] sm:$0xf] %v2970
      %3003 = vst [vmem:[%s278 + $0x40] sm:$0xf] %v2971
      %3004 = vst [vmem:[%s278 + $0x44] sm:$0xf] %v2972
      %3005 = vst [vmem:[%s278 + $0x48] sm:$0xf] %v2973
      %3006 = vst [vmem:[%s278 + $0x4c] sm:$0xf] %v2974
      %3007 = vst [vmem:[%s278 + $0x50] sm:$0xf] %v2975
      %3008 = vst [vmem:[%s278 + $0x54] sm:$0xf] %v2976
      %3009 = vst [vmem:[%s278 + $0x58] sm:$0xf] %v2977
      %3010 = vst [vmem:[%s278 + $0x5c] sm:$0xf] %v2978
      %3011 = vst [vmem:[%s278 + $0x60] sm:$0xf] %v2979
      %3012 = vst [vmem:[%s278 + $0x64] sm:$0xf] %v2980
      %3013 = vst [vmem:[%s278 + $0x68] sm:$0xf] %v2981
      %3014 = vst [vmem:[%s278 + $0x6c] sm:$0xf] %v2982
      %3015 = vst [vmem:[%s278 + $0x70] sm:$0xf] %v2983
      %3016 = vst [vmem:[%s278 + $0x74] sm:$0xf] %v2984
      %3017 = vst [vmem:[%s278 + $0x78] sm:$0xf] %v2985
      %3018 = vst [vmem:[%s278 + $0x7c] sm:$0xf] %v2986
      %s3019 = smul.u32 32, %s17
      %p3020 = scmp.lt.s32.totalorder %s3019, 127
      %s3021 = scalar_select %p3020, %s3019, 127
      %s3022 = smul.addr %s3021, 4
      %s3023 = scalar_lea.vmem %s6, %s3022
      // Predicated region
      $region45: #{sage_forward.2} parent=43 // pred_check
        %p3024 = pneg %p171
      $region46: #{sage_forward.2} parent=43 // pred_check_branch
        %3026 = sbr.rel (%p3024) target = $region48
      $region47: #{sage_forward.2} parent=43 // pred_region
        %s3027 = smul.u32 32, %s17
      $region48: #{sage_forward.2} parent=43 // pred_fallthru
        _
    $region44: #{sage_forward.2} parent=5 // pred_fallthru
      _
    %p3028 = scmp.le.s32.totalorder 2, %s12
    // Predicated region
    $region49: #{sage_forward.2} parent=5 // pred_check
      %p3029 = pneg %p3028
    $region50: #{sage_forward.2} parent=5 // pred_check_branch
      %3031 = sbr.rel (%p3029) target = $region52
    $region51: #{sage_forward.2} parent=5 // pred_region
      %s3032 = ssub.s32 %s12, 2
      // Predicated region
      $region53: #{sage_forward.2} parent=51 // pred_check
        %p3033 = pneg %p177
      $region54: #{sage_forward.2} parent=51 // pred_check_branch
        %3035 = sbr.rel (%p3033) target = $region56
      $region55: #{sage_forward.2} parent=51 // pred_region
        %s3036 = smul.u32 32, %s18
        %p3037 = scmp.lt.s32.totalorder %s3036, 127
        %s3038 = scalar_select %p3037, %s3036, 127
        %s3039 = smul.addr %s3038, 4
        %s3040 = scalar_lea.vmem %s6, %s3039
      $region56: #{sage_forward.2} parent=51 // pred_fallthru
        _
    $region52: #{sage_forward.2} parent=5 // pred_fallthru
      _
  $region6: #{sage_forward.2} parent=0 // loop_footer
    %s16 = sadd.s32 1, %s12
  $region7: #{sage_forward.2} parent=0 // loop_footer_branch
    %11 = sbr.rel target = $region3
  $region8: #{sage_forward.2} parent=0 // loop_exit
    _

</llo_original>
